<compile_context>
chip_gen: v5e
topology: v5e:2x2
jax: 0.10.0
libtpu: 0.0.40
codegen_flags: <defaults>
</compile_context>

<pallas_src>
import functools

import jax
import jax.numpy as jnp
from jax.experimental import pallas as pl
from jax.experimental.pallas import tpu as pltpu


# ----------------------------------------------------------------------------
# Tiling helpers
# ----------------------------------------------------------------------------
_TM_CAP, _TN_CAP, _TK_CAP = 512, 512, 1024   # v6e-sized caps; v7x split below
_SUBLANE, _LANE = 16, 128                     # bf16 sublane quantum / lane width


def _round_up(x, m):
    return (x + m - 1) // m * m


def _largest_tile(dim_padded, cap, align):
    """Largest t <= cap with t % align == 0 and dim_padded % t == 0."""
    if dim_padded <= cap:
        return dim_padded
    best, t = align, align
    while t <= cap:
        if dim_padded % t == 0:
            best = t
        t += align
    return best


def _pad_m(m):
    return _round_up(m, _SUBLANE)


def _pad_n(n):
    return _round_up(n, _LANE)          # keep output lane-dense


def _pad_k(k):
    """K pads only to the sublane quantum when a single full-K block fits."""
    kp = _round_up(k, _SUBLANE)
    return kp if kp <= _TK_CAP else _round_up(k, _LANE)


def _tm_for(mp):
    return _largest_tile(mp, _TM_CAP, _SUBLANE)


def _tn_for(np_):
    return _largest_tile(np_, _TN_CAP, _LANE)


def _tk_for(kp):
    return kp if kp <= _TK_CAP else _largest_tile(kp, _TK_CAP, _LANE)


# ----------------------------------------------------------------------------
# Pallas kernels
# ----------------------------------------------------------------------------
def _matmul_bn_act_kernel(a_ref, w_ref, ss_ref, o_ref, acc_ref, *, act):
    """Tiled  out = act((A @ W) * scale + shift)  with f32 accumulation.

    ss_ref packs scale (row 0) and shift (row 1) in one (2, tn) operand.
    """
    @pl.when(pl.program_id(2) == 0)
    def _():
        acc_ref[...] = jnp.zeros_like(acc_ref)

    acc_ref[...] += jnp.dot(a_ref[...], w_ref[...],
                            preferred_element_type=jnp.float32)

    @pl.when(pl.program_id(2) == pl.num_programs(2) - 1)
    def _():
        y = acc_ref[...] * ss_ref[0:1, :] + ss_ref[1:2, :]
        if act == "leaky_relu":
            y = jnp.where(y > 0, y, 0.01 * y)   # PyTorch LeakyReLU default slope
        elif act == "tanh":
            y = jnp.tanh(y)
        o_ref[...] = y.astype(o_ref.dtype)


def _fc_heads_reparam_kernel(a_ref, w_ref, b_ref, eps_ref,
                             mu_ref, lv_ref, z_ref, acc_ref, *, lp):
    """Fused fc_mu||fc_var (one [Fp, 2*Lp] dot) + reparameterization epilogue."""
    k = pl.program_id(0)

    @pl.when(k == 0)
    def _():
        acc_ref[...] = jnp.zeros_like(acc_ref)

    acc_ref[...] += jnp.dot(a_ref[...], w_ref[...],
                            preferred_element_type=jnp.float32)

    @pl.when(k == pl.num_programs(0) - 1)
    def _():
        y = acc_ref[...] + b_ref[...]          # [Bp, 2*Lp]
        mu = y[:, :lp]
        lv = y[:, lp:]
        mu_ref[...] = mu
        lv_ref[...] = lv
        z_ref[...] = eps_ref[...] * jnp.exp(0.5 * lv) + mu


# ----------------------------------------------------------------------------
# Pallas wrappers
# ----------------------------------------------------------------------------
def pallas_matmul_bn_act(a, w_p, ss_p, act, n_out, out_dtype=jnp.bfloat16):
    """a:[M,K]. w_p:[Kp,Np] bf16 pre-padded, ss_p:[2,Np] f32 (scale;shift).

    Returns out_dtype [M, n_out] = act((a @ W) * scale + shift)[:, :n_out].
    """
    M, K = a.shape
    Kp, Np = w_p.shape
    Mp = _pad_m(M)
    tm, tn, tk = _tm_for(Mp), _tn_for(Np), _tk_for(Kp)

    # v7x: guarantee >=2 blocks along a parallel axis so both TCs get work.
    if Mp // tm == 1 and Np // tn == 1:
        if tm % (2 * _SUBLANE) == 0:
            tm //= 2
        elif tn % (2 * _LANE) == 0:
            tn //= 2

    if a.dtype != jnp.bfloat16:
        a = a.astype(jnp.bfloat16)
    a_p = a if (Mp == M and Kp == K) else jnp.pad(a, ((0, Mp - M), (0, Kp - K)))

    out_bytes = jnp.dtype(out_dtype).itemsize
    cost = pl.CostEstimate(
        flops=2 * Mp * Np * Kp,
        transcendentals=Mp * Np if act == "tanh" else 0,
        bytes_accessed=(Mp * Kp * 2) * (Np // tn) + (Kp * Np * 2) * (Mp // tm)
                       + Mp * Np * out_bytes + 2 * Np * 4,
    )
    vmem = (2 * (tm * tk * 2 + tk * tn * 2 + 2 * tn * 4 + tm * tn * out_bytes)
            + tm * tn * 4 + (8 << 20))

    out = pl.pallas_call(
        functools.partial(_matmul_bn_act_kernel, act=act),
        out_shape=jax.ShapeDtypeStruct((Mp, Np), out_dtype),
        grid_spec=pltpu.PrefetchScalarGridSpec(
            num_scalar_prefetch=0,
            grid=(Mp // tm, Np // tn, Kp // tk),
            in_specs=[
                pl.BlockSpec((tm, tk), lambda i, j, k: (i, k)),
                pl.BlockSpec((tk, tn), lambda i, j, k: (k, j)),
                pl.BlockSpec((2, tn), lambda i, j, k: (0, j)),
            ],
            out_specs=pl.BlockSpec((tm, tn), lambda i, j, k: (i, j)),
            scratch_shapes=[pltpu.VMEM((tm, tn), jnp.float32)],
        ),
        compiler_params=pltpu.CompilerParams(
            dimension_semantics=("parallel", "parallel", "arbitrary"),
            vmem_limit_bytes=int(max(vmem, 16 << 20)),
        ),
        cost_estimate=cost,
    )(a_p, w_p, ss_p)
    return out[:M, :n_out]


def pallas_fc_heads_reparam(flat, eps, w_p, b_p, latent_dim):
    """mu||log_var = flat @ (Wmu||Wvar) + (bmu||bvar); z = eps*exp(0.5*lv)+mu."""
    B, F = flat.shape
    Fp, N2 = w_p.shape                  # N2 == 2 * Lp
    Lp = N2 // 2
    Bp = _pad_m(B)
    tk = _tk_for(Fp)                    # full-Fp block when it fits (<=1024)

    if flat.dtype != jnp.bfloat16:
        flat = flat.astype(jnp.bfloat16)
    a_p = flat if (Bp == B and Fp == F) else jnp.pad(flat, ((0, Bp - B), (0, Fp - F)))
    eps_p = jnp.pad(eps.astype(jnp.float32), ((0, Bp - B), (0, Lp - latent_dim)))

    vmem = (2 * (Bp * tk * 2 + tk * N2 * 2 + N2 * 4 + Bp * Lp * 4)
            + Bp * N2 * 4 + 6 * Bp * Lp * 4 + (8 << 20))

    out_block = pl.BlockSpec((Bp, Lp), lambda k: (0, 0))
    mu, lv, z = pl.pallas_call(
        functools.partial(_fc_heads_reparam_kernel, lp=Lp),
        out_shape=tuple(jax.ShapeDtypeStruct((Bp, Lp), jnp.float32) for _ in range(3)),
        grid_spec=pltpu.PrefetchScalarGridSpec(
            num_scalar_prefetch=0,
            grid=(Fp // tk,),
            in_specs=[
                pl.BlockSpec((Bp, tk), lambda k: (0, k)),
                pl.BlockSpec((tk, N2), lambda k: (k, 0)),
                pl.BlockSpec((1, N2), lambda k: (0, 0)),
                pl.BlockSpec((Bp, Lp), lambda k: (0, 0)),
            ],
            out_specs=(out_block, out_block, out_block),
            scratch_shapes=[pltpu.VMEM((Bp, N2), jnp.float32)],
        ),
        compiler_params=pltpu.CompilerParams(
            dimension_semantics=("arbitrary",),
            vmem_limit_bytes=int(max(vmem, 16 << 20)),
        ),
    )(a_p, w_p, b_p, eps_p)
    return mu[:B, :latent_dim], lv[:B, :latent_dim], z[:B, :latent_dim]


# ----------------------------------------------------------------------------
# Conv glue (JAX-side bf16 patch extraction, matmul in Pallas)
# ----------------------------------------------------------------------------
def _im2col(x, k, stride, pad_lo, pad_hi):
    """NHWC -> patches [N*Ho*Wo, k*k*C] with K layout (kh, kw, cin)."""
    N, H, W, C = x.shape
    xp = jnp.pad(x, ((0, 0), (pad_lo, pad_hi), (pad_lo, pad_hi), (0, 0)))
    Hp, Wp = H + pad_lo + pad_hi, W + pad_lo + pad_hi
    Ho = (Hp - k) // stride + 1
    Wo = (Wp - k) // stride + 1
    cols = []
    for di in range(k):
        for dj in range(k):
            cols.append(xp[:, di:di + (Ho - 1) * stride + 1:stride,
                           dj:dj + (Wo - 1) * stride + 1:stride, :])
    patches = jnp.concatenate(cols, axis=-1).reshape(N * Ho * Wo, k * k * C)
    return patches, (N, Ho, Wo)


def conv2d_bn_act(x, lyr, cout, stride, pad, act, out_dtype):
    patches, (N, Ho, Wo) = _im2col(x, 3, stride, pad, pad)
    y = pallas_matmul_bn_act(patches, lyr["w"], lyr["ss"], act, cout, out_dtype)
    return y.reshape(N, Ho, Wo, cout)


def conv_transpose_s2_subpixel(x, lyr, cout):
    """ConvTranspose2d(k=3,s=2,p=1,op=1)+BN+LeakyReLU via sub-pixel decomposition.

    Each input position's 2x2 neighbourhood produces the 2x2 output block at
    (2i..2i+1, 2j..2j+1); no zero-dilated intermediate is materialized.
    """
    N, H, W, C = x.shape
    xp = jnp.pad(x, ((0, 0), (0, 1), (0, 1), (0, 0)))            # halo for k=0 taps
    cols = [xp[:, di:di + H, dj:dj + W, :] for di in (0, 1) for dj in (0, 1)]
    patches = jnp.concatenate(cols, axis=-1).reshape(N * H * W, 4 * C)
    y = pallas_matmul_bn_act(patches, lyr["w"], lyr["ss"], "leaky_relu", 4 * cout,
                             out_dtype=jnp.bfloat16)
    y = y.reshape(N, H, W, 2, 2, cout)                           # (n,i,j,ph,pw,co)
    return jnp.transpose(y, (0, 1, 3, 2, 4, 5)).reshape(N, 2 * H, 2 * W, cout)


# ----------------------------------------------------------------------------
# Build-time weight preparation (BN folding, padding, bf16 cast, permutations)
# ----------------------------------------------------------------------------
def _pad_matmul_weight(Wm, scale, shift):
    K, N = Wm.shape
    Kp, Np = _pad_k(K), _pad_n(N)
    w = jnp.pad(Wm, ((0, Kp - K), (0, Np - N))).astype(jnp.bfloat16)
    ss = jnp.stack([jnp.pad(scale, (0, Np - N)),
                    jnp.pad(shift, (0, Np - N))]).astype(jnp.float32)   # [2, Np]
    return dict(w=w, ss=ss)


def _fold_bn(b, gamma, beta, mean, var):
    scale = gamma * jax.lax.rsqrt(var + 1e-5)
    shift = beta + scale * (b - mean)
    return scale, shift


def _make_subpixel_weight(W_t):
    """ConvTranspose2d weight [Cin,Cout,3,3] (s=2,p=1,op=1) -> [4*Cin, 4*Cout].

    Row layout: 2x2 input neighbourhood (di,dj,c); column layout: output parity
    group (ph,pw) major, cout minor.
    """
    cin, cout = W_t.shape[0], W_t.shape[1]
    w = lambda kh, kw: W_t[:, :, kh, kw]                 # [Cin, Cout]
    Wm = jnp.zeros((2, 2, cin, 2, 2, cout), jnp.float32)
    # (even, even):  x[i,j]   * w[1,1]
    Wm = Wm.at[0, 0, :, 0, 0, :].set(w(1, 1))
    # (even, odd):   x[i,j+1] * w[1,0] + x[i,j] * w[1,2]
    Wm = Wm.at[0, 1, :, 0, 1, :].set(w(1, 0))
    Wm = Wm.at[0, 0, :, 0, 1, :].set(w(1, 2))
    # (odd, even):   x[i+1,j] * w[0,1] + x[i,j] * w[2,1]
    Wm = Wm.at[1, 0, :, 1, 0, :].set(w(0, 1))
    Wm = Wm.at[0, 0, :, 1, 0, :].set(w(2, 1))
    # (odd, odd):    x[i+1,j+1]*w[0,0] + x[i+1,j]*w[0,2] + x[i,j+1]*w[2,0] + x[i,j]*w[2,2]
    Wm = Wm.at[1, 1, :, 1, 1, :].set(w(0, 0))
    Wm = Wm.at[1, 0, :, 1, 1, :].set(w(0, 2))
    Wm = Wm.at[0, 1, :, 1, 1, :].set(w(2, 0))
    Wm = Wm.at[0, 0, :, 1, 1, :].set(w(2, 2))
    return Wm.reshape(4 * cin, 4 * cout)


def build_vae(key, in_channels, hidden_dims, latent_dim, img_size):
    """Returns (params: arrays-only pytree, cfg: static Python config)."""
    hd = [in_channels] + list(hidden_dims)
    rhd = hd[::-1]
    keys = iter(jax.random.split(key, 256))

    def conv_raw(cin, cout, transposed=False):
        wshape = (cin, cout, 3, 3) if transposed else (cout, cin, 3, 3)
        return dict(
            W=0.1 * jax.random.normal(next(keys), wshape, jnp.float32),
            b=0.01 * jax.random.normal(next(keys), (cout,), jnp.float32),
            gamma=1.0 + 0.05 * jax.random.normal(next(keys), (cout,), jnp.float32),
            beta=0.05 * jax.random.normal(next(keys), (cout,), jnp.float32),
            mean=jnp.zeros((cout,), jnp.float32),
            var=jnp.ones((cout,), jnp.float32),
        )

    def linear_raw(din, dout):
        return dict(W=0.05 * jax.random.normal(next(keys), (din, dout), jnp.float32),
                    b=0.01 * jax.random.normal(next(keys), (dout,), jnp.float32))

    # ---- encoder: Conv2d(k3,s2,p1) + BN + LeakyReLU ----
    enc, He = [], img_size
    for i in range(len(hd) - 1):
        raw = conv_raw(hd[i], hd[i + 1])
        scale, shift = _fold_bn(raw["b"], raw["gamma"], raw["beta"], raw["mean"], raw["var"])
        Wm = jnp.transpose(raw["W"], (2, 3, 1, 0)).reshape(9 * hd[i], hd[i + 1])
        enc.append(_pad_matmul_weight(Wm, scale, shift))
        He = (He + 2 - 3) // 2 + 1
    Ce = hd[-1]
    num_features = Ce * He * He

    # ---- FC heads: rows permuted NCHW-flat -> NHWC-flat; Wmu||Wvar fused along N
    Lp = _round_up(latent_dim, _LANE)
    Fp = _pad_k(num_features)

    def head_w(raw):
        Wp = jnp.transpose(raw["W"].reshape(Ce, He, He, latent_dim),
                           (1, 2, 0, 3)).reshape(num_features, latent_dim)
        w = jnp.pad(Wp, ((0, Fp - num_features), (0, Lp - latent_dim)))
        b = jnp.pad(raw["b"], (0, Lp - latent_dim))
        return w, b

    wmu, bmu = head_w(linear_raw(num_features, latent_dim))
    wvar, bvar = head_w(linear_raw(num_features, latent_dim))
    fc_heads_w = jnp.concatenate([wmu, wvar], axis=1).astype(jnp.bfloat16)   # [Fp, 2*Lp]
    fc_heads_b = jnp.concatenate([bmu, bvar]).reshape(1, 2 * Lp).astype(jnp.float32)

    # fc_decoder_input: permute output columns NCHW-flat -> NHWC-flat
    raw_dec = linear_raw(latent_dim, num_features)
    Wd = jnp.transpose(raw_dec["W"].reshape(latent_dim, Ce, He, He),
                       (0, 2, 3, 1)).reshape(latent_dim, num_features)
    bd = jnp.transpose(raw_dec["b"].reshape(Ce, He, He), (1, 2, 0)).reshape(num_features)
    fc_dec = _pad_matmul_weight(Wd, jnp.ones((num_features,), jnp.float32), bd)

    # ---- decoder: ConvTranspose2d(k3,s2,p1,op1) + BN + LeakyReLU (sub-pixel) ----
    dec = []
    for i in range(len(rhd) - 1):
        raw = conv_raw(rhd[i], rhd[i + 1], transposed=True)
        scale, shift = _fold_bn(raw["b"], raw["gamma"], raw["beta"], raw["mean"], raw["var"])
        Wsub = _make_subpixel_weight(raw["W"])
        dec.append(_pad_matmul_weight(Wsub, jnp.tile(scale, 4), jnp.tile(shift, 4)))

    # ---- final layer: ConvT(k3,s1,p1)+BN+LeakyReLU (== flipped-kernel conv), Conv(k3,s1,p1)+Tanh
    rawT = conv_raw(rhd[-1], rhd[-1], transposed=True)
    scaleT, shiftT = _fold_bn(rawT["b"], rawT["gamma"], rawT["beta"], rawT["mean"], rawT["var"])
    W_eq = jnp.transpose(rawT["W"][:, :, ::-1, ::-1], (1, 0, 2, 3))      # [Cout,Cin,3,3]
    WmT = jnp.transpose(W_eq, (2, 3, 1, 0)).reshape(9 * rhd[-1], rhd[-1])
    final_convT = _pad_matmul_weight(WmT, scaleT, shiftT)

    Wf = 0.1 * jax.random.normal(next(keys), (in_channels, rhd[-1], 3, 3), jnp.float32)
    bf = 0.01 * jax.random.normal(next(keys), (in_channels,), jnp.float32)
    Wmf = jnp.transpose(Wf, (2, 3, 1, 0)).reshape(9 * rhd[-1], in_channels)
    final_conv = _pad_matmul_weight(Wmf, jnp.ones((in_channels,), jnp.float32), bf)

    params = dict(enc=enc, fc_heads_w=fc_heads_w, fc_heads_b=fc_heads_b, fc_dec=fc_dec,
                  dec=dec, final_convT=final_convT, final_conv=final_conv)
    cfg = dict(enc_cout=tuple(hd[1:]), dec_cout=tuple(rhd[1:]),
               latent_dim=latent_dim, num_features=num_features,
               enc_hwc=(He, He, Ce), final_c=rhd[-1], in_channels=in_channels)
    return params, cfg


# ----------------------------------------------------------------------------
# Forward pass: [recon, input, z, mu, log_var]
# ----------------------------------------------------------------------------
def vae_forward(params, x_nchw, eps, *, cfg):
    B = x_nchw.shape[0]
    x = jnp.transpose(x_nchw, (0, 2, 3, 1)).astype(jnp.bfloat16)   # NCHW -> NHWC, once

    # ---- encode (bf16 activations between Pallas matmuls) ----
    h = x
    for lyr, cout in zip(params["enc"], cfg["enc_cout"]):
        h = conv2d_bn_act(h, lyr, cout, stride=2, pad=1, act="leaky_relu",
                          out_dtype=jnp.bfloat16)

    flat = h.reshape(B, -1)     # NHWC-flat; fc weights were pre-permuted to match
    mu, log_var, z = pallas_fc_heads_reparam(
        flat, eps, params["fc_heads_w"], params["fc_heads_b"], cfg["latent_dim"])

    # ---- decode ----
    d = pallas_matmul_bn_act(z, params["fc_dec"]["w"], params["fc_dec"]["ss"],
                             "none", cfg["num_features"], out_dtype=jnp.bfloat16)
    He, We, Ce = cfg["enc_hwc"]
    h = d.reshape(B, He, We, Ce)                            # already NHWC-flat order

    for lyr, cout in zip(params["dec"], cfg["dec_cout"]):
        h = conv_transpose_s2_subpixel(h, lyr, cout)

    # final layer
    h = conv2d_bn_act(h, params["final_convT"], cfg["final_c"],
                      stride=1, pad=1, act="leaky_relu", out_dtype=jnp.bfloat16)
    h = conv2d_bn_act(h, params["final_conv"], cfg["in_channels"],
                      stride=1, pad=1, act="tanh", out_dtype=jnp.float32)

    recon = jnp.transpose(h, (0, 3, 1, 2)).astype(jnp.float32)   # NHWC -> NCHW
    return [recon, x_nchw, z, mu, log_var]


# ----------------------------------------------------------------------------
if __name__ == "__main__":
    key = jax.random.PRNGKey(0)
    k_p, k_x, k_eps = jax.random.split(key, 3)

    B, C_in, IMG = 2, 4, 16
    hidden_dims = [8, 16]
    latent_dim = 16

    params, cfg = build_vae(k_p, C_in, hidden_dims, latent_dim, IMG)
    x = jax.random.normal(k_x, (B, C_in, IMG, IMG), jnp.float32)
    eps = jax.random.normal(k_eps, (B, latent_dim), jnp.float32)

    fwd = jax.jit(functools.partial(vae_forward, cfg=cfg))
    recon, x_out, z, mu, log_var = fwd(params, x, eps)
    jax.block_until_ready(recon)

    assert recon.shape == (B, C_in, IMG, IMG)
    assert z.shape == (B, latent_dim)
    assert mu.shape == (B, latent_dim)
    assert log_var.shape == (B, latent_dim)
    assert bool(jnp.all(jnp.isfinite(recon)))
    assert bool(jnp.all(jnp.isfinite(z)))
    print("KERNEL_OK")
</pallas_src>

<mosaic_0001>
module attributes {stable_mosaic.version = 11 : i64} {
  func.func @_matmul_bn_act_kernel(%arg0: i32, %arg1: i32, %arg2: i32, %arg3: memref<64x48xbf16, #tpu.memory_space<vmem>>, %arg4: memref<48x128xbf16, #tpu.memory_space<vmem>>, %arg5: memref<2x128xf32, #tpu.memory_space<vmem>>, %arg6: memref<64x128xbf16, #tpu.memory_space<vmem>>, %arg7: memref<64x128xf32, #tpu.memory_space<vmem>>) attributes {dimension_semantics = [#tpu.dimension_semantics<parallel>, #tpu.dimension_semantics<parallel>, #tpu.dimension_semantics<arbitrary>], iteration_bounds = array<i64: 2, 1, 1>, scalar_prefetch = 0 : i64, scratch_operands = 1 : i64, tpu.core_type = #tpu.core_type<tc>, window_params = [{transform_indices = @transform_0, window_bounds = array<i64: 64, 48>}, {transform_indices = @transform_1, window_bounds = array<i64: 48, 128>}, {transform_indices = @transform_2, window_bounds = array<i64: 2, 128>}, {transform_indices = @transform_3, window_bounds = array<i64: 64, 128>}]} {
    %c0_i32 = arith.constant 0 : i32
    %0 = arith.cmpi eq, %arg2, %c0_i32 : i32
    %1 = arith.extui %0 : i1 to i32
    %c0_i32_0 = arith.constant 0 : i32
    %2 = arith.cmpi ne, %1, %c0_i32_0 : i32
    scf.if %2 {
      %cst_10 = arith.constant 0.000000e+00 : f32
      %12 = vector.broadcast %cst_10 : f32 to vector<64x128xf32>
      %c0_11 = arith.constant 0 : index
      %c0_12 = arith.constant 0 : index
      %13 = vector.load %arg7[%c0_11, %c0_12] : memref<64x128xf32, #tpu.memory_space<vmem>>, vector<64x128xf32>
      tpu.vector_store %arg7[%c0_11, %c0_12], %12 {strides = array<i32>} : memref<64x128xf32, #tpu.memory_space<vmem>>, vector<64x128xf32>,
    } else {
    }
    %c0 = arith.constant 0 : index
    %c0_1 = arith.constant 0 : index
    %3 = vector.load %arg7[%c0, %c0_1] : memref<64x128xf32, #tpu.memory_space<vmem>>, vector<64x128xf32>
    %c0_2 = arith.constant 0 : index
    %c0_3 = arith.constant 0 : index
    %4 = vector.load %arg3[%c0_2, %c0_3] : memref<64x48xbf16, #tpu.memory_space<vmem>>, vector<64x48xbf16>
    %c0_4 = arith.constant 0 : index
    %c0_5 = arith.constant 0 : index
    %5 = vector.load %arg4[%c0_4, %c0_5] : memref<48x128xbf16, #tpu.memory_space<vmem>>, vector<48x128xbf16>
    %cst = arith.constant dense<0.000000e+00> : vector<64x128xf32>
    %6 = tpu.matmul %4, %5, %cst {dimension_numbers = #tpu.dot_dimension_numbers<[1], [0], [0], [1], [0, 0, 1, 1], [], []>} : vector<64x48xbf16>, vector<48x128xbf16>, vector<64x128xf32> -> vector<64x128xf32>
    %7 = arith.addf %3, %6 : vector<64x128xf32>
    %c0_6 = arith.constant 0 : index
    %c0_7 = arith.constant 0 : index
    %8 = vector.load %arg7[%c0_6, %c0_7] : memref<64x128xf32, #tpu.memory_space<vmem>>, vector<64x128xf32>
    tpu.vector_store %arg7[%c0_6, %c0_7], %7 {strides = array<i32>} : memref<64x128xf32, #tpu.memory_space<vmem>>, vector<64x128xf32>,
    %c0_i32_8 = arith.constant 0 : i32
    %9 = arith.cmpi eq, %arg2, %c0_i32_8 : i32
    %10 = arith.extui %9 : i1 to i32
    %c0_i32_9 = arith.constant 0 : i32
    %11 = arith.cmpi ne, %10, %c0_i32_9 : i32
    scf.if %11 {
      %c0_10 = arith.constant 0 : index
      %c0_11 = arith.constant 0 : index
      %12 = vector.load %arg7[%c0_10, %c0_11] : memref<64x128xf32, #tpu.memory_space<vmem>>, vector<64x128xf32>
      %c0_12 = arith.constant 0 : index
      %c0_13 = arith.constant 0 : index
      %13 = vector.load %arg5[%c0_12, %c0_13] : memref<2x128xf32, #tpu.memory_space<vmem>>, vector<1x128xf32>
      %14 = vector.broadcast %13 : vector<1x128xf32> to vector<64x128xf32>
      %15 = arith.mulf %12, %14 : vector<64x128xf32>
      %c1 = arith.constant 1 : index
      %c0_14 = arith.constant 0 : index
      %16 = vector.load %arg5[%c1, %c0_14] : memref<2x128xf32, #tpu.memory_space<vmem>>, vector<1x128xf32>
      %17 = vector.broadcast %16 : vector<1x128xf32> to vector<64x128xf32>
      %18 = arith.addf %15, %17 : vector<64x128xf32>
      %cst_15 = arith.constant 0.000000e+00 : f32
      %19 = vector.broadcast %cst_15 : f32 to vector<64x128xf32>
      %20 = arith.cmpf ogt, %18, %19 : vector<64x128xf32>
      %cst_16 = arith.constant 0.00999999977 : f32
      %21 = vector.broadcast %cst_16 : f32 to vector<64x128xf32>
      %22 = arith.mulf %21, %18 : vector<64x128xf32>
      %23 = arith.select %20, %18, %22 : vector<64x128xi1>, vector<64x128xf32>
      %24 = arith.truncf %23 : vector<64x128xf32> to vector<64x128xbf16>
      %c0_17 = arith.constant 0 : index
      %c0_18 = arith.constant 0 : index
      %25 = vector.load %arg6[%c0_17, %c0_18] : memref<64x128xbf16, #tpu.memory_space<vmem>>, vector<64x128xbf16>
      tpu.vector_store %arg6[%c0_17, %c0_18], %24 {strides = array<i32>} : memref<64x128xbf16, #tpu.memory_space<vmem>>, vector<64x128xbf16>,
    } else {
    }
    return
  }
  func.func @transform_0(%arg0: i32, %arg1: i32, %arg2: i32) -> (i32, i32) {
    %c0_i32 = arith.constant 0 : i32
    return %arg0, %arg2 : i32, i32
  }
  func.func @transform_1(%arg0: i32, %arg1: i32, %arg2: i32) -> (i32, i32) {
    %c0_i32 = arith.constant 0 : i32
    return %arg2, %arg1 : i32, i32
  }
  func.func @transform_2(%arg0: i32, %arg1: i32, %arg2: i32) -> (i32, i32) {
    %c0_i32 = arith.constant 0 : i32
    %c0_i32_0 = arith.constant 0 : i32
    return %c0_i32, %arg1 : i32, i32
  }
  func.func @transform_3(%arg0: i32, %arg1: i32, %arg2: i32) -> (i32, i32) {
    %c0_i32 = arith.constant 0 : i32
    return %arg0, %arg1 : i32, i32
  }
}

module attributes {stable_mosaic.version = 11 : i64} {
  func.func @_matmul_bn_act_kernel(%arg0: i32, %arg1: i32, %arg2: i32, %arg3: memref<16x80xbf16, #tpu.memory_space<vmem>>, %arg4: memref<80x128xbf16, #tpu.memory_space<vmem>>, %arg5: memref<2x128xf32, #tpu.memory_space<vmem>>, %arg6: memref<16x128xbf16, #tpu.memory_space<vmem>>, %arg7: memref<16x128xf32, #tpu.memory_space<vmem>>) attributes {dimension_semantics = [#tpu.dimension_semantics<parallel>, #tpu.dimension_semantics<parallel>, #tpu.dimension_semantics<arbitrary>], iteration_bounds = array<i64: 2, 1, 1>, scalar_prefetch = 0 : i64, scratch_operands = 1 : i64, tpu.core_type = #tpu.core_type<tc>, window_params = [{transform_indices = @transform_0, window_bounds = array<i64: 16, 80>}, {transform_indices = @transform_1, window_bounds = array<i64: 80, 128>}, {transform_indices = @transform_2, window_bounds = array<i64: 2, 128>}, {transform_indices = @transform_3, window_bounds = array<i64: 16, 128>}]} {
    %c0_i32 = arith.constant 0 : i32
    %0 = arith.cmpi eq, %arg2, %c0_i32 : i32
    %1 = arith.extui %0 : i1 to i32
    %c0_i32_0 = arith.constant 0 : i32
    %2 = arith.cmpi ne, %1, %c0_i32_0 : i32
    scf.if %2 {
      %cst_10 = arith.constant 0.000000e+00 : f32
      %12 = vector.broadcast %cst_10 : f32 to vector<16x128xf32>
      %c0_11 = arith.constant 0 : index
      %c0_12 = arith.constant 0 : index
      %13 = vector.load %arg7[%c0_11, %c0_12] : memref<16x128xf32, #tpu.memory_space<vmem>>, vector<16x128xf32>
      tpu.vector_store %arg7[%c0_11, %c0_12], %12 {strides = array<i32>} : memref<16x128xf32, #tpu.memory_space<vmem>>, vector<16x128xf32>,
    } else {
    }
    %c0 = arith.constant 0 : index
    %c0_1 = arith.constant 0 : index
    %3 = vector.load %arg7[%c0, %c0_1] : memref<16x128xf32, #tpu.memory_space<vmem>>, vector<16x128xf32>
    %c0_2 = arith.constant 0 : index
    %c0_3 = arith.constant 0 : index
    %4 = vector.load %arg3[%c0_2, %c0_3] : memref<16x80xbf16, #tpu.memory_space<vmem>>, vector<16x80xbf16>
    %c0_4 = arith.constant 0 : index
    %c0_5 = arith.constant 0 : index
    %5 = vector.load %arg4[%c0_4, %c0_5] : memref<80x128xbf16, #tpu.memory_space<vmem>>, vector<80x128xbf16>
    %cst = arith.constant dense<0.000000e+00> : vector<16x128xf32>
    %6 = tpu.matmul %4, %5, %cst {dimension_numbers = #tpu.dot_dimension_numbers<[1], [0], [0], [1], [0, 0, 1, 1], [], []>} : vector<16x80xbf16>, vector<80x128xbf16>, vector<16x128xf32> -> vector<16x128xf32>
    %7 = arith.addf %3, %6 : vector<16x128xf32>
    %c0_6 = arith.constant 0 : index
    %c0_7 = arith.constant 0 : index
    %8 = vector.load %arg7[%c0_6, %c0_7] : memref<16x128xf32, #tpu.memory_space<vmem>>, vector<16x128xf32>
    tpu.vector_store %arg7[%c0_6, %c0_7], %7 {strides = array<i32>} : memref<16x128xf32, #tpu.memory_space<vmem>>, vector<16x128xf32>,
    %c0_i32_8 = arith.constant 0 : i32
    %9 = arith.cmpi eq, %arg2, %c0_i32_8 : i32
    %10 = arith.extui %9 : i1 to i32
    %c0_i32_9 = arith.constant 0 : i32
    %11 = arith.cmpi ne, %10, %c0_i32_9 : i32
    scf.if %11 {
      %c0_10 = arith.constant 0 : index
      %c0_11 = arith.constant 0 : index
      %12 = vector.load %arg7[%c0_10, %c0_11] : memref<16x128xf32, #tpu.memory_space<vmem>>, vector<16x128xf32>
      %c0_12 = arith.constant 0 : index
      %c0_13 = arith.constant 0 : index
      %13 = vector.load %arg5[%c0_12, %c0_13] : memref<2x128xf32, #tpu.memory_space<vmem>>, vector<1x128xf32>
      %14 = vector.broadcast %13 : vector<1x128xf32> to vector<16x128xf32>
      %15 = arith.mulf %12, %14 : vector<16x128xf32>
      %c1 = arith.constant 1 : index
      %c0_14 = arith.constant 0 : index
      %16 = vector.load %arg5[%c1, %c0_14] : memref<2x128xf32, #tpu.memory_space<vmem>>, vector<1x128xf32>
      %17 = vector.broadcast %16 : vector<1x128xf32> to vector<16x128xf32>
      %18 = arith.addf %15, %17 : vector<16x128xf32>
      %cst_15 = arith.constant 0.000000e+00 : f32
      %19 = vector.broadcast %cst_15 : f32 to vector<16x128xf32>
      %20 = arith.cmpf ogt, %18, %19 : vector<16x128xf32>
      %cst_16 = arith.constant 0.00999999977 : f32
      %21 = vector.broadcast %cst_16 : f32 to vector<16x128xf32>
      %22 = arith.mulf %21, %18 : vector<16x128xf32>
      %23 = arith.select %20, %18, %22 : vector<16x128xi1>, vector<16x128xf32>
      %24 = arith.truncf %23 : vector<16x128xf32> to vector<16x128xbf16>
      %c0_17 = arith.constant 0 : index
      %c0_18 = arith.constant 0 : index
      %25 = vector.load %arg6[%c0_17, %c0_18] : memref<16x128xbf16, #tpu.memory_space<vmem>>, vector<16x128xbf16>
      tpu.vector_store %arg6[%c0_17, %c0_18], %24 {strides = array<i32>} : memref<16x128xbf16, #tpu.memory_space<vmem>>, vector<16x128xbf16>,
    } else {
    }
    return
  }
  func.func @transform_0(%arg0: i32, %arg1: i32, %arg2: i32) -> (i32, i32) {
    %c0_i32 = arith.constant 0 : i32
    return %arg0, %arg2 : i32, i32
  }
  func.func @transform_1(%arg0: i32, %arg1: i32, %arg2: i32) -> (i32, i32) {
    %c0_i32 = arith.constant 0 : i32
    return %arg2, %arg1 : i32, i32
  }
  func.func @transform_2(%arg0: i32, %arg1: i32, %arg2: i32) -> (i32, i32) {
    %c0_i32 = arith.constant 0 : i32
    %c0_i32_0 = arith.constant 0 : i32
    return %c0_i32, %arg1 : i32, i32
  }
  func.func @transform_3(%arg0: i32, %arg1: i32, %arg2: i32) -> (i32, i32) {
    %c0_i32 = arith.constant 0 : i32
    return %arg0, %arg1 : i32, i32
  }
}

module attributes {stable_mosaic.version = 11 : i64} {
  func.func @_fc_heads_reparam_kernel(%arg0: i32, %arg1: memref<16x256xbf16, #tpu.memory_space<vmem>>, %arg2: memref<256x256xbf16, #tpu.memory_space<vmem>>, %arg3: memref<1x256xf32, #tpu.memory_space<vmem>>, %arg4: memref<16x128xf32, #tpu.memory_space<vmem>>, %arg5: memref<16x128xf32, #tpu.memory_space<vmem>>, %arg6: memref<16x128xf32, #tpu.memory_space<vmem>>, %arg7: memref<16x128xf32, #tpu.memory_space<vmem>>, %arg8: memref<16x256xf32, #tpu.memory_space<vmem>>) attributes {dimension_semantics = [#tpu.dimension_semantics<arbitrary>], iteration_bounds = array<i64: 1>, scalar_prefetch = 0 : i64, scratch_operands = 1 : i64, tpu.core_type = #tpu.core_type<tc>, window_params = [{transform_indices = @transform_0, window_bounds = array<i64: 16, 256>}, {transform_indices = @transform_1, window_bounds = array<i64: 256, 256>}, {pipeline_mode = #tpu.pipeline_mode<synchronous>, transform_indices = @transform_2, window_bounds = array<i64: 1, 256>}, {pipeline_mode = #tpu.pipeline_mode<synchronous>, transform_indices = @transform_3, window_bounds = array<i64: 16, 128>}, {pipeline_mode = #tpu.pipeline_mode<synchronous>, transform_indices = @transform_4, window_bounds = array<i64: 16, 128>}, {pipeline_mode = #tpu.pipeline_mode<synchronous>, transform_indices = @transform_5, window_bounds = array<i64: 16, 128>}, {pipeline_mode = #tpu.pipeline_mode<synchronous>, transform_indices = @transform_6, window_bounds = array<i64: 16, 128>}]} {
    %c0_i32 = arith.constant 0 : i32
    %0 = arith.cmpi eq, %arg0, %c0_i32 : i32
    %1 = arith.extui %0 : i1 to i32
    %c0_i32_0 = arith.constant 0 : i32
    %2 = arith.cmpi ne, %1, %c0_i32_0 : i32
    scf.if %2 {
      %cst_10 = arith.constant 0.000000e+00 : f32
      %12 = vector.broadcast %cst_10 : f32 to vector<16x256xf32>
      %c0_11 = arith.constant 0 : index
      %c0_12 = arith.constant 0 : index
      %13 = vector.load %arg8[%c0_11, %c0_12] : memref<16x256xf32, #tpu.memory_space<vmem>>, vector<16x256xf32>
      tpu.vector_store %arg8[%c0_11, %c0_12], %12 {strides = array<i32>} : memref<16x256xf32, #tpu.memory_space<vmem>>, vector<16x256xf32>,
    } else {
    }
    %c0 = arith.constant 0 : index
    %c0_1 = arith.constant 0 : index
    %3 = vector.load %arg8[%c0, %c0_1] : memref<16x256xf32, #tpu.memory_space<vmem>>, vector<16x256xf32>
    %c0_2 = arith.constant 0 : index
    %c0_3 = arith.constant 0 : index
    %4 = vector.load %arg1[%c0_2, %c0_3] : memref<16x256xbf16, #tpu.memory_space<vmem>>, vector<16x256xbf16>
    %c0_4 = arith.constant 0 : index
    %c0_5 = arith.constant 0 : index
    %5 = vector.load %arg2[%c0_4, %c0_5] : memref<256x256xbf16, #tpu.memory_space<vmem>>, vector<256x256xbf16>
    %cst = arith.constant dense<0.000000e+00> : vector<16x256xf32>
    %6 = tpu.matmul %4, %5, %cst {dimension_numbers = #tpu.dot_dimension_numbers<[1], [0], [0], [1], [0, 0, 1, 1], [], []>} : vector<16x256xbf16>, vector<256x256xbf16>, vector<16x256xf32> -> vector<16x256xf32>
    %7 = arith.addf %3, %6 : vector<16x256xf32>
    %c0_6 = arith.constant 0 : index
    %c0_7 = arith.constant 0 : index
    %8 = vector.load %arg8[%c0_6, %c0_7] : memref<16x256xf32, #tpu.memory_space<vmem>>, vector<16x256xf32>
    tpu.vector_store %arg8[%c0_6, %c0_7], %7 {strides = array<i32>} : memref<16x256xf32, #tpu.memory_space<vmem>>, vector<16x256xf32>,
    %c0_i32_8 = arith.constant 0 : i32
    %9 = arith.cmpi eq, %arg0, %c0_i32_8 : i32
    %10 = arith.extui %9 : i1 to i32
    %c0_i32_9 = arith.constant 0 : i32
    %11 = arith.cmpi ne, %10, %c0_i32_9 : i32
    scf.if %11 {
      %c0_10 = arith.constant 0 : index
      %c0_11 = arith.constant 0 : index
      %12 = vector.load %arg8[%c0_10, %c0_11] : memref<16x256xf32, #tpu.memory_space<vmem>>, vector<16x256xf32>
      %c0_12 = arith.constant 0 : index
      %c0_13 = arith.constant 0 : index
      %13 = vector.load %arg3[%c0_12, %c0_13] : memref<1x256xf32, #tpu.memory_space<vmem>>, vector<1x256xf32>
      %14 = vector.broadcast %13 : vector<1x256xf32> to vector<16x256xf32>
      %15 = arith.addf %12, %14 : vector<16x256xf32>
      %16 = vector.extract_strided_slice %15 {offsets = [0, 0], sizes = [16, 128], strides = [1, 1]} : vector<16x256xf32> to vector<16x128xf32>
      %17 = vector.extract_strided_slice %15 {offsets = [0, 128], sizes = [16, 128], strides = [1, 1]} : vector<16x256xf32> to vector<16x128xf32>
      %c0_14 = arith.constant 0 : index
      %c0_15 = arith.constant 0 : index
      %18 = vector.load %arg5[%c0_14, %c0_15] : memref<16x128xf32, #tpu.memory_space<vmem>>, vector<16x128xf32>
      tpu.vector_store %arg5[%c0_14, %c0_15], %16 {strides = array<i32>} : memref<16x128xf32, #tpu.memory_space<vmem>>, vector<16x128xf32>,
      %c0_16 = arith.constant 0 : index
      %c0_17 = arith.constant 0 : index
      %19 = vector.load %arg6[%c0_16, %c0_17] : memref<16x128xf32, #tpu.memory_space<vmem>>, vector<16x128xf32>
      tpu.vector_store %arg6[%c0_16, %c0_17], %17 {strides = array<i32>} : memref<16x128xf32, #tpu.memory_space<vmem>>, vector<16x128xf32>,
      %c0_18 = arith.constant 0 : index
      %c0_19 = arith.constant 0 : index
      %20 = vector.load %arg4[%c0_18, %c0_19] : memref<16x128xf32, #tpu.memory_space<vmem>>, vector<16x128xf32>
      %cst_20 = arith.constant 5.000000e-01 : f32
      %21 = vector.broadcast %cst_20 : f32 to vector<16x128xf32>
      %22 = arith.mulf %21, %17 : vector<16x128xf32>
      %23 = math.exp %22 : vector<16x128xf32>
      %24 = arith.mulf %20, %23 : vector<16x128xf32>
      %25 = arith.addf %24, %16 : vector<16x128xf32>
      %c0_21 = arith.constant 0 : index
      %c0_22 = arith.constant 0 : index
      %26 = vector.load %arg7[%c0_21, %c0_22] : memref<16x128xf32, #tpu.memory_space<vmem>>, vector<16x128xf32>
      tpu.vector_store %arg7[%c0_21, %c0_22], %25 {strides = array<i32>} : memref<16x128xf32, #tpu.memory_space<vmem>>, vector<16x128xf32>,
    } else {
    }
    return
  }
  func.func @transform_0(%arg0: i32) -> (i32, i32) {
    %c0_i32 = arith.constant 0 : i32
    %c0_i32_0 = arith.constant 0 : i32
    return %c0_i32, %arg0 : i32, i32
  }
  func.func @transform_1(%arg0: i32) -> (i32, i32) {
    %c0_i32 = arith.constant 0 : i32
    %c0_i32_0 = arith.constant 0 : i32
    return %arg0, %c0_i32 : i32, i32
  }
  func.func @transform_2(%arg0: i32) -> (i32, i32) {
    %c0_i32 = arith.constant 0 : i32
    %c0_i32_0 = arith.constant 0 : i32
    %c0_i32_1 = arith.constant 0 : i32
    return %c0_i32, %c0_i32_0 : i32, i32
  }
  func.func @transform_3(%arg0: i32) -> (i32, i32) {
    %c0_i32 = arith.constant 0 : i32
    %c0_i32_0 = arith.constant 0 : i32
    %c0_i32_1 = arith.constant 0 : i32
    return %c0_i32, %c0_i32_0 : i32, i32
  }
  func.func @transform_4(%arg0: i32) -> (i32, i32) {
    %c0_i32 = arith.constant 0 : i32
    %c0_i32_0 = arith.constant 0 : i32
    %c0_i32_1 = arith.constant 0 : i32
    return %c0_i32, %c0_i32_0 : i32, i32
  }
  func.func @transform_5(%arg0: i32) -> (i32, i32) {
    %c0_i32 = arith.constant 0 : i32
    %c0_i32_0 = arith.constant 0 : i32
    %c0_i32_1 = arith.constant 0 : i32
    return %c0_i32, %c0_i32_0 : i32, i32
  }
  func.func @transform_6(%arg0: i32) -> (i32, i32) {
    %c0_i32 = arith.constant 0 : i32
    %c0_i32_0 = arith.constant 0 : i32
    %c0_i32_1 = arith.constant 0 : i32
    return %c0_i32, %c0_i32_0 : i32, i32
  }
}

module attributes {stable_mosaic.version = 11 : i64} {
  func.func @_matmul_bn_act_kernel(%arg0: i32, %arg1: i32, %arg2: i32, %arg3: memref<16x16xbf16, #tpu.memory_space<vmem>>, %arg4: memref<16x128xbf16, #tpu.memory_space<vmem>>, %arg5: memref<2x128xf32, #tpu.memory_space<vmem>>, %arg6: memref<16x128xbf16, #tpu.memory_space<vmem>>, %arg7: memref<16x128xf32, #tpu.memory_space<vmem>>) attributes {dimension_semantics = [#tpu.dimension_semantics<parallel>, #tpu.dimension_semantics<parallel>, #tpu.dimension_semantics<arbitrary>], iteration_bounds = array<i64: 1, 2, 1>, scalar_prefetch = 0 : i64, scratch_operands = 1 : i64, tpu.core_type = #tpu.core_type<tc>, window_params = [{transform_indices = @transform_0, window_bounds = array<i64: 16, 16>}, {transform_indices = @transform_1, window_bounds = array<i64: 16, 128>}, {transform_indices = @transform_2, window_bounds = array<i64: 2, 128>}, {transform_indices = @transform_3, window_bounds = array<i64: 16, 128>}]} {
    %c0_i32 = arith.constant 0 : i32
    %0 = arith.cmpi eq, %arg2, %c0_i32 : i32
    %1 = arith.extui %0 : i1 to i32
    %c0_i32_0 = arith.constant 0 : i32
    %2 = arith.cmpi ne, %1, %c0_i32_0 : i32
    scf.if %2 {
      %cst_10 = arith.constant 0.000000e+00 : f32
      %12 = vector.broadcast %cst_10 : f32 to vector<16x128xf32>
      %c0_11 = arith.constant 0 : index
      %c0_12 = arith.constant 0 : index
      %13 = vector.load %arg7[%c0_11, %c0_12] : memref<16x128xf32, #tpu.memory_space<vmem>>, vector<16x128xf32>
      tpu.vector_store %arg7[%c0_11, %c0_12], %12 {strides = array<i32>} : memref<16x128xf32, #tpu.memory_space<vmem>>, vector<16x128xf32>,
    } else {
    }
    %c0 = arith.constant 0 : index
    %c0_1 = arith.constant 0 : index
    %3 = vector.load %arg7[%c0, %c0_1] : memref<16x128xf32, #tpu.memory_space<vmem>>, vector<16x128xf32>
    %c0_2 = arith.constant 0 : index
    %c0_3 = arith.constant 0 : index
    %4 = vector.load %arg3[%c0_2, %c0_3] : memref<16x16xbf16, #tpu.memory_space<vmem>>, vector<16x16xbf16>
    %c0_4 = arith.constant 0 : index
    %c0_5 = arith.constant 0 : index
    %5 = vector.load %arg4[%c0_4, %c0_5] : memref<16x128xbf16, #tpu.memory_space<vmem>>, vector<16x128xbf16>
    %cst = arith.constant dense<0.000000e+00> : vector<16x128xf32>
    %6 = tpu.matmul %4, %5, %cst {dimension_numbers = #tpu.dot_dimension_numbers<[1], [0], [0], [1], [0, 0, 1, 1], [], []>} : vector<16x16xbf16>, vector<16x128xbf16>, vector<16x128xf32> -> vector<16x128xf32>
    %7 = arith.addf %3, %6 : vector<16x128xf32>
    %c0_6 = arith.constant 0 : index
    %c0_7 = arith.constant 0 : index
    %8 = vector.load %arg7[%c0_6, %c0_7] : memref<16x128xf32, #tpu.memory_space<vmem>>, vector<16x128xf32>
    tpu.vector_store %arg7[%c0_6, %c0_7], %7 {strides = array<i32>} : memref<16x128xf32, #tpu.memory_space<vmem>>, vector<16x128xf32>,
    %c0_i32_8 = arith.constant 0 : i32
    %9 = arith.cmpi eq, %arg2, %c0_i32_8 : i32
    %10 = arith.extui %9 : i1 to i32
    %c0_i32_9 = arith.constant 0 : i32
    %11 = arith.cmpi ne, %10, %c0_i32_9 : i32
    scf.if %11 {
      %c0_10 = arith.constant 0 : index
      %c0_11 = arith.constant 0 : index
      %12 = vector.load %arg7[%c0_10, %c0_11] : memref<16x128xf32, #tpu.memory_space<vmem>>, vector<16x128xf32>
      %c0_12 = arith.constant 0 : index
      %c0_13 = arith.constant 0 : index
      %13 = vector.load %arg5[%c0_12, %c0_13] : memref<2x128xf32, #tpu.memory_space<vmem>>, vector<1x128xf32>
      %14 = vector.broadcast %13 : vector<1x128xf32> to vector<16x128xf32>
      %15 = arith.mulf %12, %14 : vector<16x128xf32>
      %c1 = arith.constant 1 : index
      %c0_14 = arith.constant 0 : index
      %16 = vector.load %arg5[%c1, %c0_14] : memref<2x128xf32, #tpu.memory_space<vmem>>, vector<1x128xf32>
      %17 = vector.broadcast %16 : vector<1x128xf32> to vector<16x128xf32>
      %18 = arith.addf %15, %17 : vector<16x128xf32>
      %19 = arith.truncf %18 : vector<16x128xf32> to vector<16x128xbf16>
      %c0_15 = arith.constant 0 : index
      %c0_16 = arith.constant 0 : index
      %20 = vector.load %arg6[%c0_15, %c0_16] : memref<16x128xbf16, #tpu.memory_space<vmem>>, vector<16x128xbf16>
      tpu.vector_store %arg6[%c0_15, %c0_16], %19 {strides = array<i32>} : memref<16x128xbf16, #tpu.memory_space<vmem>>, vector<16x128xbf16>,
    } else {
    }
    return
  }
  func.func @transform_0(%arg0: i32, %arg1: i32, %arg2: i32) -> (i32, i32) {
    %c0_i32 = arith.constant 0 : i32
    return %arg0, %arg2 : i32, i32
  }
  func.func @transform_1(%arg0: i32, %arg1: i32, %arg2: i32) -> (i32, i32) {
    %c0_i32 = arith.constant 0 : i32
    return %arg2, %arg1 : i32, i32
  }
  func.func @transform_2(%arg0: i32, %arg1: i32, %arg2: i32) -> (i32, i32) {
    %c0_i32 = arith.constant 0 : i32
    %c0_i32_0 = arith.constant 0 : i32
    return %c0_i32, %arg1 : i32, i32
  }
  func.func @transform_3(%arg0: i32, %arg1: i32, %arg2: i32) -> (i32, i32) {
    %c0_i32 = arith.constant 0 : i32
    return %arg0, %arg1 : i32, i32
  }
}

module attributes {stable_mosaic.version = 11 : i64} {
  func.func @_matmul_bn_act_kernel(%arg0: i32, %arg1: i32, %arg2: i32, %arg3: memref<16x64xbf16, #tpu.memory_space<vmem>>, %arg4: memref<64x128xbf16, #tpu.memory_space<vmem>>, %arg5: memref<2x128xf32, #tpu.memory_space<vmem>>, %arg6: memref<16x128xbf16, #tpu.memory_space<vmem>>, %arg7: memref<16x128xf32, #tpu.memory_space<vmem>>) attributes {dimension_semantics = [#tpu.dimension_semantics<parallel>, #tpu.dimension_semantics<parallel>, #tpu.dimension_semantics<arbitrary>], iteration_bounds = array<i64: 2, 1, 1>, scalar_prefetch = 0 : i64, scratch_operands = 1 : i64, tpu.core_type = #tpu.core_type<tc>, window_params = [{transform_indices = @transform_0, window_bounds = array<i64: 16, 64>}, {transform_indices = @transform_1, window_bounds = array<i64: 64, 128>}, {transform_indices = @transform_2, window_bounds = array<i64: 2, 128>}, {transform_indices = @transform_3, window_bounds = array<i64: 16, 128>}]} {
    %c0_i32 = arith.constant 0 : i32
    %0 = arith.cmpi eq, %arg2, %c0_i32 : i32
    %1 = arith.extui %0 : i1 to i32
    %c0_i32_0 = arith.constant 0 : i32
    %2 = arith.cmpi ne, %1, %c0_i32_0 : i32
    scf.if %2 {
      %cst_10 = arith.constant 0.000000e+00 : f32
      %12 = vector.broadcast %cst_10 : f32 to vector<16x128xf32>
      %c0_11 = arith.constant 0 : index
      %c0_12 = arith.constant 0 : index
      %13 = vector.load %arg7[%c0_11, %c0_12] : memref<16x128xf32, #tpu.memory_space<vmem>>, vector<16x128xf32>
      tpu.vector_store %arg7[%c0_11, %c0_12], %12 {strides = array<i32>} : memref<16x128xf32, #tpu.memory_space<vmem>>, vector<16x128xf32>,
    } else {
    }
    %c0 = arith.constant 0 : index
    %c0_1 = arith.constant 0 : index
    %3 = vector.load %arg7[%c0, %c0_1] : memref<16x128xf32, #tpu.memory_space<vmem>>, vector<16x128xf32>
    %c0_2 = arith.constant 0 : index
    %c0_3 = arith.constant 0 : index
    %4 = vector.load %arg3[%c0_2, %c0_3] : memref<16x64xbf16, #tpu.memory_space<vmem>>, vector<16x64xbf16>
    %c0_4 = arith.constant 0 : index
    %c0_5 = arith.constant 0 : index
    %5 = vector.load %arg4[%c0_4, %c0_5] : memref<64x128xbf16, #tpu.memory_space<vmem>>, vector<64x128xbf16>
    %cst = arith.constant dense<0.000000e+00> : vector<16x128xf32>
    %6 = tpu.matmul %4, %5, %cst {dimension_numbers = #tpu.dot_dimension_numbers<[1], [0], [0], [1], [0, 0, 1, 1], [], []>} : vector<16x64xbf16>, vector<64x128xbf16>, vector<16x128xf32> -> vector<16x128xf32>
    %7 = arith.addf %3, %6 : vector<16x128xf32>
    %c0_6 = arith.constant 0 : index
    %c0_7 = arith.constant 0 : index
    %8 = vector.load %arg7[%c0_6, %c0_7] : memref<16x128xf32, #tpu.memory_space<vmem>>, vector<16x128xf32>
    tpu.vector_store %arg7[%c0_6, %c0_7], %7 {strides = array<i32>} : memref<16x128xf32, #tpu.memory_space<vmem>>, vector<16x128xf32>,
    %c0_i32_8 = arith.constant 0 : i32
    %9 = arith.cmpi eq, %arg2, %c0_i32_8 : i32
    %10 = arith.extui %9 : i1 to i32
    %c0_i32_9 = arith.constant 0 : i32
    %11 = arith.cmpi ne, %10, %c0_i32_9 : i32
    scf.if %11 {
      %c0_10 = arith.constant 0 : index
      %c0_11 = arith.constant 0 : index
      %12 = vector.load %arg7[%c0_10, %c0_11] : memref<16x128xf32, #tpu.memory_space<vmem>>, vector<16x128xf32>
      %c0_12 = arith.constant 0 : index
      %c0_13 = arith.constant 0 : index
      %13 = vector.load %arg5[%c0_12, %c0_13] : memref<2x128xf32, #tpu.memory_space<vmem>>, vector<1x128xf32>
      %14 = vector.broadcast %13 : vector<1x128xf32> to vector<16x128xf32>
      %15 = arith.mulf %12, %14 : vector<16x128xf32>
      %c1 = arith.constant 1 : index
      %c0_14 = arith.constant 0 : index
      %16 = vector.load %arg5[%c1, %c0_14] : memref<2x128xf32, #tpu.memory_space<vmem>>, vector<1x128xf32>
      %17 = vector.broadcast %16 : vector<1x128xf32> to vector<16x128xf32>
      %18 = arith.addf %15, %17 : vector<16x128xf32>
      %cst_15 = arith.constant 0.000000e+00 : f32
      %19 = vector.broadcast %cst_15 : f32 to vector<16x128xf32>
      %20 = arith.cmpf ogt, %18, %19 : vector<16x128xf32>
      %cst_16 = arith.constant 0.00999999977 : f32
      %21 = vector.broadcast %cst_16 : f32 to vector<16x128xf32>
      %22 = arith.mulf %21, %18 : vector<16x128xf32>
      %23 = arith.select %20, %18, %22 : vector<16x128xi1>, vector<16x128xf32>
      %24 = arith.truncf %23 : vector<16x128xf32> to vector<16x128xbf16>
      %c0_17 = arith.constant 0 : index
      %c0_18 = arith.constant 0 : index
      %25 = vector.load %arg6[%c0_17, %c0_18] : memref<16x128xbf16, #tpu.memory_space<vmem>>, vector<16x128xbf16>
      tpu.vector_store %arg6[%c0_17, %c0_18], %24 {strides = array<i32>} : memref<16x128xbf16, #tpu.memory_space<vmem>>, vector<16x128xbf16>,
    } else {
    }
    return
  }
  func.func @transform_0(%arg0: i32, %arg1: i32, %arg2: i32) -> (i32, i32) {
    %c0_i32 = arith.constant 0 : i32
    return %arg0, %arg2 : i32, i32
  }
  func.func @transform_1(%arg0: i32, %arg1: i32, %arg2: i32) -> (i32, i32) {
    %c0_i32 = arith.constant 0 : i32
    return %arg2, %arg1 : i32, i32
  }
  func.func @transform_2(%arg0: i32, %arg1: i32, %arg2: i32) -> (i32, i32) {
    %c0_i32 = arith.constant 0 : i32
    %c0_i32_0 = arith.constant 0 : i32
    return %c0_i32, %arg1 : i32, i32
  }
  func.func @transform_3(%arg0: i32, %arg1: i32, %arg2: i32) -> (i32, i32) {
    %c0_i32 = arith.constant 0 : i32
    return %arg0, %arg1 : i32, i32
  }
}

module attributes {stable_mosaic.version = 11 : i64} {
  func.func @_matmul_bn_act_kernel(%arg0: i32, %arg1: i32, %arg2: i32, %arg3: memref<64x32xbf16, #tpu.memory_space<vmem>>, %arg4: memref<32x128xbf16, #tpu.memory_space<vmem>>, %arg5: memref<2x128xf32, #tpu.memory_space<vmem>>, %arg6: memref<64x128xbf16, #tpu.memory_space<vmem>>, %arg7: memref<64x128xf32, #tpu.memory_space<vmem>>) attributes {dimension_semantics = [#tpu.dimension_semantics<parallel>, #tpu.dimension_semantics<parallel>, #tpu.dimension_semantics<arbitrary>], iteration_bounds = array<i64: 2, 1, 1>, scalar_prefetch = 0 : i64, scratch_operands = 1 : i64, tpu.core_type = #tpu.core_type<tc>, window_params = [{transform_indices = @transform_0, window_bounds = array<i64: 64, 32>}, {transform_indices = @transform_1, window_bounds = array<i64: 32, 128>}, {transform_indices = @transform_2, window_bounds = array<i64: 2, 128>}, {transform_indices = @transform_3, window_bounds = array<i64: 64, 128>}]} {
    %c0_i32 = arith.constant 0 : i32
    %0 = arith.cmpi eq, %arg2, %c0_i32 : i32
    %1 = arith.extui %0 : i1 to i32
    %c0_i32_0 = arith.constant 0 : i32
    %2 = arith.cmpi ne, %1, %c0_i32_0 : i32
    scf.if %2 {
      %cst_10 = arith.constant 0.000000e+00 : f32
      %12 = vector.broadcast %cst_10 : f32 to vector<64x128xf32>
      %c0_11 = arith.constant 0 : index
      %c0_12 = arith.constant 0 : index
      %13 = vector.load %arg7[%c0_11, %c0_12] : memref<64x128xf32, #tpu.memory_space<vmem>>, vector<64x128xf32>
      tpu.vector_store %arg7[%c0_11, %c0_12], %12 {strides = array<i32>} : memref<64x128xf32, #tpu.memory_space<vmem>>, vector<64x128xf32>,
    } else {
    }
    %c0 = arith.constant 0 : index
    %c0_1 = arith.constant 0 : index
    %3 = vector.load %arg7[%c0, %c0_1] : memref<64x128xf32, #tpu.memory_space<vmem>>, vector<64x128xf32>
    %c0_2 = arith.constant 0 : index
    %c0_3 = arith.constant 0 : index
    %4 = vector.load %arg3[%c0_2, %c0_3] : memref<64x32xbf16, #tpu.memory_space<vmem>>, vector<64x32xbf16>
    %c0_4 = arith.constant 0 : index
    %c0_5 = arith.constant 0 : index
    %5 = vector.load %arg4[%c0_4, %c0_5] : memref<32x128xbf16, #tpu.memory_space<vmem>>, vector<32x128xbf16>
    %cst = arith.constant dense<0.000000e+00> : vector<64x128xf32>
    %6 = tpu.matmul %4, %5, %cst {dimension_numbers = #tpu.dot_dimension_numbers<[1], [0], [0], [1], [0, 0, 1, 1], [], []>} : vector<64x32xbf16>, vector<32x128xbf16>, vector<64x128xf32> -> vector<64x128xf32>
    %7 = arith.addf %3, %6 : vector<64x128xf32>
    %c0_6 = arith.constant 0 : index
    %c0_7 = arith.constant 0 : index
    %8 = vector.load %arg7[%c0_6, %c0_7] : memref<64x128xf32, #tpu.memory_space<vmem>>, vector<64x128xf32>
    tpu.vector_store %arg7[%c0_6, %c0_7], %7 {strides = array<i32>} : memref<64x128xf32, #tpu.memory_space<vmem>>, vector<64x128xf32>,
    %c0_i32_8 = arith.constant 0 : i32
    %9 = arith.cmpi eq, %arg2, %c0_i32_8 : i32
    %10 = arith.extui %9 : i1 to i32
    %c0_i32_9 = arith.constant 0 : i32
    %11 = arith.cmpi ne, %10, %c0_i32_9 : i32
    scf.if %11 {
      %c0_10 = arith.constant 0 : index
      %c0_11 = arith.constant 0 : index
      %12 = vector.load %arg7[%c0_10, %c0_11] : memref<64x128xf32, #tpu.memory_space<vmem>>, vector<64x128xf32>
      %c0_12 = arith.constant 0 : index
      %c0_13 = arith.constant 0 : index
      %13 = vector.load %arg5[%c0_12, %c0_13] : memref<2x128xf32, #tpu.memory_space<vmem>>, vector<1x128xf32>
      %14 = vector.broadcast %13 : vector<1x128xf32> to vector<64x128xf32>
      %15 = arith.mulf %12, %14 : vector<64x128xf32>
      %c1 = arith.constant 1 : index
      %c0_14 = arith.constant 0 : index
      %16 = vector.load %arg5[%c1, %c0_14] : memref<2x128xf32, #tpu.memory_space<vmem>>, vector<1x128xf32>
      %17 = vector.broadcast %16 : vector<1x128xf32> to vector<64x128xf32>
      %18 = arith.addf %15, %17 : vector<64x128xf32>
      %cst_15 = arith.constant 0.000000e+00 : f32
      %19 = vector.broadcast %cst_15 : f32 to vector<64x128xf32>
      %20 = arith.cmpf ogt, %18, %19 : vector<64x128xf32>
      %cst_16 = arith.constant 0.00999999977 : f32
      %21 = vector.broadcast %cst_16 : f32 to vector<64x128xf32>
      %22 = arith.mulf %21, %18 : vector<64x128xf32>
      %23 = arith.select %20, %18, %22 : vector<64x128xi1>, vector<64x128xf32>
      %24 = arith.truncf %23 : vector<64x128xf32> to vector<64x128xbf16>
      %c0_17 = arith.constant 0 : index
      %c0_18 = arith.constant 0 : index
      %25 = vector.load %arg6[%c0_17, %c0_18] : memref<64x128xbf16, #tpu.memory_space<vmem>>, vector<64x128xbf16>
      tpu.vector_store %arg6[%c0_17, %c0_18], %24 {strides = array<i32>} : memref<64x128xbf16, #tpu.memory_space<vmem>>, vector<64x128xbf16>,
    } else {
    }
    return
  }
  func.func @transform_0(%arg0: i32, %arg1: i32, %arg2: i32) -> (i32, i32) {
    %c0_i32 = arith.constant 0 : i32
    return %arg0, %arg2 : i32, i32
  }
  func.func @transform_1(%arg0: i32, %arg1: i32, %arg2: i32) -> (i32, i32) {
    %c0_i32 = arith.constant 0 : i32
    return %arg2, %arg1 : i32, i32
  }
  func.func @transform_2(%arg0: i32, %arg1: i32, %arg2: i32) -> (i32, i32) {
    %c0_i32 = arith.constant 0 : i32
    %c0_i32_0 = arith.constant 0 : i32
    return %c0_i32, %arg1 : i32, i32
  }
  func.func @transform_3(%arg0: i32, %arg1: i32, %arg2: i32) -> (i32, i32) {
    %c0_i32 = arith.constant 0 : i32
    return %arg0, %arg1 : i32, i32
  }
}

module attributes {stable_mosaic.version = 11 : i64} {
  func.func @_matmul_bn_act_kernel(%arg0: i32, %arg1: i32, %arg2: i32, %arg3: memref<256x48xbf16, #tpu.memory_space<vmem>>, %arg4: memref<48x128xbf16, #tpu.memory_space<vmem>>, %arg5: memref<2x128xf32, #tpu.memory_space<vmem>>, %arg6: memref<256x128xf32, #tpu.memory_space<vmem>>, %arg7: memref<256x128xf32, #tpu.memory_space<vmem>>) attributes {dimension_semantics = [#tpu.dimension_semantics<parallel>, #tpu.dimension_semantics<parallel>, #tpu.dimension_semantics<arbitrary>], iteration_bounds = array<i64: 2, 1, 1>, scalar_prefetch = 0 : i64, scratch_operands = 1 : i64, tpu.core_type = #tpu.core_type<tc>, window_params = [{transform_indices = @transform_0, window_bounds = array<i64: 256, 48>}, {transform_indices = @transform_1, window_bounds = array<i64: 48, 128>}, {transform_indices = @transform_2, window_bounds = array<i64: 2, 128>}, {transform_indices = @transform_3, window_bounds = array<i64: 256, 128>}]} {
    %c0_i32 = arith.constant 0 : i32
    %0 = arith.cmpi eq, %arg2, %c0_i32 : i32
    %1 = arith.extui %0 : i1 to i32
    %c0_i32_0 = arith.constant 0 : i32
    %2 = arith.cmpi ne, %1, %c0_i32_0 : i32
    scf.if %2 {
      %cst_10 = arith.constant 0.000000e+00 : f32
      %12 = vector.broadcast %cst_10 : f32 to vector<256x128xf32>
      %c0_11 = arith.constant 0 : index
      %c0_12 = arith.constant 0 : index
      %13 = vector.load %arg7[%c0_11, %c0_12] : memref<256x128xf32, #tpu.memory_space<vmem>>, vector<256x128xf32>
      tpu.vector_store %arg7[%c0_11, %c0_12], %12 {strides = array<i32>} : memref<256x128xf32, #tpu.memory_space<vmem>>, vector<256x128xf32>,
    } else {
    }
    %c0 = arith.constant 0 : index
    %c0_1 = arith.constant 0 : index
    %3 = vector.load %arg7[%c0, %c0_1] : memref<256x128xf32, #tpu.memory_space<vmem>>, vector<256x128xf32>
    %c0_2 = arith.constant 0 : index
    %c0_3 = arith.constant 0 : index
    %4 = vector.load %arg3[%c0_2, %c0_3] : memref<256x48xbf16, #tpu.memory_space<vmem>>, vector<256x48xbf16>
    %c0_4 = arith.constant 0 : index
    %c0_5 = arith.constant 0 : index
    %5 = vector.load %arg4[%c0_4, %c0_5] : memref<48x128xbf16, #tpu.memory_space<vmem>>, vector<48x128xbf16>
    %cst = arith.constant dense<0.000000e+00> : vector<256x128xf32>
    %6 = tpu.matmul %4, %5, %cst {dimension_numbers = #tpu.dot_dimension_numbers<[1], [0], [0], [1], [0, 0, 1, 1], [], []>} : vector<256x48xbf16>, vector<48x128xbf16>, vector<256x128xf32> -> vector<256x128xf32>
    %7 = arith.addf %3, %6 : vector<256x128xf32>
    %c0_6 = arith.constant 0 : index
    %c0_7 = arith.constant 0 : index
    %8 = vector.load %arg7[%c0_6, %c0_7] : memref<256x128xf32, #tpu.memory_space<vmem>>, vector<256x128xf32>
    tpu.vector_store %arg7[%c0_6, %c0_7], %7 {strides = array<i32>} : memref<256x128xf32, #tpu.memory_space<vmem>>, vector<256x128xf32>,
    %c0_i32_8 = arith.constant 0 : i32
    %9 = arith.cmpi eq, %arg2, %c0_i32_8 : i32
    %10 = arith.extui %9 : i1 to i32
    %c0_i32_9 = arith.constant 0 : i32
    %11 = arith.cmpi ne, %10, %c0_i32_9 : i32
    scf.if %11 {
      %c0_10 = arith.constant 0 : index
      %c0_11 = arith.constant 0 : index
      %12 = vector.load %arg7[%c0_10, %c0_11] : memref<256x128xf32, #tpu.memory_space<vmem>>, vector<256x128xf32>
      %c0_12 = arith.constant 0 : index
      %c0_13 = arith.constant 0 : index
      %13 = vector.load %arg5[%c0_12, %c0_13] : memref<2x128xf32, #tpu.memory_space<vmem>>, vector<1x128xf32>
      %14 = vector.broadcast %13 : vector<1x128xf32> to vector<256x128xf32>
      %15 = arith.mulf %12, %14 : vector<256x128xf32>
      %c1 = arith.constant 1 : index
      %c0_14 = arith.constant 0 : index
      %16 = vector.load %arg5[%c1, %c0_14] : memref<2x128xf32, #tpu.memory_space<vmem>>, vector<1x128xf32>
      %17 = vector.broadcast %16 : vector<1x128xf32> to vector<256x128xf32>
      %18 = arith.addf %15, %17 : vector<256x128xf32>
      %19 = math.tanh %18 : vector<256x128xf32>
      %c0_15 = arith.constant 0 : index
      %c0_16 = arith.constant 0 : index
      %20 = vector.load %arg6[%c0_15, %c0_16] : memref<256x128xf32, #tpu.memory_space<vmem>>, vector<256x128xf32>
      tpu.vector_store %arg6[%c0_15, %c0_16], %19 {strides = array<i32>} : memref<256x128xf32, #tpu.memory_space<vmem>>, vector<256x128xf32>,
    } else {
    }
    return
  }
  func.func @transform_0(%arg0: i32, %arg1: i32, %arg2: i32) -> (i32, i32) {
    %c0_i32 = arith.constant 0 : i32
    return %arg0, %arg2 : i32, i32
  }
  func.func @transform_1(%arg0: i32, %arg1: i32, %arg2: i32) -> (i32, i32) {
    %c0_i32 = arith.constant 0 : i32
    return %arg2, %arg1 : i32, i32
  }
  func.func @transform_2(%arg0: i32, %arg1: i32, %arg2: i32) -> (i32, i32) {
    %c0_i32 = arith.constant 0 : i32
    %c0_i32_0 = arith.constant 0 : i32
    return %c0_i32, %arg1 : i32, i32
  }
  func.func @transform_3(%arg0: i32, %arg1: i32, %arg2: i32) -> (i32, i32) {
    %c0_i32 = arith.constant 0 : i32
    return %arg0, %arg1 : i32, i32
  }
}

module attributes {stable_mosaic.version = 11 : i64} {
  func.func @_matmul_bn_act_kernel(%arg0: i32, %arg1: i32, %arg2: i32, %arg3: memref<256x48xbf16, #tpu.memory_space<vmem>>, %arg4: memref<48x128xbf16, #tpu.memory_space<vmem>>, %arg5: memref<2x128xf32, #tpu.memory_space<vmem>>, %arg6: memref<256x128xbf16, #tpu.memory_space<vmem>>, %arg7: memref<256x128xf32, #tpu.memory_space<vmem>>) attributes {dimension_semantics = [#tpu.dimension_semantics<parallel>, #tpu.dimension_semantics<parallel>, #tpu.dimension_semantics<arbitrary>], iteration_bounds = array<i64: 2, 1, 1>, scalar_prefetch = 0 : i64, scratch_operands = 1 : i64, tpu.core_type = #tpu.core_type<tc>, window_params = [{transform_indices = @transform_0, window_bounds = array<i64: 256, 48>}, {transform_indices = @transform_1, window_bounds = array<i64: 48, 128>}, {transform_indices = @transform_2, window_bounds = array<i64: 2, 128>}, {transform_indices = @transform_3, window_bounds = array<i64: 256, 128>}]} {
    %c0_i32 = arith.constant 0 : i32
    %0 = arith.cmpi eq, %arg2, %c0_i32 : i32
    %1 = arith.extui %0 : i1 to i32
    %c0_i32_0 = arith.constant 0 : i32
    %2 = arith.cmpi ne, %1, %c0_i32_0 : i32
    scf.if %2 {
      %cst_10 = arith.constant 0.000000e+00 : f32
      %12 = vector.broadcast %cst_10 : f32 to vector<256x128xf32>
      %c0_11 = arith.constant 0 : index
      %c0_12 = arith.constant 0 : index
      %13 = vector.load %arg7[%c0_11, %c0_12] : memref<256x128xf32, #tpu.memory_space<vmem>>, vector<256x128xf32>
      tpu.vector_store %arg7[%c0_11, %c0_12], %12 {strides = array<i32>} : memref<256x128xf32, #tpu.memory_space<vmem>>, vector<256x128xf32>,
    } else {
    }
    %c0 = arith.constant 0 : index
    %c0_1 = arith.constant 0 : index
    %3 = vector.load %arg7[%c0, %c0_1] : memref<256x128xf32, #tpu.memory_space<vmem>>, vector<256x128xf32>
    %c0_2 = arith.constant 0 : index
    %c0_3 = arith.constant 0 : index
    %4 = vector.load %arg3[%c0_2, %c0_3] : memref<256x48xbf16, #tpu.memory_space<vmem>>, vector<256x48xbf16>
    %c0_4 = arith.constant 0 : index
    %c0_5 = arith.constant 0 : index
    %5 = vector.load %arg4[%c0_4, %c0_5] : memref<48x128xbf16, #tpu.memory_space<vmem>>, vector<48x128xbf16>
    %cst = arith.constant dense<0.000000e+00> : vector<256x128xf32>
    %6 = tpu.matmul %4, %5, %cst {dimension_numbers = #tpu.dot_dimension_numbers<[1], [0], [0], [1], [0, 0, 1, 1], [], []>} : vector<256x48xbf16>, vector<48x128xbf16>, vector<256x128xf32> -> vector<256x128xf32>
    %7 = arith.addf %3, %6 : vector<256x128xf32>
    %c0_6 = arith.constant 0 : index
    %c0_7 = arith.constant 0 : index
    %8 = vector.load %arg7[%c0_6, %c0_7] : memref<256x128xf32, #tpu.memory_space<vmem>>, vector<256x128xf32>
    tpu.vector_store %arg7[%c0_6, %c0_7], %7 {strides = array<i32>} : memref<256x128xf32, #tpu.memory_space<vmem>>, vector<256x128xf32>,
    %c0_i32_8 = arith.constant 0 : i32
    %9 = arith.cmpi eq, %arg2, %c0_i32_8 : i32
    %10 = arith.extui %9 : i1 to i32
    %c0_i32_9 = arith.constant 0 : i32
    %11 = arith.cmpi ne, %10, %c0_i32_9 : i32
    scf.if %11 {
      %c0_10 = arith.constant 0 : index
      %c0_11 = arith.constant 0 : index
      %12 = vector.load %arg7[%c0_10, %c0_11] : memref<256x128xf32, #tpu.memory_space<vmem>>, vector<256x128xf32>
      %c0_12 = arith.constant 0 : index
      %c0_13 = arith.constant 0 : index
      %13 = vector.load %arg5[%c0_12, %c0_13] : memref<2x128xf32, #tpu.memory_space<vmem>>, vector<1x128xf32>
      %14 = vector.broadcast %13 : vector<1x128xf32> to vector<256x128xf32>
      %15 = arith.mulf %12, %14 : vector<256x128xf32>
      %c1 = arith.constant 1 : index
      %c0_14 = arith.constant 0 : index
      %16 = vector.load %arg5[%c1, %c0_14] : memref<2x128xf32, #tpu.memory_space<vmem>>, vector<1x128xf32>
      %17 = vector.broadcast %16 : vector<1x128xf32> to vector<256x128xf32>
      %18 = arith.addf %15, %17 : vector<256x128xf32>
      %cst_15 = arith.constant 0.000000e+00 : f32
      %19 = vector.broadcast %cst_15 : f32 to vector<256x128xf32>
      %20 = arith.cmpf ogt, %18, %19 : vector<256x128xf32>
      %cst_16 = arith.constant 0.00999999977 : f32
      %21 = vector.broadcast %cst_16 : f32 to vector<256x128xf32>
      %22 = arith.mulf %21, %18 : vector<256x128xf32>
      %23 = arith.select %20, %18, %22 : vector<256x128xi1>, vector<256x128xf32>
      %24 = arith.truncf %23 : vector<256x128xf32> to vector<256x128xbf16>
      %c0_17 = arith.constant 0 : index
      %c0_18 = arith.constant 0 : index
      %25 = vector.load %arg6[%c0_17, %c0_18] : memref<256x128xbf16, #tpu.memory_space<vmem>>, vector<256x128xbf16>
      tpu.vector_store %arg6[%c0_17, %c0_18], %24 {strides = array<i32>} : memref<256x128xbf16, #tpu.memory_space<vmem>>, vector<256x128xbf16>,
    } else {
    }
    return
  }
  func.func @transform_0(%arg0: i32, %arg1: i32, %arg2: i32) -> (i32, i32) {
    %c0_i32 = arith.constant 0 : i32
    return %arg0, %arg2 : i32, i32
  }
  func.func @transform_1(%arg0: i32, %arg1: i32, %arg2: i32) -> (i32, i32) {
    %c0_i32 = arith.constant 0 : i32
    return %arg2, %arg1 : i32, i32
  }
  func.func @transform_2(%arg0: i32, %arg1: i32, %arg2: i32) -> (i32, i32) {
    %c0_i32 = arith.constant 0 : i32
    %c0_i32_0 = arith.constant 0 : i32
    return %c0_i32, %arg1 : i32, i32
  }
  func.func @transform_3(%arg0: i32, %arg1: i32, %arg2: i32) -> (i32, i32) {
    %c0_i32 = arith.constant 0 : i32
    return %arg0, %arg1 : i32, i32
  }
}

</mosaic_0001>

<llo_original>
// kernel: vae_forward.9
$region0: #{vae_forward.9}
  #allocation0 [shape = 'u32[]', space=smem, size = 0x4, offset = 0x4, fixed_abs, tag = 'smem constant byte address 0x4 - core index']
  #allocation1 [shape = 'u32[72,128]{1,0:T(1,128)}', space=vmem, size = 0x9000, scoped, tag = 'internal scratch']
  #allocation2 [shape = 'f32[16,128]{1,0:T(8,128)}', space=vmem, size = 0x2000, scoped, tag = 'scratch operand']
  %s0 = inlined_call_operand.vmem [shape: bf16[32,80], index: 0, kind: input, shape index: {}]
  %s1 = inlined_call_operand.vmem [shape: bf16[80,128], index: 1, kind: input, shape index: {}]
  %s2 = inlined_call_operand.vmem [shape: f32[2,128], index: 2, kind: input, shape index: {}]
  %s3 = inlined_call_operand.vmem [shape: bf16[32,128], index: 3, kind: output, shape index: {}]
  %s4 = sld [smem:[#allocation0]]
  $region53: #{vae_forward.9} parent=0
    _
  %s6 = ssub.s32 1, %s4
  %s7 = scalar_select 0, %s6, %s4
  loop: start=0, step=1, limit=4
  $region2: #{vae_forward.9} parent=0 // loop_pre_header
    _
  $region3: #{vae_forward.9} parent=0 // loop_header
    %s9 = sphi 0, %s13
    %p10 = scmp.ge.s32.totalorder %s9, 4
    %s16 = sphi 0, %s35
    %s17 = sphi 0, %s31
    %s18 = sphi 0, %s27
    %s19 = sphi 0, %s16
    %s20 = sphi 0, %s17
    %s21 = sphi 0, %s18
    %s22 = sphi 0, %s19
    %s23 = sphi 0, %s20
    %s24 = sphi 0, %s21
    %s40 = sphi 0, %s42
    %s43 = sphi 0, %s40
    %s44 = sphi 0, %s43
    %s60 = sphi 0, %s44
    %s68 = sphi 0, %s70
    %s71 = sphi 0, %s68
    %s72 = sphi 0, %s71
    %s88 = sphi 0, %s72
    %s94 = sphi 0, %s96
    %s97 = sphi 0, %s94
    %s98 = sphi 0, %s97
    %s114 = sphi 0, %s98
    %s122 = sphi 0, %s124
    %s125 = sphi 0, %s122
    %s126 = sphi 0, %s125
    %s142 = sphi 0, %s126
  $region4: #{vae_forward.9} parent=0 // loop_header_branch
    %12 = sbr.rel (%p10) target = $region8
  $region5: #{vae_forward.9} parent=0 // loop_body
    %s14 = ssub.s32 %s9, 1
    %s15 = ssub.s32 %s9, 2
    %s25 = sadd.s32 1, %s18
    %p26 = scmp.ge.s32.totalorder %s25, 1
    %s27 = scalar_select %p26, 0, %s25
    %s28 = sadd.s32 1, %s17
    %s29 = scalar_select %p26, %s28, %s17
    %p30 = scmp.ge.s32.totalorder %s29, 1
    %s31 = scalar_select %p30, 0, %s29
    %s32 = sadd.s32 1, %s16
    %s33 = scalar_select %p30, %s32, %s16
    %p34 = scmp.ge.s32.totalorder %s33, 2
    %s35 = scalar_select %p34, 0, %s33
    %s36 = ssub.s32 %s16, %s35
    %s37 = ssub.s32 %s18, %s27
    %s38 = sor.u32 %s36, %s37
    %p39 = scmp.eq.s32.totalorder %s38, 0
    %s41 = sadd.s32 %s40, 1
    %s42 = scalar_select %p39, %s40, %s41
    %p45 = pneg %p39
    %p46 = scmp.eq.s32.totalorder %s9, 1
    %p47 = por %p45, %p46
    %p48 = scmp.ne.s32.totalorder %s40, %s43
    %p49 = scmp.eq.s32.totalorder %s9, 0
    %p50 = por %p48, %p49
    %p51 = scmp.ne.s32.totalorder %s40, %s43
    %p52 = scmp.eq.s32.totalorder %s14, 1
    %p53 = por %p51, %p52
    %p54 = scmp.ne.s32.totalorder %s43, %s44
    %p55 = scmp.eq.s32.totalorder %s14, 0
    %p56 = por %p54, %p55
    %p57 = scmp.ne.s32.totalorder %s43, %s44
    %p58 = scmp.eq.s32.totalorder %s15, 1
    %p59 = por %p57, %p58
    %p61 = scmp.ne.s32.totalorder %s44, %s60
    %p62 = scmp.eq.s32.totalorder %s15, 0
    %p63 = por %p61, %p62
    %s64 = ssub.s32 %s18, %s27
    %s65 = ssub.s32 %s17, %s31
    %s66 = sor.u32 %s64, %s65
    %p67 = scmp.eq.s32.totalorder %s66, 0
    %s69 = sadd.s32 %s68, 1
    %s70 = scalar_select %p67, %s68, %s69
    %p73 = pneg %p67
    %p74 = scmp.eq.s32.totalorder %s9, 1
    %p75 = por %p73, %p74
    %p76 = scmp.ne.s32.totalorder %s68, %s71
    %p77 = scmp.eq.s32.totalorder %s9, 0
    %p78 = por %p76, %p77
    %p79 = scmp.ne.s32.totalorder %s68, %s71
    %p80 = scmp.eq.s32.totalorder %s14, 1
    %p81 = por %p79, %p80
    %p82 = scmp.ne.s32.totalorder %s71, %s72
    %p83 = scmp.eq.s32.totalorder %s14, 0
    %p84 = por %p82, %p83
    %p85 = scmp.ne.s32.totalorder %s71, %s72
    %p86 = scmp.eq.s32.totalorder %s15, 1
    %p87 = por %p85, %p86
    %p89 = scmp.ne.s32.totalorder %s72, %s88
    %p90 = scmp.eq.s32.totalorder %s15, 0
    %p91 = por %p89, %p90
    %s92 = ssub.s32 %s17, %s31
    %p93 = scmp.eq.s32.totalorder %s92, 0
    %s95 = sadd.s32 %s94, 1
    %s96 = scalar_select %p93, %s94, %s95
    %p99 = pneg %p93
    %p100 = scmp.eq.s32.totalorder %s9, 1
    %p101 = por %p99, %p100
    %p102 = scmp.ne.s32.totalorder %s94, %s97
    %p103 = scmp.eq.s32.totalorder %s9, 0
    %p104 = por %p102, %p103
    %p105 = scmp.ne.s32.totalorder %s94, %s97
    %p106 = scmp.eq.s32.totalorder %s14, 1
    %p107 = por %p105, %p106
    %p108 = scmp.ne.s32.totalorder %s97, %s98
    %p109 = scmp.eq.s32.totalorder %s14, 0
    %p110 = por %p108, %p109
    %p111 = scmp.ne.s32.totalorder %s97, %s98
    %p112 = scmp.eq.s32.totalorder %s15, 1
    %p113 = por %p111, %p112
    %p115 = scmp.ne.s32.totalorder %s98, %s114
    %p116 = scmp.eq.s32.totalorder %s15, 0
    %p117 = por %p115, %p116
    %s118 = ssub.s32 %s16, %s35
    %s119 = ssub.s32 %s17, %s31
    %s120 = sor.u32 %s118, %s119
    %p121 = scmp.eq.s32.totalorder %s120, 0
    %s123 = sadd.s32 %s122, 1
    %s124 = scalar_select %p121, %s122, %s123
    %p127 = pneg %p121
    %p128 = scmp.eq.s32.totalorder %s9, 1
    %p129 = por %p127, %p128
    %p130 = scmp.ne.s32.totalorder %s122, %s125
    %p131 = scmp.eq.s32.totalorder %s9, 0
    %p132 = por %p130, %p131
    %p133 = scmp.ne.s32.totalorder %s122, %s125
    %p134 = scmp.eq.s32.totalorder %s14, 1
    %p135 = por %p133, %p134
    %p136 = scmp.ne.s32.totalorder %s125, %s126
    %p137 = scmp.eq.s32.totalorder %s14, 0
    %p138 = por %p136, %p137
    %p139 = scmp.ne.s32.totalorder %s125, %s126
    %p140 = scmp.eq.s32.totalorder %s15, 1
    %p141 = por %p139, %p140
    %p143 = scmp.ne.s32.totalorder %s126, %s142
    %p144 = scmp.eq.s32.totalorder %s15, 0
    %p145 = por %p143, %p144
    %p146 = scmp.le.s32.totalorder 1, %s9
    %p147 = scmp.lt.s32.totalorder %s9, 3
    %p148 = pnand %p146, %p147
    %p149 = pneg %p148
    // Predicated region
    $region9: #{vae_forward.9} parent=5 // pred_check
      _
    $region10: #{vae_forward.9} parent=5 // pred_check_branch
      %151 = sbr.rel (%p148) target = $region12
    $region11: #{vae_forward.9} parent=5 // pred_region
      %s152 = ssub.s32 %s9, 1
      // Predicated region
      $region13: #{vae_forward.9} parent=11 // pred_check
        %p153 = pneg %p84
      $region14: #{vae_forward.9} parent=11 // pred_check_branch
        %155 = sbr.rel (%p153) target = $region16
      $region15: #{vae_forward.9} parent=11 // pred_region
        %s156 = smul.u32 10, %s21
        %p157 = scmp.lt.s32.totalorder %s156, 9
        %s158 = scalar_select %p157, %s156, 9
        %p159 = scmp.lt.s32.totalorder %s20, 0
        %s160 = scalar_select %p159, %s20, 0
        %s161 = sadd.s32 %s160, %s158
        %s162 = smul.addr %s161, 4
        %s163 = scalar_lea.vmem %s1, %s162
        %s164 = smul.u32 10, %s21
      $region16: #{vae_forward.9} parent=11 // pred_fallthru
        _
      // Predicated region
      $region17: #{vae_forward.9} parent=11 // pred_check
        %p165 = pneg %p110
      $region18: #{vae_forward.9} parent=11 // pred_check_branch
        %167 = sbr.rel (%p165) target = $region20
      $region19: #{vae_forward.9} parent=11 // pred_region
        %p168 = scmp.lt.s32.totalorder %s20, 0
        %s169 = scalar_select %p168, %s20, 0
        %s170 = smul.addr %s169, 2
        %s171 = scalar_lea.vmem %s2, %s170
      $region20: #{vae_forward.9} parent=11 // pred_fallthru
        _
    $region12: #{vae_forward.9} parent=5 // pred_fallthru
      _
    %p172 = scmp.lt.s32.totalorder %s9, 2
    // Predicated region
    $region21: #{vae_forward.9} parent=5 // pred_check
      %p173 = pneg %p172
    $region22: #{vae_forward.9} parent=5 // pred_check_branch
      %175 = sbr.rel (%p173) target = $region24
    $region23: #{vae_forward.9} parent=5 // pred_region
      // Predicated region
      $region25: #{vae_forward.9} parent=23 // pred_check
        %p176 = pneg %p50
      $region26: #{vae_forward.9} parent=23 // pred_check_branch
        %178 = sbr.rel (%p176) target = $region28
      $region27: #{vae_forward.9} parent=23 // pred_region
        %s179 = smul.u32 2, %s16
        %p180 = scmp.lt.s32.totalorder %s179, 3
        %s181 = scalar_select %p180, %s179, 3
        %p182 = scmp.lt.s32.totalorder %s18, 0
        %s183 = scalar_select %p182, %s18, 0
        %s184 = sadd.s32 %s183, %s181
        %s185 = smul.addr %s184, 4
        %s186 = scalar_lea.vmem %s0, %s185
        %s187 = smul.u32 2, %s16
      $region28: #{vae_forward.9} parent=23 // pred_fallthru
        _
    $region24: #{vae_forward.9} parent=5 // pred_fallthru
      _
    %p188 = scmp.le.s32.totalorder 1, %s9
    %p189 = scmp.lt.s32.totalorder %s9, 3
    %p190 = pnand %p188, %p189
    %p191 = pneg %p190
    // Predicated region
    $region29: #{vae_forward.9} parent=5 // pred_check
      _
    $region30: #{vae_forward.9} parent=5 // pred_check_branch
      %193 = sbr.rel (%p190) target = $region32
    $region31: #{vae_forward.9} parent=5 // pred_region
      %s194 = ssub.s32 %s9, 1
      %s195 = smul.u32 2, %s19
      %p196 = scmp.lt.s32.totalorder %s195, 3
      %s197 = scalar_select %p196, %s195, 3
      %p198 = scmp.lt.s32.totalorder %s21, 0
      %s199 = scalar_select %p198, %s21, 0
      %s200 = sadd.s32 %s199, %s197
      %s201 = smul.addr %s200, 4
      %s202 = scalar_lea.vmem %s0, %s201
      %p203 = pneg %p56
      %p204 = pneg %p53
      %s205 = smul.u32 10, %s21
      %p206 = scmp.lt.s32.totalorder %s205, 9
      %s207 = scalar_select %p206, %s205, 9
      %p208 = scmp.lt.s32.totalorder %s20, 0
      %s209 = scalar_select %p208, %s20, 0
      %s210 = sadd.s32 %s209, %s207
      %s211 = smul.addr %s210, 4
      %s212 = scalar_lea.vmem %s1, %s211
      %p213 = pneg %p84
      %p214 = pneg %p81
      %p215 = scmp.lt.s32.totalorder %s20, 0
      %s216 = scalar_select %p215, %s20, 0
      %s217 = smul.addr %s216, 2
      %s218 = scalar_lea.vmem %s2, %s217
      %p219 = pneg %p110
      %p220 = pneg %p107
      %p221 = pneg %p138
      %p222 = pneg %p135
      %s223 = smul.u32 2, %s19
      %p224 = scmp.lt.s32.totalorder %s223, 3
      %s225 = scalar_select %p224, %s223, 3
      %p226 = scmp.lt.s32.totalorder %s20, 0
      %s227 = scalar_select %p226, %s20, 0
      %s228 = sadd.s32 %s227, %s225
      %s229 = smul.addr %s228, 4
      %s230 = scalar_lea.vmem %s3, %s229
      %s231 = smul.u32 2, %s19
      %p232 = scmp.lt.s32.totalorder %s231, 3
      %s233 = scalar_select %p232, %s231, 3
      %p234 = scmp.lt.s32.totalorder %s21, 0
      %s235 = scalar_select %p234, %s21, 0
      %s236 = sadd.s32 %s235, %s233
      %s237 = smul.addr %s236, 4
      %s238 = scalar_lea.vmem %s0, %s237
      %s239 = smul.u32 2, %s19
      %s240 = smul.u32 10, %s21
      %p241 = scmp.lt.s32.totalorder %s240, 9
      %s242 = scalar_select %p241, %s240, 9
      %p243 = scmp.lt.s32.totalorder %s20, 0
      %s244 = scalar_select %p243, %s20, 0
      %s245 = sadd.s32 %s244, %s242
      %s246 = smul.addr %s245, 4
      %s247 = scalar_lea.vmem %s1, %s246
      %s248 = smul.u32 10, %s21
      %p249 = scmp.lt.s32.totalorder %s20, 0
      %s250 = scalar_select %p249, %s20, 0
      %s251 = smul.addr %s250, 2
      %s252 = scalar_lea.vmem %s2, %s251
      %s253 = smul.u32 2, %s19
      %p254 = scmp.lt.s32.totalorder %s253, 3
      %s255 = scalar_select %p254, %s253, 3
      %p256 = scmp.lt.s32.totalorder %s20, 0
      %s257 = scalar_select %p256, %s20, 0
      %s258 = sadd.s32 %s257, %s255
      %s259 = smul.addr %s258, 4
      %s260 = scalar_lea.vmem %s3, %s259
      %s261 = smul.u32 2, %s19
      %p263 = scmp.eq.s32.totalorder %s21, 0
      // Predicated region
      $region33: #{vae_forward.9} parent=31 // pred_check
        %p264 = pneg %p263
      $region34: #{vae_forward.9} parent=31 // pred_check_branch
        %266 = sbr.rel (%p264) target = $region36
      $region35: #{vae_forward.9} parent=31 // pred_region
        %267 = vst [vmem:[#allocation2] sm:$0xff] 0.0
        %268 = vst [vmem:[#allocation2 + $0x8] sm:$0xff] 0.0
      $region36: #{vae_forward.9} parent=31 // pred_fallthru
        _
      %v269 = vld [vmem:[#allocation2] sm:$0xff]
      %v270 = vld [vmem:[#allocation2 + $0x8] sm:$0xff]
      %v271 = vld [vmem:[%s238] sm:$0xf]
      %v272 = vld [vmem:[%s238 + $0x4] sm:$0xf]
      %v273 = vld [vmem:[%s247] sm:$0xf]
      %v274 = vld [vmem:[%s247 + $0x4] sm:$0xf]
      %v275 = vld [vmem:[%s247 + $0x8] sm:$0xf]
      %v276 = vld [vmem:[%s247 + $0xc] sm:$0xf]
      %v277 = vld [vmem:[%s247 + $0x10] sm:$0xf]
      %v278 = vld [vmem:[%s247 + $0x14] sm:$0xf]
      %v279 = vld [vmem:[%s247 + $0x18] sm:$0xf]
      %v280 = vld [vmem:[%s247 + $0x1c] sm:$0xf]
      %v281 = vld [vmem:[%s247 + $0x20] sm:$0xf]
      %v282 = vld [vmem:[%s247 + $0x24] sm:$0xf]
      %v285 = vunpack.c.l.b16 %v271
      %v286 = vunpack.c.l.b16 %v272
      %v287 = vpack.c.b16 %v286, %v285
      %v298 = vunpack.c.l.b16 %v273
      %v299 = vunpack.c.l.b16 %v274
      %v300 = vunpack.c.l.b16 %v275
      %v301 = vunpack.c.l.b16 %v276
      %v302 = vunpack.c.l.b16 %v277
      %v303 = vunpack.c.l.b16 %v278
      %v304 = vunpack.c.l.b16 %v279
      %v305 = vunpack.c.l.b16 %v280
      %v306 = vunpack.c.l.b16 %v281
      %v307 = vunpack.c.l.b16 %v282
      %v308 = vpack.c.b16 %v299, %v298
      %v309 = vpack.c.b16 %v301, %v300
      %v310 = vpack.c.b16 %v303, %v302
      %v311 = vpack.c.b16 %v305, %v304
      %v312 = vpack.c.b16 %v307, %v306
      %vm318 = vcmask 654336
      %v320 = vsel %vm318, %v287, 0
      %322 = vmatpush.bf16.msra.mxu0 0
      %323 = vmatpush.bf16.msra.mxu0 0
      %324 = vmatpush.bf16.msra.mxu0 0
      %325 = vmatpush.bf16.msra.mxu0 %v312
      %326 = vmatpush.bf16.msra.mxu0 %v311
      %327 = vmatpush.bf16.msra.mxu0 %v310
      %328 = vmatpush.bf16.msra.mxu0 %v309
      %329 = vmatpush.bf16.msra.mxu0 %v308
      %330 = vmatmul.bf16.gmra.mxu0 %v320
      %v331 = vpop.f32.mrf.mxu0
      %v332 = vadd.f32 0.0, %v331
      %v333 = vpop.f32.mrf.mxu0
      %v334 = vadd.f32 0.0, %v333
      %335 = vdwg.mxu0
      %v336 = vadd.f32 %v269, %v332
      %v337 = vadd.f32 %v270, %v334
      %338 = vst [vmem:[#allocation2] sm:$0xff] %v336
      %339 = vst [vmem:[#allocation2 + $0x8] sm:$0xff] %v337
      // Predicated region
      $region37: #{vae_forward.9} parent=31 // pred_check
        %p340 = pneg %p263
      $region38: #{vae_forward.9} parent=31 // pred_check_branch
        %342 = sbr.rel (%p340) target = $region40
      $region39: #{vae_forward.9} parent=31 // pred_region
        %v343 = vld [vmem:[#allocation2] sm:$0xff]
        %v344 = vld [vmem:[#allocation2 + $0x8] sm:$0xff]
        %v345 = vld [vmem:[%s252] sm:$0x1]
        %v346 = vperm.slane %v345, 0
        %v347 = vmul.f32 %v343, %v346
        %v348 = vmul.f32 %v344, %v346
        %v349 = vld [vmem:[%s252 + $0x1] sm:$0x1]
        %v350 = vperm.slane %v349, 0
        %v351 = vadd.f32 %v347, %v350
        %v352 = vadd.f32 %v348, %v350
        %vm353 = vcmp.gt.f32.partialorder %v351, 0.0
        %vm354 = vcmp.gt.f32.partialorder %v352, 0.0
        %v355 = vmul.f32 %v351, 0.01
        %v356 = vmul.f32 %v352, 0.01
        %v357 = vsel %vm353, %v351, %v355
        %v358 = vsel %vm354, %v352, %v356
        %v359 = vpack.c.bf16 %v357, %v357
        %v360 = vpack.c.bf16 %v358, %v358
        %361 = vst [vmem:[%s260] sm:$0xf] %v359
        %362 = vst [vmem:[%s260 + $0x4] sm:$0xf] %v360
      $region40: #{vae_forward.9} parent=31 // pred_fallthru
        _
      %s363 = smul.u32 2, %s19
      %p364 = scmp.lt.s32.totalorder %s363, 3
      %s365 = scalar_select %p364, %s363, 3
      %p366 = scmp.lt.s32.totalorder %s20, 0
      %s367 = scalar_select %p366, %s20, 0
      %s368 = sadd.s32 %s367, %s365
      %s369 = smul.addr %s368, 4
      %s370 = scalar_lea.vmem %s3, %s369
      // Predicated region
      $region41: #{vae_forward.9} parent=31 // pred_check
        %p371 = pneg %p135
      $region42: #{vae_forward.9} parent=31 // pred_check_branch
        %373 = sbr.rel (%p371) target = $region44
      $region43: #{vae_forward.9} parent=31 // pred_region
        %s374 = smul.u32 2, %s19
      $region44: #{vae_forward.9} parent=31 // pred_fallthru
        _
    $region32: #{vae_forward.9} parent=5 // pred_fallthru
      _
    %p375 = scmp.le.s32.totalorder 2, %s9
    // Predicated region
    $region45: #{vae_forward.9} parent=5 // pred_check
      %p376 = pneg %p375
    $region46: #{vae_forward.9} parent=5 // pred_check_branch
      %378 = sbr.rel (%p376) target = $region48
    $region47: #{vae_forward.9} parent=5 // pred_region
      %s379 = ssub.s32 %s9, 2
      // Predicated region
      $region49: #{vae_forward.9} parent=47 // pred_check
        %p380 = pneg %p141
      $region50: #{vae_forward.9} parent=47 // pred_check_branch
        %382 = sbr.rel (%p380) target = $region52
      $region51: #{vae_forward.9} parent=47 // pred_region
        %s383 = smul.u32 2, %s22
        %p384 = scmp.lt.s32.totalorder %s383, 3
        %s385 = scalar_select %p384, %s383, 3
        %p386 = scmp.lt.s32.totalorder %s23, 0
        %s387 = scalar_select %p386, %s23, 0
        %s388 = sadd.s32 %s387, %s385
        %s389 = smul.addr %s388, 4
        %s390 = scalar_lea.vmem %s3, %s389
      $region52: #{vae_forward.9} parent=47 // pred_fallthru
        _
    $region48: #{vae_forward.9} parent=5 // pred_fallthru
      _
  $region6: #{vae_forward.9} parent=0 // loop_footer
    %s13 = sadd.s32 1, %s9
  $region7: #{vae_forward.9} parent=0 // loop_footer_branch
    %8 = sbr.rel target = $region3
  $region8: #{vae_forward.9} parent=0 // loop_exit
    _

// kernel: vae_forward.8
$region0: #{vae_forward.8}
  #allocation0 [shape = 'u32[]', space=smem, size = 0x4, offset = 0x4, fixed_abs, tag = 'smem constant byte address 0x4 - core index']
  #allocation1 [shape = 'u32[72,128]{1,0:T(1,128)}', space=vmem, size = 0x9000, scoped, tag = 'internal scratch']
  #allocation2 [shape = 'f32[64,128]{1,0:T(8,128)}', space=vmem, size = 0x8000, scoped, tag = 'scratch operand']
  %s0 = inlined_call_operand.vmem [shape: bf16[128,48], index: 0, kind: input, shape index: {}]
  %s1 = inlined_call_operand.vmem [shape: bf16[48,128], index: 1, kind: input, shape index: {}]
  %s2 = inlined_call_operand.vmem [shape: f32[2,128], index: 2, kind: input, shape index: {}]
  %s3 = inlined_call_operand.vmem [shape: bf16[128,128], index: 3, kind: output, shape index: {}]
  %s4 = sld [smem:[#allocation0]]
  $region53: #{vae_forward.8} parent=0
    _
  %s6 = ssub.s32 1, %s4
  %s7 = scalar_select 0, %s6, %s4
  loop: start=0, step=1, limit=4
  $region2: #{vae_forward.8} parent=0 // loop_pre_header
    _
  $region3: #{vae_forward.8} parent=0 // loop_header
    %s9 = sphi 0, %s13
    %p10 = scmp.ge.s32.totalorder %s9, 4
    %s16 = sphi 0, %s35
    %s17 = sphi 0, %s31
    %s18 = sphi 0, %s27
    %s19 = sphi 0, %s16
    %s20 = sphi 0, %s17
    %s21 = sphi 0, %s18
    %s22 = sphi 0, %s19
    %s23 = sphi 0, %s20
    %s24 = sphi 0, %s21
    %s40 = sphi 0, %s42
    %s43 = sphi 0, %s40
    %s44 = sphi 0, %s43
    %s60 = sphi 0, %s44
    %s68 = sphi 0, %s70
    %s71 = sphi 0, %s68
    %s72 = sphi 0, %s71
    %s88 = sphi 0, %s72
    %s94 = sphi 0, %s96
    %s97 = sphi 0, %s94
    %s98 = sphi 0, %s97
    %s114 = sphi 0, %s98
    %s122 = sphi 0, %s124
    %s125 = sphi 0, %s122
    %s126 = sphi 0, %s125
    %s142 = sphi 0, %s126
  $region4: #{vae_forward.8} parent=0 // loop_header_branch
    %12 = sbr.rel (%p10) target = $region8
  $region5: #{vae_forward.8} parent=0 // loop_body
    %s14 = ssub.s32 %s9, 1
    %s15 = ssub.s32 %s9, 2
    %s25 = sadd.s32 1, %s18
    %p26 = scmp.ge.s32.totalorder %s25, 1
    %s27 = scalar_select %p26, 0, %s25
    %s28 = sadd.s32 1, %s17
    %s29 = scalar_select %p26, %s28, %s17
    %p30 = scmp.ge.s32.totalorder %s29, 1
    %s31 = scalar_select %p30, 0, %s29
    %s32 = sadd.s32 1, %s16
    %s33 = scalar_select %p30, %s32, %s16
    %p34 = scmp.ge.s32.totalorder %s33, 2
    %s35 = scalar_select %p34, 0, %s33
    %s36 = ssub.s32 %s16, %s35
    %s37 = ssub.s32 %s18, %s27
    %s38 = sor.u32 %s36, %s37
    %p39 = scmp.eq.s32.totalorder %s38, 0
    %s41 = sadd.s32 %s40, 1
    %s42 = scalar_select %p39, %s40, %s41
    %p45 = pneg %p39
    %p46 = scmp.eq.s32.totalorder %s9, 1
    %p47 = por %p45, %p46
    %p48 = scmp.ne.s32.totalorder %s40, %s43
    %p49 = scmp.eq.s32.totalorder %s9, 0
    %p50 = por %p48, %p49
    %p51 = scmp.ne.s32.totalorder %s40, %s43
    %p52 = scmp.eq.s32.totalorder %s14, 1
    %p53 = por %p51, %p52
    %p54 = scmp.ne.s32.totalorder %s43, %s44
    %p55 = scmp.eq.s32.totalorder %s14, 0
    %p56 = por %p54, %p55
    %p57 = scmp.ne.s32.totalorder %s43, %s44
    %p58 = scmp.eq.s32.totalorder %s15, 1
    %p59 = por %p57, %p58
    %p61 = scmp.ne.s32.totalorder %s44, %s60
    %p62 = scmp.eq.s32.totalorder %s15, 0
    %p63 = por %p61, %p62
    %s64 = ssub.s32 %s18, %s27
    %s65 = ssub.s32 %s17, %s31
    %s66 = sor.u32 %s64, %s65
    %p67 = scmp.eq.s32.totalorder %s66, 0
    %s69 = sadd.s32 %s68, 1
    %s70 = scalar_select %p67, %s68, %s69
    %p73 = pneg %p67
    %p74 = scmp.eq.s32.totalorder %s9, 1
    %p75 = por %p73, %p74
    %p76 = scmp.ne.s32.totalorder %s68, %s71
    %p77 = scmp.eq.s32.totalorder %s9, 0
    %p78 = por %p76, %p77
    %p79 = scmp.ne.s32.totalorder %s68, %s71
    %p80 = scmp.eq.s32.totalorder %s14, 1
    %p81 = por %p79, %p80
    %p82 = scmp.ne.s32.totalorder %s71, %s72
    %p83 = scmp.eq.s32.totalorder %s14, 0
    %p84 = por %p82, %p83
    %p85 = scmp.ne.s32.totalorder %s71, %s72
    %p86 = scmp.eq.s32.totalorder %s15, 1
    %p87 = por %p85, %p86
    %p89 = scmp.ne.s32.totalorder %s72, %s88
    %p90 = scmp.eq.s32.totalorder %s15, 0
    %p91 = por %p89, %p90
    %s92 = ssub.s32 %s17, %s31
    %p93 = scmp.eq.s32.totalorder %s92, 0
    %s95 = sadd.s32 %s94, 1
    %s96 = scalar_select %p93, %s94, %s95
    %p99 = pneg %p93
    %p100 = scmp.eq.s32.totalorder %s9, 1
    %p101 = por %p99, %p100
    %p102 = scmp.ne.s32.totalorder %s94, %s97
    %p103 = scmp.eq.s32.totalorder %s9, 0
    %p104 = por %p102, %p103
    %p105 = scmp.ne.s32.totalorder %s94, %s97
    %p106 = scmp.eq.s32.totalorder %s14, 1
    %p107 = por %p105, %p106
    %p108 = scmp.ne.s32.totalorder %s97, %s98
    %p109 = scmp.eq.s32.totalorder %s14, 0
    %p110 = por %p108, %p109
    %p111 = scmp.ne.s32.totalorder %s97, %s98
    %p112 = scmp.eq.s32.totalorder %s15, 1
    %p113 = por %p111, %p112
    %p115 = scmp.ne.s32.totalorder %s98, %s114
    %p116 = scmp.eq.s32.totalorder %s15, 0
    %p117 = por %p115, %p116
    %s118 = ssub.s32 %s16, %s35
    %s119 = ssub.s32 %s17, %s31
    %s120 = sor.u32 %s118, %s119
    %p121 = scmp.eq.s32.totalorder %s120, 0
    %s123 = sadd.s32 %s122, 1
    %s124 = scalar_select %p121, %s122, %s123
    %p127 = pneg %p121
    %p128 = scmp.eq.s32.totalorder %s9, 1
    %p129 = por %p127, %p128
    %p130 = scmp.ne.s32.totalorder %s122, %s125
    %p131 = scmp.eq.s32.totalorder %s9, 0
    %p132 = por %p130, %p131
    %p133 = scmp.ne.s32.totalorder %s122, %s125
    %p134 = scmp.eq.s32.totalorder %s14, 1
    %p135 = por %p133, %p134
    %p136 = scmp.ne.s32.totalorder %s125, %s126
    %p137 = scmp.eq.s32.totalorder %s14, 0
    %p138 = por %p136, %p137
    %p139 = scmp.ne.s32.totalorder %s125, %s126
    %p140 = scmp.eq.s32.totalorder %s15, 1
    %p141 = por %p139, %p140
    %p143 = scmp.ne.s32.totalorder %s126, %s142
    %p144 = scmp.eq.s32.totalorder %s15, 0
    %p145 = por %p143, %p144
    %p146 = scmp.le.s32.totalorder 1, %s9
    %p147 = scmp.lt.s32.totalorder %s9, 3
    %p148 = pnand %p146, %p147
    %p149 = pneg %p148
    // Predicated region
    $region9: #{vae_forward.8} parent=5 // pred_check
      _
    $region10: #{vae_forward.8} parent=5 // pred_check_branch
      %151 = sbr.rel (%p148) target = $region12
    $region11: #{vae_forward.8} parent=5 // pred_region
      %s152 = ssub.s32 %s9, 1
      // Predicated region
      $region13: #{vae_forward.8} parent=11 // pred_check
        %p153 = pneg %p84
      $region14: #{vae_forward.8} parent=11 // pred_check_branch
        %155 = sbr.rel (%p153) target = $region16
      $region15: #{vae_forward.8} parent=11 // pred_region
        %s156 = smul.u32 6, %s21
        %p157 = scmp.lt.s32.totalorder %s156, 5
        %s158 = scalar_select %p157, %s156, 5
        %p159 = scmp.lt.s32.totalorder %s20, 0
        %s160 = scalar_select %p159, %s20, 0
        %s161 = sadd.s32 %s160, %s158
        %s162 = smul.addr %s161, 4
        %s163 = scalar_lea.vmem %s1, %s162
        %s164 = smul.u32 6, %s21
      $region16: #{vae_forward.8} parent=11 // pred_fallthru
        _
      // Predicated region
      $region17: #{vae_forward.8} parent=11 // pred_check
        %p165 = pneg %p110
      $region18: #{vae_forward.8} parent=11 // pred_check_branch
        %167 = sbr.rel (%p165) target = $region20
      $region19: #{vae_forward.8} parent=11 // pred_region
        %p168 = scmp.lt.s32.totalorder %s20, 0
        %s169 = scalar_select %p168, %s20, 0
        %s170 = smul.addr %s169, 2
        %s171 = scalar_lea.vmem %s2, %s170
      $region20: #{vae_forward.8} parent=11 // pred_fallthru
        _
    $region12: #{vae_forward.8} parent=5 // pred_fallthru
      _
    %p172 = scmp.lt.s32.totalorder %s9, 2
    // Predicated region
    $region21: #{vae_forward.8} parent=5 // pred_check
      %p173 = pneg %p172
    $region22: #{vae_forward.8} parent=5 // pred_check_branch
      %175 = sbr.rel (%p173) target = $region24
    $region23: #{vae_forward.8} parent=5 // pred_region
      // Predicated region
      $region25: #{vae_forward.8} parent=23 // pred_check
        %p176 = pneg %p50
      $region26: #{vae_forward.8} parent=23 // pred_check_branch
        %178 = sbr.rel (%p176) target = $region28
      $region27: #{vae_forward.8} parent=23 // pred_region
        %s179 = smul.u32 8, %s16
        %p180 = scmp.lt.s32.totalorder %s179, 15
        %s181 = scalar_select %p180, %s179, 15
        %p182 = scmp.lt.s32.totalorder %s18, 0
        %s183 = scalar_select %p182, %s18, 0
        %s184 = sadd.s32 %s183, %s181
        %s185 = smul.addr %s184, 4
        %s186 = scalar_lea.vmem %s0, %s185
        %s187 = smul.u32 8, %s16
      $region28: #{vae_forward.8} parent=23 // pred_fallthru
        _
    $region24: #{vae_forward.8} parent=5 // pred_fallthru
      _
    %p188 = scmp.le.s32.totalorder 1, %s9
    %p189 = scmp.lt.s32.totalorder %s9, 3
    %p190 = pnand %p188, %p189
    %p191 = pneg %p190
    // Predicated region
    $region29: #{vae_forward.8} parent=5 // pred_check
      _
    $region30: #{vae_forward.8} parent=5 // pred_check_branch
      %193 = sbr.rel (%p190) target = $region32
    $region31: #{vae_forward.8} parent=5 // pred_region
      %s194 = ssub.s32 %s9, 1
      %s195 = smul.u32 8, %s19
      %p196 = scmp.lt.s32.totalorder %s195, 15
      %s197 = scalar_select %p196, %s195, 15
      %p198 = scmp.lt.s32.totalorder %s21, 0
      %s199 = scalar_select %p198, %s21, 0
      %s200 = sadd.s32 %s199, %s197
      %s201 = smul.addr %s200, 4
      %s202 = scalar_lea.vmem %s0, %s201
      %p203 = pneg %p56
      %p204 = pneg %p53
      %s205 = smul.u32 6, %s21
      %p206 = scmp.lt.s32.totalorder %s205, 5
      %s207 = scalar_select %p206, %s205, 5
      %p208 = scmp.lt.s32.totalorder %s20, 0
      %s209 = scalar_select %p208, %s20, 0
      %s210 = sadd.s32 %s209, %s207
      %s211 = smul.addr %s210, 4
      %s212 = scalar_lea.vmem %s1, %s211
      %p213 = pneg %p84
      %p214 = pneg %p81
      %p215 = scmp.lt.s32.totalorder %s20, 0
      %s216 = scalar_select %p215, %s20, 0
      %s217 = smul.addr %s216, 2
      %s218 = scalar_lea.vmem %s2, %s217
      %p219 = pneg %p110
      %p220 = pneg %p107
      %p221 = pneg %p138
      %p222 = pneg %p135
      %s223 = smul.u32 8, %s19
      %p224 = scmp.lt.s32.totalorder %s223, 15
      %s225 = scalar_select %p224, %s223, 15
      %p226 = scmp.lt.s32.totalorder %s20, 0
      %s227 = scalar_select %p226, %s20, 0
      %s228 = sadd.s32 %s227, %s225
      %s229 = smul.addr %s228, 4
      %s230 = scalar_lea.vmem %s3, %s229
      %s231 = smul.u32 8, %s19
      %p232 = scmp.lt.s32.totalorder %s231, 15
      %s233 = scalar_select %p232, %s231, 15
      %p234 = scmp.lt.s32.totalorder %s21, 0
      %s235 = scalar_select %p234, %s21, 0
      %s236 = sadd.s32 %s235, %s233
      %s237 = smul.addr %s236, 4
      %s238 = scalar_lea.vmem %s0, %s237
      %s239 = smul.u32 8, %s19
      %s240 = smul.u32 6, %s21
      %p241 = scmp.lt.s32.totalorder %s240, 5
      %s242 = scalar_select %p241, %s240, 5
      %p243 = scmp.lt.s32.totalorder %s20, 0
      %s244 = scalar_select %p243, %s20, 0
      %s245 = sadd.s32 %s244, %s242
      %s246 = smul.addr %s245, 4
      %s247 = scalar_lea.vmem %s1, %s246
      %s248 = smul.u32 6, %s21
      %p249 = scmp.lt.s32.totalorder %s20, 0
      %s250 = scalar_select %p249, %s20, 0
      %s251 = smul.addr %s250, 2
      %s252 = scalar_lea.vmem %s2, %s251
      %s253 = smul.u32 8, %s19
      %p254 = scmp.lt.s32.totalorder %s253, 15
      %s255 = scalar_select %p254, %s253, 15
      %p256 = scmp.lt.s32.totalorder %s20, 0
      %s257 = scalar_select %p256, %s20, 0
      %s258 = sadd.s32 %s257, %s255
      %s259 = smul.addr %s258, 4
      %s260 = scalar_lea.vmem %s3, %s259
      %s261 = smul.u32 8, %s19
      %p263 = scmp.eq.s32.totalorder %s21, 0
      // Predicated region
      $region33: #{vae_forward.8} parent=31 // pred_check
        %p264 = pneg %p263
      $region34: #{vae_forward.8} parent=31 // pred_check_branch
        %266 = sbr.rel (%p264) target = $region36
      $region35: #{vae_forward.8} parent=31 // pred_region
        %267 = vst [vmem:[#allocation2] sm:$0xff] 0.0
        %268 = vst [vmem:[#allocation2 + $0x8] sm:$0xff] 0.0
        %269 = vst [vmem:[#allocation2 + $0x10] sm:$0xff] 0.0
        %270 = vst [vmem:[#allocation2 + $0x18] sm:$0xff] 0.0
        %271 = vst [vmem:[#allocation2 + $0x20] sm:$0xff] 0.0
        %272 = vst [vmem:[#allocation2 + $0x28] sm:$0xff] 0.0
        %273 = vst [vmem:[#allocation2 + $0x30] sm:$0xff] 0.0
        %274 = vst [vmem:[#allocation2 + $0x38] sm:$0xff] 0.0
      $region36: #{vae_forward.8} parent=31 // pred_fallthru
        _
      %v275 = vld [vmem:[#allocation2] sm:$0xff]
      %v276 = vld [vmem:[#allocation2 + $0x8] sm:$0xff]
      %v277 = vld [vmem:[#allocation2 + $0x10] sm:$0xff]
      %v278 = vld [vmem:[#allocation2 + $0x18] sm:$0xff]
      %v279 = vld [vmem:[#allocation2 + $0x20] sm:$0xff]
      %v280 = vld [vmem:[#allocation2 + $0x28] sm:$0xff]
      %v281 = vld [vmem:[#allocation2 + $0x30] sm:$0xff]
      %v282 = vld [vmem:[#allocation2 + $0x38] sm:$0xff]
      %v283 = vld [vmem:[%s238] sm:$0xf]
      %v284 = vld [vmem:[%s238 + $0x4] sm:$0xf]
      %v285 = vld [vmem:[%s238 + $0x8] sm:$0xf]
      %v286 = vld [vmem:[%s238 + $0xc] sm:$0xf]
      %v287 = vld [vmem:[%s238 + $0x10] sm:$0xf]
      %v288 = vld [vmem:[%s238 + $0x14] sm:$0xf]
      %v289 = vld [vmem:[%s238 + $0x18] sm:$0xf]
      %v290 = vld [vmem:[%s238 + $0x1c] sm:$0xf]
      %v291 = vld [vmem:[%s247] sm:$0xf]
      %v292 = vld [vmem:[%s247 + $0x4] sm:$0xf]
      %v293 = vld [vmem:[%s247 + $0x8] sm:$0xf]
      %v294 = vld [vmem:[%s247 + $0xc] sm:$0xf]
      %v295 = vld [vmem:[%s247 + $0x10] sm:$0xf]
      %v296 = vld [vmem:[%s247 + $0x14] sm:$0xf]
      %v305 = vunpack.c.l.b16 %v283
      %v306 = vunpack.c.l.b16 %v284
      %v307 = vunpack.c.l.b16 %v285
      %v308 = vunpack.c.l.b16 %v286
      %v309 = vunpack.c.l.b16 %v287
      %v310 = vunpack.c.l.b16 %v288
      %v311 = vunpack.c.l.b16 %v289
      %v312 = vunpack.c.l.b16 %v290
      %v313 = vpack.c.b16 %v306, %v305
      %v314 = vpack.c.b16 %v308, %v307
      %v315 = vpack.c.b16 %v310, %v309
      %v316 = vpack.c.b16 %v312, %v311
      %v323 = vunpack.c.l.b16 %v291
      %v324 = vunpack.c.l.b16 %v292
      %v325 = vunpack.c.l.b16 %v293
      %v326 = vunpack.c.l.b16 %v294
      %v327 = vunpack.c.l.b16 %v295
      %v328 = vunpack.c.l.b16 %v296
      %v329 = vpack.c.b16 %v324, %v323
      %v330 = vpack.c.b16 %v326, %v325
      %v331 = vpack.c.b16 %v328, %v327
      %vm335 = vcmask 392192
      %v337 = vsel %vm335, %v313, 0
      %v340 = vsel %vm335, %v314, 0
      %v343 = vsel %vm335, %v315, 0
      %v346 = vsel %vm335, %v316, 0
      %348 = vmatpush.bf16.msra.mxu0 0
      %349 = vmatpush.bf16.msra.mxu0 0
      %350 = vmatpush.bf16.msra.mxu0 0
      %351 = vmatpush.bf16.msra.mxu0 0
      %352 = vmatpush.bf16.msra.mxu0 0
      %353 = vmatpush.bf16.msra.mxu0 %v331
      %354 = vmatpush.bf16.msra.mxu0 %v330
      %355 = vmatpush.bf16.msra.mxu0 %v329
      %356 = vmatmul.bf16.gmra.mxu0 %v337
      %v357 = vpop.f32.mrf.mxu0
      %v358 = vadd.f32 0.0, %v357
      %v359 = vpop.f32.mrf.mxu0
      %v360 = vadd.f32 0.0, %v359
      %361 = vmatmul.bf16.gmra.mxu0 %v340
      %v362 = vpop.f32.mrf.mxu0
      %v363 = vadd.f32 0.0, %v362
      %v364 = vpop.f32.mrf.mxu0
      %v365 = vadd.f32 0.0, %v364
      %366 = vmatmul.bf16.gmra.mxu0 %v343
      %v367 = vpop.f32.mrf.mxu0
      %v368 = vadd.f32 0.0, %v367
      %v369 = vpop.f32.mrf.mxu0
      %v370 = vadd.f32 0.0, %v369
      %371 = vmatmul.bf16.gmra.mxu0 %v346
      %v372 = vpop.f32.mrf.mxu0
      %v373 = vadd.f32 0.0, %v372
      %v374 = vpop.f32.mrf.mxu0
      %v375 = vadd.f32 0.0, %v374
      %376 = vdwg.mxu0
      %v377 = vadd.f32 %v275, %v358
      %v378 = vadd.f32 %v276, %v360
      %v379 = vadd.f32 %v277, %v363
      %v380 = vadd.f32 %v278, %v365
      %v381 = vadd.f32 %v279, %v368
      %v382 = vadd.f32 %v280, %v370
      %v383 = vadd.f32 %v281, %v373
      %v384 = vadd.f32 %v282, %v375
      %385 = vst [vmem:[#allocation2] sm:$0xff] %v377
      %386 = vst [vmem:[#allocation2 + $0x8] sm:$0xff] %v378
      %387 = vst [vmem:[#allocation2 + $0x10] sm:$0xff] %v379
      %388 = vst [vmem:[#allocation2 + $0x18] sm:$0xff] %v380
      %389 = vst [vmem:[#allocation2 + $0x20] sm:$0xff] %v381
      %390 = vst [vmem:[#allocation2 + $0x28] sm:$0xff] %v382
      %391 = vst [vmem:[#allocation2 + $0x30] sm:$0xff] %v383
      %392 = vst [vmem:[#allocation2 + $0x38] sm:$0xff] %v384
      // Predicated region
      $region37: #{vae_forward.8} parent=31 // pred_check
        %p393 = pneg %p263
      $region38: #{vae_forward.8} parent=31 // pred_check_branch
        %395 = sbr.rel (%p393) target = $region40
      $region39: #{vae_forward.8} parent=31 // pred_region
        %v396 = vld [vmem:[#allocation2] sm:$0xff]
        %v397 = vld [vmem:[#allocation2 + $0x8] sm:$0xff]
        %v398 = vld [vmem:[#allocation2 + $0x10] sm:$0xff]
        %v399 = vld [vmem:[#allocation2 + $0x18] sm:$0xff]
        %v400 = vld [vmem:[#allocation2 + $0x20] sm:$0xff]
        %v401 = vld [vmem:[#allocation2 + $0x28] sm:$0xff]
        %v402 = vld [vmem:[#allocation2 + $0x30] sm:$0xff]
        %v403 = vld [vmem:[#allocation2 + $0x38] sm:$0xff]
        %v404 = vld [vmem:[%s252] sm:$0x1]
        %v405 = vperm.slane %v404, 0
        %v406 = vmul.f32 %v396, %v405
        %v407 = vmul.f32 %v397, %v405
        %v408 = vmul.f32 %v398, %v405
        %v409 = vmul.f32 %v399, %v405
        %v410 = vmul.f32 %v400, %v405
        %v411 = vmul.f32 %v401, %v405
        %v412 = vmul.f32 %v402, %v405
        %v413 = vmul.f32 %v403, %v405
        %v414 = vld [vmem:[%s252 + $0x1] sm:$0x1]
        %v415 = vperm.slane %v414, 0
        %v416 = vadd.f32 %v406, %v415
        %v417 = vadd.f32 %v407, %v415
        %v418 = vadd.f32 %v408, %v415
        %v419 = vadd.f32 %v409, %v415
        %v420 = vadd.f32 %v410, %v415
        %v421 = vadd.f32 %v411, %v415
        %v422 = vadd.f32 %v412, %v415
        %v423 = vadd.f32 %v413, %v415
        %vm424 = vcmp.gt.f32.partialorder %v416, 0.0
        %vm425 = vcmp.gt.f32.partialorder %v417, 0.0
        %vm426 = vcmp.gt.f32.partialorder %v418, 0.0
        %vm427 = vcmp.gt.f32.partialorder %v419, 0.0
        %vm428 = vcmp.gt.f32.partialorder %v420, 0.0
        %vm429 = vcmp.gt.f32.partialorder %v421, 0.0
        %vm430 = vcmp.gt.f32.partialorder %v422, 0.0
        %vm431 = vcmp.gt.f32.partialorder %v423, 0.0
        %v432 = vmul.f32 %v416, 0.01
        %v433 = vmul.f32 %v417, 0.01
        %v434 = vmul.f32 %v418, 0.01
        %v435 = vmul.f32 %v419, 0.01
        %v436 = vmul.f32 %v420, 0.01
        %v437 = vmul.f32 %v421, 0.01
        %v438 = vmul.f32 %v422, 0.01
        %v439 = vmul.f32 %v423, 0.01
        %v440 = vsel %vm424, %v416, %v432
        %v441 = vsel %vm425, %v417, %v433
        %v442 = vsel %vm426, %v418, %v434
        %v443 = vsel %vm427, %v419, %v435
        %v444 = vsel %vm428, %v420, %v436
        %v445 = vsel %vm429, %v421, %v437
        %v446 = vsel %vm430, %v422, %v438
        %v447 = vsel %vm431, %v423, %v439
        %v448 = vpack.c.bf16 %v440, %v440
        %v449 = vpack.c.bf16 %v441, %v441
        %v450 = vpack.c.bf16 %v442, %v442
        %v451 = vpack.c.bf16 %v443, %v443
        %v452 = vpack.c.bf16 %v444, %v444
        %v453 = vpack.c.bf16 %v445, %v445
        %v454 = vpack.c.bf16 %v446, %v446
        %v455 = vpack.c.bf16 %v447, %v447
        %456 = vst [vmem:[%s260] sm:$0xf] %v448
        %457 = vst [vmem:[%s260 + $0x4] sm:$0xf] %v449
        %458 = vst [vmem:[%s260 + $0x8] sm:$0xf] %v450
        %459 = vst [vmem:[%s260 + $0xc] sm:$0xf] %v451
        %460 = vst [vmem:[%s260 + $0x10] sm:$0xf] %v452
        %461 = vst [vmem:[%s260 + $0x14] sm:$0xf] %v453
        %462 = vst [vmem:[%s260 + $0x18] sm:$0xf] %v454
        %463 = vst [vmem:[%s260 + $0x1c] sm:$0xf] %v455
      $region40: #{vae_forward.8} parent=31 // pred_fallthru
        _
      %s464 = smul.u32 8, %s19
      %p465 = scmp.lt.s32.totalorder %s464, 15
      %s466 = scalar_select %p465, %s464, 15
      %p467 = scmp.lt.s32.totalorder %s20, 0
      %s468 = scalar_select %p467, %s20, 0
      %s469 = sadd.s32 %s468, %s466
      %s470 = smul.addr %s469, 4
      %s471 = scalar_lea.vmem %s3, %s470
      // Predicated region
      $region41: #{vae_forward.8} parent=31 // pred_check
        %p472 = pneg %p135
      $region42: #{vae_forward.8} parent=31 // pred_check_branch
        %474 = sbr.rel (%p472) target = $region44
      $region43: #{vae_forward.8} parent=31 // pred_region
        %s475 = smul.u32 8, %s19
      $region44: #{vae_forward.8} parent=31 // pred_fallthru
        _
    $region32: #{vae_forward.8} parent=5 // pred_fallthru
      _
    %p476 = scmp.le.s32.totalorder 2, %s9
    // Predicated region
    $region45: #{vae_forward.8} parent=5 // pred_check
      %p477 = pneg %p476
    $region46: #{vae_forward.8} parent=5 // pred_check_branch
      %479 = sbr.rel (%p477) target = $region48
    $region47: #{vae_forward.8} parent=5 // pred_region
      %s480 = ssub.s32 %s9, 2
      // Predicated region
      $region49: #{vae_forward.8} parent=47 // pred_check
        %p481 = pneg %p141
      $region50: #{vae_forward.8} parent=47 // pred_check_branch
        %483 = sbr.rel (%p481) target = $region52
      $region51: #{vae_forward.8} parent=47 // pred_region
        %s484 = smul.u32 8, %s22
        %p485 = scmp.lt.s32.totalorder %s484, 15
        %s486 = scalar_select %p485, %s484, 15
        %p487 = scmp.lt.s32.totalorder %s23, 0
        %s488 = scalar_select %p487, %s23, 0
        %s489 = sadd.s32 %s488, %s486
        %s490 = smul.addr %s489, 4
        %s491 = scalar_lea.vmem %s3, %s490
      $region52: #{vae_forward.8} parent=47 // pred_fallthru
        _
    $region48: #{vae_forward.8} parent=5 // pred_fallthru
      _
  $region6: #{vae_forward.8} parent=0 // loop_footer
    %s13 = sadd.s32 1, %s9
  $region7: #{vae_forward.8} parent=0 // loop_footer_branch
    %8 = sbr.rel target = $region3
  $region8: #{vae_forward.8} parent=0 // loop_exit
    _

// kernel: vae_forward.10
$region0: #{vae_forward.10}
  #allocation0 [shape = 'u32[]', space=smem, size = 0x4, offset = 0x4, fixed_abs, tag = 'smem constant byte address 0x4 - core index']
  #allocation1 [shape = 'u32[72,128]{1,0:T(1,128)}', space=vmem, size = 0x9000, scoped, tag = 'internal scratch']
  #allocation2 [shape = 'f32[16,256]{1,0:T(8,128)}', space=vmem, size = 0x4000, scoped, tag = 'scratch operand']
  %s0 = inlined_call_operand.vmem [shape: bf16[16,256], index: 0, kind: input, shape index: {}]
  %s1 = inlined_call_operand.vmem [shape: bf16[256,256], index: 1, kind: input, shape index: {}]
  %s2 = inlined_call_operand.vmem [shape: f32[1,256], index: 2, kind: input, shape index: {}]
  %s3 = inlined_call_operand.vmem [shape: f32[16,128], index: 3, kind: input, shape index: {}]
  %s4 = inlined_call_operand.vmem [shape: f32[16,128], index: 4, kind: output, shape index: {0}]
  %s5 = inlined_call_operand.vmem [shape: f32[16,128], index: 5, kind: output, shape index: {1}]
  %s6 = inlined_call_operand.vmem [shape: f32[16,128], index: 6, kind: output, shape index: {2}]
  %7 = xla_tuple %s4, %s5, %s6
  %s8 = sld [smem:[#allocation0]]
  $region50: #{vae_forward.10} parent=0
    _
  %s10 = ssub.s32 1, %s8
  %s11 = scalar_select 0, %s10, %s8
  // Predicated region
  $region2: #{vae_forward.10} parent=0 // pred_check
    _
  $region3: #{vae_forward.10} parent=0 // pred_check_branch
    %13 = sbr.rel (0) target = $region5
  $region4: #{vae_forward.10} parent=0 // pred_region
    _
  $region5: #{vae_forward.10} parent=0 // pred_fallthru
    _
  // Predicated region
  $region6: #{vae_forward.10} parent=0 // pred_check
    _
  $region7: #{vae_forward.10} parent=0 // pred_check_branch
    %15 = sbr.rel (0) target = $region9
  $region8: #{vae_forward.10} parent=0 // pred_region
    _
  $region9: #{vae_forward.10} parent=0 // pred_fallthru
    _
  // Predicated region
  $region10: #{vae_forward.10} parent=0 // pred_check
    _
  $region11: #{vae_forward.10} parent=0 // pred_check_branch
    %17 = sbr.rel (0) target = $region13
  $region12: #{vae_forward.10} parent=0 // pred_region
    _
  $region13: #{vae_forward.10} parent=0 // pred_fallthru
    _
  // Predicated region
  $region14: #{vae_forward.10} parent=0 // pred_check
    _
  $region15: #{vae_forward.10} parent=0 // pred_check_branch
    %19 = sbr.rel (0) target = $region17
  $region16: #{vae_forward.10} parent=0 // pred_region
    _
  $region17: #{vae_forward.10} parent=0 // pred_fallthru
    _
  %p20 = scmp.eq.s32.totalorder 0, 0
  // Predicated region
  $region18: #{vae_forward.10} parent=0 // pred_check
    %p21 = pneg %p20
  $region19: #{vae_forward.10} parent=0 // pred_check_branch
    %23 = sbr.rel (%p21) target = $region21
  $region20: #{vae_forward.10} parent=0 // pred_region
    %24 = vst [vmem:[#allocation2] sm:$0xff] 0.0
    %25 = vst [vmem:[#allocation2 + $0x8] sm:$0xff] 0.0
    %26 = vst [vmem:[#allocation2 + $0x10] sm:$0xff] 0.0
    %27 = vst [vmem:[#allocation2 + $0x18] sm:$0xff] 0.0
  $region21: #{vae_forward.10} parent=0 // pred_fallthru
    _
  %v28 = vld [vmem:[#allocation2] sm:$0xff]
  %v29 = vld [vmem:[#allocation2 + $0x8] sm:$0xff]
  %v30 = vld [vmem:[#allocation2 + $0x10] sm:$0xff]
  %v31 = vld [vmem:[#allocation2 + $0x18] sm:$0xff]
  %v32 = vld [vmem:[%s0] sm:$0xff]
  %v33 = vld [vmem:[%s0 + $0x8] sm:$0xff]
  %v34 = vld [vmem:[%s1] sm:$0xff]
  %v35 = vld [vmem:[%s1 + $0x8] sm:$0xff]
  %v36 = vld [vmem:[%s1 + $0x10] sm:$0xff]
  %v37 = vld [vmem:[%s1 + $0x18] sm:$0xff]
  %v38 = vld [vmem:[%s1 + $0x20] sm:$0xff]
  %v39 = vld [vmem:[%s1 + $0x28] sm:$0xff]
  %v40 = vld [vmem:[%s1 + $0x30] sm:$0xff]
  %v41 = vld [vmem:[%s1 + $0x38] sm:$0xff]
  %v42 = vld [vmem:[%s1 + $0x40] sm:$0xff]
  %v43 = vld [vmem:[%s1 + $0x48] sm:$0xff]
  %v44 = vld [vmem:[%s1 + $0x50] sm:$0xff]
  %v45 = vld [vmem:[%s1 + $0x58] sm:$0xff]
  %v46 = vld [vmem:[%s1 + $0x60] sm:$0xff]
  %v47 = vld [vmem:[%s1 + $0x68] sm:$0xff]
  %v48 = vld [vmem:[%s1 + $0x70] sm:$0xff]
  %v49 = vld [vmem:[%s1 + $0x78] sm:$0xff]
  %v50 = vld [vmem:[%s1 + $0x80] sm:$0xff]
  %v51 = vld [vmem:[%s1 + $0x88] sm:$0xff]
  %v52 = vld [vmem:[%s1 + $0x90] sm:$0xff]
  %v53 = vld [vmem:[%s1 + $0x98] sm:$0xff]
  %v54 = vld [vmem:[%s1 + $0xa0] sm:$0xff]
  %v55 = vld [vmem:[%s1 + $0xa8] sm:$0xff]
  %v56 = vld [vmem:[%s1 + $0xb0] sm:$0xff]
  %v57 = vld [vmem:[%s1 + $0xb8] sm:$0xff]
  %v58 = vld [vmem:[%s1 + $0xc0] sm:$0xff]
  %v59 = vld [vmem:[%s1 + $0xc8] sm:$0xff]
  %v60 = vld [vmem:[%s1 + $0xd0] sm:$0xff]
  %v61 = vld [vmem:[%s1 + $0xd8] sm:$0xff]
  %v62 = vld [vmem:[%s1 + $0xe0] sm:$0xff]
  %v63 = vld [vmem:[%s1 + $0xe8] sm:$0xff]
  %v64 = vld [vmem:[%s1 + $0xf0] sm:$0xff]
  %v65 = vld [vmem:[%s1 + $0xf8] sm:$0xff]
  %v68 = vunpack.c.l.b16 %v32
  %v69 = vunpack.c.h.b16 %v32
  %v70 = vunpack.c.l.b16 %v33
  %v71 = vunpack.c.h.b16 %v33
  %v72 = vpack.c.b16 %v70, %v68
  %v73 = vpack.c.b16 %v71, %v69
  %v108 = vunpack.c.l.b16 %v34
  %v109 = vunpack.c.h.b16 %v34
  %v110 = vunpack.c.l.b16 %v35
  %v111 = vunpack.c.h.b16 %v35
  %v112 = vunpack.c.l.b16 %v36
  %v113 = vunpack.c.h.b16 %v36
  %v114 = vunpack.c.l.b16 %v37
  %v115 = vunpack.c.h.b16 %v37
  %v116 = vunpack.c.l.b16 %v38
  %v117 = vunpack.c.h.b16 %v38
  %v118 = vunpack.c.l.b16 %v39
  %v119 = vunpack.c.h.b16 %v39
  %v120 = vunpack.c.l.b16 %v40
  %v121 = vunpack.c.h.b16 %v40
  %v122 = vunpack.c.l.b16 %v41
  %v123 = vunpack.c.h.b16 %v41
  %v124 = vunpack.c.l.b16 %v42
  %v125 = vunpack.c.h.b16 %v42
  %v126 = vunpack.c.l.b16 %v43
  %v127 = vunpack.c.h.b16 %v43
  %v128 = vunpack.c.l.b16 %v44
  %v129 = vunpack.c.h.b16 %v44
  %v130 = vunpack.c.l.b16 %v45
  %v131 = vunpack.c.h.b16 %v45
  %v132 = vunpack.c.l.b16 %v46
  %v133 = vunpack.c.h.b16 %v46
  %v134 = vunpack.c.l.b16 %v47
  %v135 = vunpack.c.h.b16 %v47
  %v136 = vunpack.c.l.b16 %v48
  %v137 = vunpack.c.h.b16 %v48
  %v138 = vunpack.c.l.b16 %v49
  %v139 = vunpack.c.h.b16 %v49
  %v140 = vunpack.c.l.b16 %v50
  %v141 = vunpack.c.h.b16 %v50
  %v142 = vunpack.c.l.b16 %v51
  %v143 = vunpack.c.h.b16 %v51
  %v144 = vunpack.c.l.b16 %v52
  %v145 = vunpack.c.h.b16 %v52
  %v146 = vunpack.c.l.b16 %v53
  %v147 = vunpack.c.h.b16 %v53
  %v148 = vunpack.c.l.b16 %v54
  %v149 = vunpack.c.h.b16 %v54
  %v150 = vunpack.c.l.b16 %v55
  %v151 = vunpack.c.h.b16 %v55
  %v152 = vunpack.c.l.b16 %v56
  %v153 = vunpack.c.h.b16 %v56
  %v154 = vunpack.c.l.b16 %v57
  %v155 = vunpack.c.h.b16 %v57
  %v156 = vunpack.c.l.b16 %v58
  %v157 = vunpack.c.h.b16 %v58
  %v158 = vunpack.c.l.b16 %v59
  %v159 = vunpack.c.h.b16 %v59
  %v160 = vunpack.c.l.b16 %v60
  %v161 = vunpack.c.h.b16 %v60
  %v162 = vunpack.c.l.b16 %v61
  %v163 = vunpack.c.h.b16 %v61
  %v164 = vunpack.c.l.b16 %v62
  %v165 = vunpack.c.h.b16 %v62
  %v166 = vunpack.c.l.b16 %v63
  %v167 = vunpack.c.h.b16 %v63
  %v168 = vunpack.c.l.b16 %v64
  %v169 = vunpack.c.h.b16 %v64
  %v170 = vunpack.c.l.b16 %v65
  %v171 = vunpack.c.h.b16 %v65
  %v172 = vpack.c.b16 %v110, %v108
  %v173 = vpack.c.b16 %v111, %v109
  %v174 = vpack.c.b16 %v114, %v112
  %v175 = vpack.c.b16 %v115, %v113
  %v176 = vpack.c.b16 %v118, %v116
  %v177 = vpack.c.b16 %v119, %v117
  %v178 = vpack.c.b16 %v122, %v120
  %v179 = vpack.c.b16 %v123, %v121
  %v180 = vpack.c.b16 %v126, %v124
  %v181 = vpack.c.b16 %v127, %v125
  %v182 = vpack.c.b16 %v130, %v128
  %v183 = vpack.c.b16 %v131, %v129
  %v184 = vpack.c.b16 %v134, %v132
  %v185 = vpack.c.b16 %v135, %v133
  %v186 = vpack.c.b16 %v138, %v136
  %v187 = vpack.c.b16 %v139, %v137
  %v188 = vpack.c.b16 %v142, %v140
  %v189 = vpack.c.b16 %v143, %v141
  %v190 = vpack.c.b16 %v146, %v144
  %v191 = vpack.c.b16 %v147, %v145
  %v192 = vpack.c.b16 %v150, %v148
  %v193 = vpack.c.b16 %v151, %v149
  %v194 = vpack.c.b16 %v154, %v152
  %v195 = vpack.c.b16 %v155, %v153
  %v196 = vpack.c.b16 %v158, %v156
  %v197 = vpack.c.b16 %v159, %v157
  %v198 = vpack.c.b16 %v162, %v160
  %v199 = vpack.c.b16 %v163, %v161
  %v200 = vpack.c.b16 %v166, %v164
  %v201 = vpack.c.b16 %v167, %v165
  %v202 = vpack.c.b16 %v170, %v168
  %v203 = vpack.c.b16 %v171, %v169
  %236 = vmatpush.bf16.msra.mxu0 %v186
  %237 = vmatpush.bf16.msra.mxu0 %v184
  %238 = vmatpush.bf16.msra.mxu0 %v182
  %239 = vmatpush.bf16.msra.mxu0 %v180
  %240 = vmatpush.bf16.msra.mxu0 %v178
  %241 = vmatpush.bf16.msra.mxu0 %v176
  %242 = vmatpush.bf16.msra.mxu0 %v174
  %243 = vmatpush.bf16.msra.mxu0 %v172
  %244 = vmatmul.bf16.gmra.mxu0 %v72
  %v245 = vpop.f32.mrf.mxu0
  %v246 = vadd.f32 0.0, %v245
  %v247 = vpop.f32.mrf.mxu0
  %v248 = vadd.f32 0.0, %v247
  %249 = vdwg.mxu0
  %250 = vmatpush.bf16.msra.mxu0 %v202
  %251 = vmatpush.bf16.msra.mxu0 %v200
  %252 = vmatpush.bf16.msra.mxu0 %v198
  %253 = vmatpush.bf16.msra.mxu0 %v196
  %254 = vmatpush.bf16.msra.mxu0 %v194
  %255 = vmatpush.bf16.msra.mxu0 %v192
  %256 = vmatpush.bf16.msra.mxu0 %v190
  %257 = vmatpush.bf16.msra.mxu0 %v188
  %258 = vmatmul.bf16.gmra.mxu0 %v73
  %v259 = vpop.f32.mrf.mxu0
  %v260 = vadd.f32 %v246, %v259
  %v261 = vpop.f32.mrf.mxu0
  %v262 = vadd.f32 %v248, %v261
  %263 = vdwg.mxu0
  %264 = vmatpush.bf16.msra.mxu0 %v187
  %265 = vmatpush.bf16.msra.mxu0 %v185
  %266 = vmatpush.bf16.msra.mxu0 %v183
  %267 = vmatpush.bf16.msra.mxu0 %v181
  %268 = vmatpush.bf16.msra.mxu0 %v179
  %269 = vmatpush.bf16.msra.mxu0 %v177
  %270 = vmatpush.bf16.msra.mxu0 %v175
  %271 = vmatpush.bf16.msra.mxu0 %v173
  %272 = vmatmul.bf16.gmra.mxu0 %v72
  %v273 = vpop.f32.mrf.mxu0
  %v274 = vadd.f32 0.0, %v273
  %v275 = vpop.f32.mrf.mxu0
  %v276 = vadd.f32 0.0, %v275
  %277 = vdwg.mxu0
  %278 = vmatpush.bf16.msra.mxu0 %v203
  %279 = vmatpush.bf16.msra.mxu0 %v201
  %280 = vmatpush.bf16.msra.mxu0 %v199
  %281 = vmatpush.bf16.msra.mxu0 %v197
  %282 = vmatpush.bf16.msra.mxu0 %v195
  %283 = vmatpush.bf16.msra.mxu0 %v193
  %284 = vmatpush.bf16.msra.mxu0 %v191
  %285 = vmatpush.bf16.msra.mxu0 %v189
  %286 = vmatmul.bf16.gmra.mxu0 %v73
  %v287 = vpop.f32.mrf.mxu0
  %v288 = vadd.f32 %v274, %v287
  %v289 = vpop.f32.mrf.mxu0
  %v290 = vadd.f32 %v276, %v289
  %291 = vdwg.mxu0
  %v292 = vadd.f32 %v28, %v260
  %v293 = vadd.f32 %v29, %v288
  %v294 = vadd.f32 %v30, %v262
  %v295 = vadd.f32 %v31, %v290
  %296 = vst [vmem:[#allocation2] sm:$0xff] %v292
  %297 = vst [vmem:[#allocation2 + $0x8] sm:$0xff] %v293
  %298 = vst [vmem:[#allocation2 + $0x10] sm:$0xff] %v294
  %299 = vst [vmem:[#allocation2 + $0x18] sm:$0xff] %v295
  // Predicated region
  $region22: #{vae_forward.10} parent=0 // pred_check
    %p300 = pneg %p20
  $region23: #{vae_forward.10} parent=0 // pred_check_branch
    %302 = sbr.rel (%p300) target = $region25
  $region24: #{vae_forward.10} parent=0 // pred_region
    %v303 = vld [vmem:[#allocation2] sm:$0xff]
    %v304 = vld [vmem:[#allocation2 + $0x8] sm:$0xff]
    %v305 = vld [vmem:[#allocation2 + $0x10] sm:$0xff]
    %v306 = vld [vmem:[#allocation2 + $0x18] sm:$0xff]
    %v307 = vld [vmem:[%s2] sm:$0x3]
    %v309 = vperm.slane %v307, 0
    %v310 = vperm.slane %v307, 1
    %v313 = vadd.f32 %v303, %v309
    %v314 = vadd.f32 %v304, %v310
    %v315 = vadd.f32 %v305, %v309
    %v316 = vadd.f32 %v306, %v310
    %317 = vst [vmem:[%s4] sm:$0xff] %v313
    %318 = vst [vmem:[%s4 + $0x8] sm:$0xff] %v315
    %319 = vst [vmem:[%s5] sm:$0xff] %v314
    %320 = vst [vmem:[%s5 + $0x8] sm:$0xff] %v316
    %v321 = vld [vmem:[%s3] sm:$0xff]
    %v322 = vld [vmem:[%s3 + $0x8] sm:$0xff]
    %v323 = vmul.f32 %v314, 0.5
    %v324 = vmul.f32 %v316, 0.5
    %v325 = vmul.f32 %v323, 1.442695
    %v326 = vpow.pop %v325
    %v327 = vmul.f32 %v324, 1.442695
    %v328 = vpow.pop %v327
    %v329 = vmul.f32 %v321, %v326
    %v330 = vmul.f32 %v322, %v328
    %v331 = vadd.f32 %v329, %v313
    %v332 = vadd.f32 %v330, %v315
    %333 = vst [vmem:[%s6] sm:$0xff] %v331
    %334 = vst [vmem:[%s6 + $0x8] sm:$0xff] %v332
  $region25: #{vae_forward.10} parent=0 // pred_fallthru
    _
  // Predicated region
  $region26: #{vae_forward.10} parent=0 // pred_check
    _
  $region27: #{vae_forward.10} parent=0 // pred_check_branch
    %336 = sbr.rel (0) target = $region29
  $region28: #{vae_forward.10} parent=0 // pred_region
    _
  $region29: #{vae_forward.10} parent=0 // pred_fallthru
    _
  // Predicated region
  $region30: #{vae_forward.10} parent=0 // pred_check
    _
  $region31: #{vae_forward.10} parent=0 // pred_check_branch
    %338 = sbr.rel (0) target = $region33
  $region32: #{vae_forward.10} parent=0 // pred_region
    _
  $region33: #{vae_forward.10} parent=0 // pred_fallthru
    _
  // Predicated region
  $region34: #{vae_forward.10} parent=0 // pred_check
    _
  $region35: #{vae_forward.10} parent=0 // pred_check_branch
    %340 = sbr.rel (0) target = $region37
  $region36: #{vae_forward.10} parent=0 // pred_region
    _
  $region37: #{vae_forward.10} parent=0 // pred_fallthru
    _
  // Predicated region
  $region38: #{vae_forward.10} parent=0 // pred_check
    _
  $region39: #{vae_forward.10} parent=0 // pred_check_branch
    %342 = sbr.rel (0) target = $region41
  $region40: #{vae_forward.10} parent=0 // pred_region
    _
  $region41: #{vae_forward.10} parent=0 // pred_fallthru
    _
  // Predicated region
  $region42: #{vae_forward.10} parent=0 // pred_check
    _
  $region43: #{vae_forward.10} parent=0 // pred_check_branch
    %344 = sbr.rel (0) target = $region45
  $region44: #{vae_forward.10} parent=0 // pred_region
    _
  $region45: #{vae_forward.10} parent=0 // pred_fallthru
    _
  // Predicated region
  $region46: #{vae_forward.10} parent=0 // pred_check
    _
  $region47: #{vae_forward.10} parent=0 // pred_check_branch
    %346 = sbr.rel (0) target = $region49
  $region48: #{vae_forward.10} parent=0 // pred_region
    _
  $region49: #{vae_forward.10} parent=0 // pred_fallthru
    _

// kernel: vae_forward.11
$region0: #{vae_forward.11}
  #allocation0 [shape = 'u32[]', space=smem, size = 0x4, offset = 0x4, fixed_abs, tag = 'smem constant byte address 0x4 - core index']
  #allocation1 [shape = 'u32[72,128]{1,0:T(1,128)}', space=vmem, size = 0x9000, scoped, tag = 'internal scratch']
  #allocation2 [shape = 'f32[16,128]{1,0:T(8,128)}', space=vmem, size = 0x2000, scoped, tag = 'scratch operand']
  %s0 = inlined_call_operand.vmem [shape: bf16[16,16], index: 0, kind: input, shape index: {}]
  %s1 = inlined_call_operand.vmem [shape: bf16[16,256], index: 1, kind: input, shape index: {}]
  %s2 = inlined_call_operand.vmem [shape: f32[2,256], index: 2, kind: input, shape index: {}]
  %s3 = inlined_call_operand.vmem [shape: bf16[16,256], index: 3, kind: output, shape index: {}]
  %s4 = sld [smem:[#allocation0]]
  $region131: #{vae_forward.11} parent=0
    _
  %s6 = ssub.s32 1, %s4
  %s7 = scalar_select 0, %s6, %s4
  $region1: #{vae_forward.11} parent=0
    #allocation3 [shape = 'u8[8192]{0}', space=vmem, size = 0x2000, scoped, tag = 'input window, operand 1']
    #allocation4 [shape = 'u8[8192]{0}', space=vmem, size = 0x2000, scoped, tag = 'output window, operand 0']
    loop: start=0, step=1, limit=4
    $region2: #{vae_forward.11} parent=1 // loop_pre_header
      _
    $region3: #{vae_forward.11} parent=1 // loop_header
      %s9 = sphi 0, %s13
      %p10 = scmp.ge.s32.totalorder %s9, 4
      %s16 = sphi 0, %s35
      %s17 = sphi 0, %s31
      %s18 = sphi 0, %s27
      %s19 = sphi 0, %s16
      %s20 = sphi 0, %s17
      %s21 = sphi 0, %s18
      %s22 = sphi 0, %s19
      %s23 = sphi 0, %s20
      %s24 = sphi 0, %s21
      %s40 = sphi 0, %s42
      %s43 = sphi 0, %s40
      %s44 = sphi 0, %s43
      %s60 = sphi 0, %s44
      %s68 = sphi 0, %s70
      %s71 = sphi 0, %s68
      %s72 = sphi 0, %s71
      %s88 = sphi 0, %s72
      %s94 = sphi 0, %s96
      %s97 = sphi 0, %s94
      %s98 = sphi 0, %s97
      %s114 = sphi 0, %s98
      %s122 = sphi 0, %s124
      %s125 = sphi 0, %s122
      %s126 = sphi 0, %s125
      %s142 = sphi 0, %s126
    $region4: #{vae_forward.11} parent=1 // loop_header_branch
      %12 = sbr.rel (%p10) target = $region8
    $region5: #{vae_forward.11} parent=1 // loop_body
      %s14 = ssub.s32 %s9, 1
      %s15 = ssub.s32 %s9, 2
      %s25 = sadd.s32 1, %s18
      %p26 = scmp.ge.s32.totalorder %s25, 1
      %s27 = scalar_select %p26, 0, %s25
      %s28 = sadd.s32 1, %s17
      %s29 = scalar_select %p26, %s28, %s17
      %p30 = scmp.ge.s32.totalorder %s29, 2
      %s31 = scalar_select %p30, 0, %s29
      %s32 = sadd.s32 1, %s16
      %s33 = scalar_select %p30, %s32, %s16
      %p34 = scmp.ge.s32.totalorder %s33, 1
      %s35 = scalar_select %p34, 0, %s33
      %s36 = ssub.s32 %s16, %s35
      %s37 = ssub.s32 %s18, %s27
      %s38 = sor.u32 %s36, %s37
      %p39 = scmp.eq.s32.totalorder %s38, 0
      %s41 = sadd.s32 %s40, 1
      %s42 = scalar_select %p39, %s40, %s41
      %p45 = pneg %p39
      %p46 = scmp.eq.s32.totalorder %s9, 1
      %p47 = por %p45, %p46
      %p48 = scmp.ne.s32.totalorder %s40, %s43
      %p49 = scmp.eq.s32.totalorder %s9, 0
      %p50 = por %p48, %p49
      %p51 = scmp.ne.s32.totalorder %s40, %s43
      %p52 = scmp.eq.s32.totalorder %s14, 1
      %p53 = por %p51, %p52
      %p54 = scmp.ne.s32.totalorder %s43, %s44
      %p55 = scmp.eq.s32.totalorder %s14, 0
      %p56 = por %p54, %p55
      %p57 = scmp.ne.s32.totalorder %s43, %s44
      %p58 = scmp.eq.s32.totalorder %s15, 1
      %p59 = por %p57, %p58
      %p61 = scmp.ne.s32.totalorder %s44, %s60
      %p62 = scmp.eq.s32.totalorder %s15, 0
      %p63 = por %p61, %p62
      %s64 = ssub.s32 %s18, %s27
      %s65 = ssub.s32 %s17, %s31
      %s66 = sor.u32 %s64, %s65
      %p67 = scmp.eq.s32.totalorder %s66, 0
      %s69 = sadd.s32 %s68, 1
      %s70 = scalar_select %p67, %s68, %s69
      %p73 = pneg %p67
      %p74 = scmp.eq.s32.totalorder %s9, 1
      %p75 = por %p73, %p74
      %p76 = scmp.ne.s32.totalorder %s68, %s71
      %p77 = scmp.eq.s32.totalorder %s9, 0
      %p78 = por %p76, %p77
      %p79 = scmp.ne.s32.totalorder %s68, %s71
      %p80 = scmp.eq.s32.totalorder %s14, 1
      %p81 = por %p79, %p80
      %p82 = scmp.ne.s32.totalorder %s71, %s72
      %p83 = scmp.eq.s32.totalorder %s14, 0
      %p84 = por %p82, %p83
      %p85 = scmp.ne.s32.totalorder %s71, %s72
      %p86 = scmp.eq.s32.totalorder %s15, 1
      %p87 = por %p85, %p86
      %p89 = scmp.ne.s32.totalorder %s72, %s88
      %p90 = scmp.eq.s32.totalorder %s15, 0
      %p91 = por %p89, %p90
      %s92 = ssub.s32 %s17, %s31
      %p93 = scmp.eq.s32.totalorder %s92, 0
      %s95 = sadd.s32 %s94, 1
      %s96 = scalar_select %p93, %s94, %s95
      %p99 = pneg %p93
      %p100 = scmp.eq.s32.totalorder %s9, 1
      %p101 = por %p99, %p100
      %p102 = scmp.ne.s32.totalorder %s94, %s97
      %p103 = scmp.eq.s32.totalorder %s9, 0
      %p104 = por %p102, %p103
      %p105 = scmp.ne.s32.totalorder %s94, %s97
      %p106 = scmp.eq.s32.totalorder %s14, 1
      %p107 = por %p105, %p106
      %p108 = scmp.ne.s32.totalorder %s97, %s98
      %p109 = scmp.eq.s32.totalorder %s14, 0
      %p110 = por %p108, %p109
      %p111 = scmp.ne.s32.totalorder %s97, %s98
      %p112 = scmp.eq.s32.totalorder %s15, 1
      %p113 = por %p111, %p112
      %p115 = scmp.ne.s32.totalorder %s98, %s114
      %p116 = scmp.eq.s32.totalorder %s15, 0
      %p117 = por %p115, %p116
      %s118 = ssub.s32 %s16, %s35
      %s119 = ssub.s32 %s17, %s31
      %s120 = sor.u32 %s118, %s119
      %p121 = scmp.eq.s32.totalorder %s120, 0
      %s123 = sadd.s32 %s122, 1
      %s124 = scalar_select %p121, %s122, %s123
      %p127 = pneg %p121
      %p128 = scmp.eq.s32.totalorder %s9, 1
      %p129 = por %p127, %p128
      %p130 = scmp.ne.s32.totalorder %s122, %s125
      %p131 = scmp.eq.s32.totalorder %s9, 0
      %p132 = por %p130, %p131
      %p133 = scmp.ne.s32.totalorder %s122, %s125
      %p134 = scmp.eq.s32.totalorder %s14, 1
      %p135 = por %p133, %p134
      %p136 = scmp.ne.s32.totalorder %s125, %s126
      %p137 = scmp.eq.s32.totalorder %s14, 0
      %p138 = por %p136, %p137
      %p139 = scmp.ne.s32.totalorder %s125, %s126
      %p140 = scmp.eq.s32.totalorder %s15, 1
      %p141 = por %p139, %p140
      %p143 = scmp.ne.s32.totalorder %s126, %s142
      %p144 = scmp.eq.s32.totalorder %s15, 0
      %p145 = por %p143, %p144
      %p146 = scmp.le.s32.totalorder 1, %s9
      %p147 = scmp.lt.s32.totalorder %s9, 3
      %p148 = pnand %p146, %p147
      %p149 = pneg %p148
      // Predicated region
      $region9: #{vae_forward.11} parent=5 // pred_check
        _
      $region10: #{vae_forward.11} parent=5 // pred_check_branch
        %151 = sbr.rel (%p148) target = $region12
      $region11: #{vae_forward.11} parent=5 // pred_region
        %s152 = ssub.s32 %s9, 1
        // Predicated region
        $region13: #{vae_forward.11} parent=11 // pred_check
          %p153 = pneg %p56
        $region14: #{vae_forward.11} parent=11 // pred_check_branch
          %155 = sbr.rel (%p153) target = $region16
        $region15: #{vae_forward.11} parent=11 // pred_region
          %s156 = smul.u32 2, %s19
          %p157 = scmp.lt.s32.totalorder %s156, 1
          %s158 = scalar_select %p157, %s156, 1
          %p159 = scmp.lt.s32.totalorder %s21, 0
          %s160 = scalar_select %p159, %s21, 0
          %s161 = sadd.s32 %s160, %s158
          %s162 = smul.addr %s161, 4
          %s163 = scalar_lea.vmem %s0, %s162
          %s164 = smul.u32 2, %s19
        $region16: #{vae_forward.11} parent=11 // pred_fallthru
          _
      $region12: #{vae_forward.11} parent=5 // pred_fallthru
        _
      %p165 = scmp.lt.s32.totalorder %s9, 2
      // Predicated region
      $region17: #{vae_forward.11} parent=5 // pred_check
        %p166 = pneg %p165
      $region18: #{vae_forward.11} parent=5 // pred_check_branch
        %168 = sbr.rel (%p166) target = $region20
      $region19: #{vae_forward.11} parent=5 // pred_region
        // Predicated region
        $region21: #{vae_forward.11} parent=19 // pred_check
          %p169 = pneg %p78
        $region22: #{vae_forward.11} parent=19 // pred_check_branch
          %171 = sbr.rel (%p169) target = $region24
        $region23: #{vae_forward.11} parent=19 // pred_region
          %s172 = sand.u32 %s68, 1
          %s173 = sand.u32 %s68, 1
          %s174 = smul.addr %s173, 8
          %s175 = scalar_lea.vmem [#allocation3], %s174
          %s176 = smul.u32 2, %s18
          %s177 = smul.addr %s176, 2
          %s178 = sadd.s32 %s17, %s177
          %s179 = smul.addr %s178, 4
          %s180 = scalar_lea.vmem %s1, %s179
          // Predicated region
          $region25: #{vae_forward.11} parent=23 // pred_check
            _
          $region26: #{vae_forward.11} parent=23 // pred_check_branch
            %182 = sbr.rel (0) target = $region28
          $region27: #{vae_forward.11} parent=23 // pred_region
            // Predicated region
            $region29: #{vae_forward.11} parent=27 // pred_check
              _
            $region30: #{vae_forward.11} parent=27 // pred_check_branch
              %184 = sbr.rel target = $region32
            $region31: #{vae_forward.11} parent=27 // pred_region
              // Predicated region
              $region44: #{vae_forward.11} parent=31 // pred_check
                _
              $region45: #{vae_forward.11} parent=31 // pred_check_branch
                %202 = sbr.rel (0) target = $region47
              $region46: #{vae_forward.11} parent=31 // pred_region
                loop: start=0, step=1, limit=1
                $region48: #{vae_forward.11} parent=46 // loop_pre_header
                  _
                $region49: #{vae_forward.11} parent=46 // loop_header
                  %s204 = sphi 0, %s208
                  %p205 = scmp.ge.s32.totalorder %s204, 1
                  %s209 = sphi %s180, %s180
                  %s210 = sphi %s175, %s175
                $region50: #{vae_forward.11} parent=46 // loop_header_branch
                  %207 = sbr.rel (%p205) target = $region54
                $region51: #{vae_forward.11} parent=46 // loop_body
                  _
                $region52: #{vae_forward.11} parent=46 // loop_footer
                  %s208 = sadd.s32 1, %s204
                $region53: #{vae_forward.11} parent=46 // loop_footer_branch
                  %203 = sbr.rel target = $region49
                $region54: #{vae_forward.11} parent=46 // loop_exit
                  _
                %s212 = ssub.s32 16, 1
                loop: start=0, step=1, limit=1
                $region55: #{vae_forward.11} parent=46 // loop_pre_header
                  _
                $region56: #{vae_forward.11} parent=46 // loop_header
                  %s214 = sphi 0, %s218
                  %p215 = scmp.ge.s32.totalorder %s214, 1
                  %s219 = sphi %s180, %s180
                  %s220 = sphi %s175, %s175
                $region57: #{vae_forward.11} parent=46 // loop_header_branch
                  %217 = sbr.rel (%p215) target = $region61
                $region58: #{vae_forward.11} parent=46 // loop_body
                  %v221 = vld [vmem:[%s219] sm:%s212]
                  %222 = vst [vmem:[%s220] sm:%s212] %v221
                  %v223 = vld [vmem:[%s219 + $0x8] sm:%s212]
                  %224 = vst [vmem:[%s220 + $0x4] sm:%s212] %v223
                $region59: #{vae_forward.11} parent=46 // loop_footer
                  %s218 = sadd.s32 1, %s214
                $region60: #{vae_forward.11} parent=46 // loop_footer_branch
                  %213 = sbr.rel target = $region56
                $region61: #{vae_forward.11} parent=46 // loop_exit
                  _
              $region47: #{vae_forward.11} parent=31 // pred_fallthru
                _
            $region32: #{vae_forward.11} parent=27 // pred_fallthru
              _
            // Predicated region
            $region33: #{vae_forward.11} parent=27 // pred_check
              _
            $region34: #{vae_forward.11} parent=27 // pred_check_branch
              %186 = sbr.rel (0) target = $region36
            $region35: #{vae_forward.11} parent=27 // pred_region
              %s188 = ssub.s32 16, 1
              loop: start=0, step=1, limit=1
              $region37: #{vae_forward.11} parent=35 // loop_pre_header
                _
              $region38: #{vae_forward.11} parent=35 // loop_header
                %s190 = sphi 0, %s194
                %p191 = scmp.ge.s32.totalorder %s190, 1
                %s195 = sphi %s180, %s180
                %s196 = sphi %s175, %s175
              $region39: #{vae_forward.11} parent=35 // loop_header_branch
                %193 = sbr.rel (%p191) target = $region43
              $region40: #{vae_forward.11} parent=35 // loop_body
                %v197 = vld [vmem:[%s195] sm:%s188]
                %198 = vst [vmem:[%s196] sm:%s188] %v197
                %v199 = vld [vmem:[%s195 + $0x8] sm:%s188]
                %200 = vst [vmem:[%s196 + $0x4] sm:%s188] %v199
              $region41: #{vae_forward.11} parent=35 // loop_footer
                %s194 = sadd.s32 1, %s190
              $region42: #{vae_forward.11} parent=35 // loop_footer_branch
                %189 = sbr.rel target = $region38
              $region43: #{vae_forward.11} parent=35 // loop_exit
                _
            $region36: #{vae_forward.11} parent=27 // pred_fallthru
              _
          $region28: #{vae_forward.11} parent=23 // pred_fallthru
            _
          %225 = vnop
        $region24: #{vae_forward.11} parent=19 // pred_fallthru
          _
        // Predicated region
        $region62: #{vae_forward.11} parent=19 // pred_check
          %p226 = pneg %p104
        $region63: #{vae_forward.11} parent=19 // pred_check_branch
          %228 = sbr.rel (%p226) target = $region65
        $region64: #{vae_forward.11} parent=19 // pred_region
          %p229 = scmp.lt.s32.totalorder %s17, 1
          %s230 = scalar_select %p229, %s17, 1
          %s231 = smul.addr %s230, 2
          %s232 = scalar_lea.vmem %s2, %s231
        $region65: #{vae_forward.11} parent=19 // pred_fallthru
          _
      $region20: #{vae_forward.11} parent=5 // pred_fallthru
        _
      %p233 = scmp.le.s32.totalorder 1, %s9
      %p234 = scmp.lt.s32.totalorder %s9, 3
      %p235 = pnand %p233, %p234
      %p236 = pneg %p235
      // Predicated region
      $region66: #{vae_forward.11} parent=5 // pred_check
        _
      $region67: #{vae_forward.11} parent=5 // pred_check_branch
        %238 = sbr.rel (%p235) target = $region69
      $region68: #{vae_forward.11} parent=5 // pred_region
        %s239 = ssub.s32 %s9, 1
        %s240 = sand.u32 %s71, 1
        %s241 = sand.u32 %s71, 1
        %s242 = smul.addr %s241, 8
        %s243 = scalar_lea.vmem [#allocation3], %s242
        // Predicated region
        $region70: #{vae_forward.11} parent=68 // pred_check
          %p244 = pneg %p84
        $region71: #{vae_forward.11} parent=68 // pred_check_branch
          %246 = sbr.rel (%p244) target = $region73
        $region72: #{vae_forward.11} parent=68 // pred_region
          _
        $region73: #{vae_forward.11} parent=68 // pred_fallthru
          _
        %s247 = smul.u32 2, %s19
        %p248 = scmp.lt.s32.totalorder %s247, 1
        %s249 = scalar_select %p248, %s247, 1
        %p250 = scmp.lt.s32.totalorder %s21, 0
        %s251 = scalar_select %p250, %s21, 0
        %s252 = sadd.s32 %s251, %s249
        %s253 = smul.addr %s252, 4
        %s254 = scalar_lea.vmem %s0, %s253
        %p255 = pneg %p56
        %p256 = pneg %p53
        %s257 = sand.u32 %s71, 1
        %s258 = sand.u32 %s71, 1
        %s259 = smul.addr %s258, 8
        %s260 = scalar_lea.vmem [#allocation3], %s259
        %p261 = pneg %p84
        %p262 = pneg %p81
        %p263 = scmp.lt.s32.totalorder %s20, 1
        %s264 = scalar_select %p263, %s20, 1
        %s265 = smul.addr %s264, 2
        %s266 = scalar_lea.vmem %s2, %s265
        %p267 = pneg %p110
        %p268 = pneg %p107
        %p269 = pneg %p138
        %p270 = pneg %p135
        %s271 = sand.u32 %s125, 1
        %s272 = sand.u32 %s125, 1
        %s273 = smul.addr %s272, 8
        %s274 = scalar_lea.vmem [#allocation4], %s273
        %s275 = smul.u32 2, %s19
        %p276 = scmp.lt.s32.totalorder %s275, 1
        %s277 = scalar_select %p276, %s275, 1
        %p278 = scmp.lt.s32.totalorder %s21, 0
        %s279 = scalar_select %p278, %s21, 0
        %s280 = sadd.s32 %s279, %s277
        %s281 = smul.addr %s280, 4
        %s282 = scalar_lea.vmem %s0, %s281
        %s283 = smul.u32 2, %s19
        %s284 = smul.u32 2, %s21
        %p285 = scmp.lt.s32.totalorder %s20, 1
        %s286 = scalar_select %p285, %s20, 1
        %s287 = smul.addr %s286, 2
        %s288 = scalar_lea.vmem %s2, %s287
        %s289 = smul.u32 2, %s19
        %p291 = scmp.eq.s32.totalorder %s21, 0
        // Predicated region
        $region74: #{vae_forward.11} parent=68 // pred_check
          %p292 = pneg %p291
        $region75: #{vae_forward.11} parent=68 // pred_check_branch
          %294 = sbr.rel (%p292) target = $region77
        $region76: #{vae_forward.11} parent=68 // pred_region
          %295 = vst [vmem:[#allocation2] sm:$0xff] 0.0
          %296 = vst [vmem:[#allocation2 + $0x8] sm:$0xff] 0.0
        $region77: #{vae_forward.11} parent=68 // pred_fallthru
          _
        %v297 = vld [vmem:[#allocation2] sm:$0xff]
        %v298 = vld [vmem:[#allocation2 + $0x8] sm:$0xff]
        %v299 = vld [vmem:[%s282] sm:$0xf]
        %v300 = vld [vmem:[%s282 + $0x4] sm:$0xf]
        %v301 = vld [vmem:[%s243] sm:$0xf]
        %v302 = vld [vmem:[%s243 + $0x4] sm:$0xf]
        %v305 = vunpack.c.l.b16 %v299
        %v306 = vunpack.c.l.b16 %v300
        %v307 = vpack.c.b16 %v306, %v305
        %v310 = vunpack.c.l.b16 %v301
        %v311 = vunpack.c.l.b16 %v302
        %v312 = vpack.c.b16 %v311, %v310
        %vm314 = vcmask 130048
        %v316 = vsel %vm314, %v307, 0
        %318 = vmatpush.bf16.msra.mxu0 0
        %319 = vmatpush.bf16.msra.mxu0 0
        %320 = vmatpush.bf16.msra.mxu0 0
        %321 = vmatpush.bf16.msra.mxu0 0
        %322 = vmatpush.bf16.msra.mxu0 0
        %323 = vmatpush.bf16.msra.mxu0 0
        %324 = vmatpush.bf16.msra.mxu0 0
        %325 = vmatpush.bf16.msra.mxu0 %v312
        %326 = vmatmul.bf16.gmra.mxu0 %v316
        %v327 = vpop.f32.mrf.mxu0
        %v328 = vadd.f32 0.0, %v327
        %v329 = vpop.f32.mrf.mxu0
        %v330 = vadd.f32 0.0, %v329
        %331 = vdwg.mxu0
        %v332 = vadd.f32 %v297, %v328
        %v333 = vadd.f32 %v298, %v330
        %334 = vst [vmem:[#allocation2] sm:$0xff] %v332
        %335 = vst [vmem:[#allocation2 + $0x8] sm:$0xff] %v333
        // Predicated region
        $region78: #{vae_forward.11} parent=68 // pred_check
          %p336 = pneg %p291
        $region79: #{vae_forward.11} parent=68 // pred_check_branch
          %338 = sbr.rel (%p336) target = $region81
        $region80: #{vae_forward.11} parent=68 // pred_region
          %v339 = vld [vmem:[#allocation2] sm:$0xff]
          %v340 = vld [vmem:[#allocation2 + $0x8] sm:$0xff]
          %v341 = vld [vmem:[%s288] sm:$0x1]
          %v342 = vperm.slane %v341, 0
          %v343 = vmul.f32 %v339, %v342
          %v344 = vmul.f32 %v340, %v342
          %v345 = vld [vmem:[%s288 + $0x1] sm:$0x1]
          %v346 = vperm.slane %v345, 0
          %v347 = vadd.f32 %v343, %v346
          %v348 = vadd.f32 %v344, %v346
          %v349 = vpack.c.bf16 %v347, %v347
          %v350 = vpack.c.bf16 %v348, %v348
          %351 = vst [vmem:[%s274] sm:$0xf] %v349
          %352 = vst [vmem:[%s274 + $0x4] sm:$0xf] %v350
        $region81: #{vae_forward.11} parent=68 // pred_fallthru
          _
        %s353 = sand.u32 %s125, 1
        %s354 = sand.u32 %s125, 1
        %s355 = smul.addr %s354, 8
        %s356 = scalar_lea.vmem [#allocation4], %s355
        // Predicated region
        $region82: #{vae_forward.11} parent=68 // pred_check
          %p357 = pneg %p135
        $region83: #{vae_forward.11} parent=68 // pred_check_branch
          %359 = sbr.rel (%p357) target = $region85
        $region84: #{vae_forward.11} parent=68 // pred_region
          %s360 = smul.u32 2, %s19
          %s361 = smul.addr %s360, 2
          %s362 = sadd.s32 %s20, %s361
          %s363 = smul.addr %s362, 4
          %s364 = scalar_lea.vmem %s3, %s363
          // Predicated region
          $region86: #{vae_forward.11} parent=84 // pred_check
            _
          $region87: #{vae_forward.11} parent=84 // pred_check_branch
            %366 = sbr.rel (0) target = $region89
          $region88: #{vae_forward.11} parent=84 // pred_region
            // Predicated region
            $region90: #{vae_forward.11} parent=88 // pred_check
              _
            $region91: #{vae_forward.11} parent=88 // pred_check_branch
              %368 = sbr.rel target = $region93
            $region92: #{vae_forward.11} parent=88 // pred_region
              // Predicated region
              $region105: #{vae_forward.11} parent=92 // pred_check
                _
              $region106: #{vae_forward.11} parent=92 // pred_check_branch
                %386 = sbr.rel (0) target = $region108
              $region107: #{vae_forward.11} parent=92 // pred_region
                loop: start=0, step=1, limit=1
                $region109: #{vae_forward.11} parent=107 // loop_pre_header
                  _
                $region110: #{vae_forward.11} parent=107 // loop_header
                  %s388 = sphi 0, %s392
                  %p389 = scmp.ge.s32.totalorder %s388, 1
                  %s393 = sphi %s356, %s356
                  %s394 = sphi %s364, %s364
                $region111: #{vae_forward.11} parent=107 // loop_header_branch
                  %391 = sbr.rel (%p389) target = $region115
                $region112: #{vae_forward.11} parent=107 // loop_body
                  _
                $region113: #{vae_forward.11} parent=107 // loop_footer
                  %s392 = sadd.s32 1, %s388
                $region114: #{vae_forward.11} parent=107 // loop_footer_branch
                  %387 = sbr.rel target = $region110
                $region115: #{vae_forward.11} parent=107 // loop_exit
                  _
                %s396 = ssub.s32 16, 1
                loop: start=0, step=1, limit=1
                $region116: #{vae_forward.11} parent=107 // loop_pre_header
                  _
                $region117: #{vae_forward.11} parent=107 // loop_header
                  %s398 = sphi 0, %s402
                  %p399 = scmp.ge.s32.totalorder %s398, 1
                  %s403 = sphi %s356, %s356
                  %s404 = sphi %s364, %s364
                $region118: #{vae_forward.11} parent=107 // loop_header_branch
                  %401 = sbr.rel (%p399) target = $region122
                $region119: #{vae_forward.11} parent=107 // loop_body
                  %v405 = vld [vmem:[%s403] sm:%s396]
                  %406 = vst [vmem:[%s404] sm:%s396] %v405
                  %v407 = vld [vmem:[%s403 + $0x4] sm:%s396]
                  %408 = vst [vmem:[%s404 + $0x8] sm:%s396] %v407
                $region120: #{vae_forward.11} parent=107 // loop_footer
                  %s402 = sadd.s32 1, %s398
                $region121: #{vae_forward.11} parent=107 // loop_footer_branch
                  %397 = sbr.rel target = $region117
                $region122: #{vae_forward.11} parent=107 // loop_exit
                  _
              $region108: #{vae_forward.11} parent=92 // pred_fallthru
                _
            $region93: #{vae_forward.11} parent=88 // pred_fallthru
              _
            // Predicated region
            $region94: #{vae_forward.11} parent=88 // pred_check
              _
            $region95: #{vae_forward.11} parent=88 // pred_check_branch
              %370 = sbr.rel (0) target = $region97
            $region96: #{vae_forward.11} parent=88 // pred_region
              %s372 = ssub.s32 16, 1
              loop: start=0, step=1, limit=1
              $region98: #{vae_forward.11} parent=96 // loop_pre_header
                _
              $region99: #{vae_forward.11} parent=96 // loop_header
                %s374 = sphi 0, %s378
                %p375 = scmp.ge.s32.totalorder %s374, 1
                %s379 = sphi %s356, %s356
                %s380 = sphi %s364, %s364
              $region100: #{vae_forward.11} parent=96 // loop_header_branch
                %377 = sbr.rel (%p375) target = $region104
              $region101: #{vae_forward.11} parent=96 // loop_body
                %v381 = vld [vmem:[%s379] sm:%s372]
                %382 = vst [vmem:[%s380] sm:%s372] %v381
                %v383 = vld [vmem:[%s379 + $0x4] sm:%s372]
                %384 = vst [vmem:[%s380 + $0x8] sm:%s372] %v383
              $region102: #{vae_forward.11} parent=96 // loop_footer
                %s378 = sadd.s32 1, %s374
              $region103: #{vae_forward.11} parent=96 // loop_footer_branch
                %373 = sbr.rel target = $region99
              $region104: #{vae_forward.11} parent=96 // loop_exit
                _
            $region97: #{vae_forward.11} parent=88 // pred_fallthru
              _
          $region89: #{vae_forward.11} parent=84 // pred_fallthru
            _
          %409 = vnop
        $region85: #{vae_forward.11} parent=68 // pred_fallthru
          _
      $region69: #{vae_forward.11} parent=5 // pred_fallthru
        _
      %p410 = scmp.le.s32.totalorder 2, %s9
      // Predicated region
      $region123: #{vae_forward.11} parent=5 // pred_check
        %p411 = pneg %p410
      $region124: #{vae_forward.11} parent=5 // pred_check_branch
        %413 = sbr.rel (%p411) target = $region126
      $region125: #{vae_forward.11} parent=5 // pred_region
        %s414 = ssub.s32 %s9, 2
        // Predicated region
        $region127: #{vae_forward.11} parent=125 // pred_check
          %p415 = pneg %p141
        $region128: #{vae_forward.11} parent=125 // pred_check_branch
          %417 = sbr.rel (%p415) target = $region130
        $region129: #{vae_forward.11} parent=125 // pred_region
          %s418 = sand.u32 %s126, 1
          %s419 = sand.u32 %s126, 1
          %s420 = smul.addr %s419, 8
          %s421 = scalar_lea.vmem [#allocation4], %s420
        $region130: #{vae_forward.11} parent=125 // pred_fallthru
          _
      $region126: #{vae_forward.11} parent=5 // pred_fallthru
        _
    $region6: #{vae_forward.11} parent=1 // loop_footer
      %s13 = sadd.s32 1, %s9
    $region7: #{vae_forward.11} parent=1 // loop_footer_branch
      %8 = sbr.rel target = $region3
    $region8: #{vae_forward.11} parent=1 // loop_exit
      _

// kernel: vae_forward.12
$region0: #{vae_forward.12}
  #allocation0 [shape = 'u32[]', space=smem, size = 0x4, offset = 0x4, fixed_abs, tag = 'smem constant byte address 0x4 - core index']
  #allocation1 [shape = 'u32[72,128]{1,0:T(1,128)}', space=vmem, size = 0x9000, scoped, tag = 'internal scratch']
  #allocation2 [shape = 'f32[16,128]{1,0:T(8,128)}', space=vmem, size = 0x2000, scoped, tag = 'scratch operand']
  %s0 = inlined_call_operand.vmem [shape: bf16[32,64], index: 0, kind: input, shape index: {}]
  %s1 = inlined_call_operand.vmem [shape: bf16[64,128], index: 1, kind: input, shape index: {}]
  %s2 = inlined_call_operand.vmem [shape: f32[2,128], index: 2, kind: input, shape index: {}]
  %s3 = inlined_call_operand.vmem [shape: bf16[32,128], index: 3, kind: output, shape index: {}]
  %s4 = sld [smem:[#allocation0]]
  $region53: #{vae_forward.12} parent=0
    _
  %s6 = ssub.s32 1, %s4
  %s7 = scalar_select 0, %s6, %s4
  loop: start=0, step=1, limit=4
  $region2: #{vae_forward.12} parent=0 // loop_pre_header
    _
  $region3: #{vae_forward.12} parent=0 // loop_header
    %s9 = sphi 0, %s13
    %p10 = scmp.ge.s32.totalorder %s9, 4
    %s16 = sphi 0, %s35
    %s17 = sphi 0, %s31
    %s18 = sphi 0, %s27
    %s19 = sphi 0, %s16
    %s20 = sphi 0, %s17
    %s21 = sphi 0, %s18
    %s22 = sphi 0, %s19
    %s23 = sphi 0, %s20
    %s24 = sphi 0, %s21
    %s40 = sphi 0, %s42
    %s43 = sphi 0, %s40
    %s44 = sphi 0, %s43
    %s60 = sphi 0, %s44
    %s68 = sphi 0, %s70
    %s71 = sphi 0, %s68
    %s72 = sphi 0, %s71
    %s88 = sphi 0, %s72
    %s94 = sphi 0, %s96
    %s97 = sphi 0, %s94
    %s98 = sphi 0, %s97
    %s114 = sphi 0, %s98
    %s122 = sphi 0, %s124
    %s125 = sphi 0, %s122
    %s126 = sphi 0, %s125
    %s142 = sphi 0, %s126
  $region4: #{vae_forward.12} parent=0 // loop_header_branch
    %12 = sbr.rel (%p10) target = $region8
  $region5: #{vae_forward.12} parent=0 // loop_body
    %s14 = ssub.s32 %s9, 1
    %s15 = ssub.s32 %s9, 2
    %s25 = sadd.s32 1, %s18
    %p26 = scmp.ge.s32.totalorder %s25, 1
    %s27 = scalar_select %p26, 0, %s25
    %s28 = sadd.s32 1, %s17
    %s29 = scalar_select %p26, %s28, %s17
    %p30 = scmp.ge.s32.totalorder %s29, 1
    %s31 = scalar_select %p30, 0, %s29
    %s32 = sadd.s32 1, %s16
    %s33 = scalar_select %p30, %s32, %s16
    %p34 = scmp.ge.s32.totalorder %s33, 2
    %s35 = scalar_select %p34, 0, %s33
    %s36 = ssub.s32 %s16, %s35
    %s37 = ssub.s32 %s18, %s27
    %s38 = sor.u32 %s36, %s37
    %p39 = scmp.eq.s32.totalorder %s38, 0
    %s41 = sadd.s32 %s40, 1
    %s42 = scalar_select %p39, %s40, %s41
    %p45 = pneg %p39
    %p46 = scmp.eq.s32.totalorder %s9, 1
    %p47 = por %p45, %p46
    %p48 = scmp.ne.s32.totalorder %s40, %s43
    %p49 = scmp.eq.s32.totalorder %s9, 0
    %p50 = por %p48, %p49
    %p51 = scmp.ne.s32.totalorder %s40, %s43
    %p52 = scmp.eq.s32.totalorder %s14, 1
    %p53 = por %p51, %p52
    %p54 = scmp.ne.s32.totalorder %s43, %s44
    %p55 = scmp.eq.s32.totalorder %s14, 0
    %p56 = por %p54, %p55
    %p57 = scmp.ne.s32.totalorder %s43, %s44
    %p58 = scmp.eq.s32.totalorder %s15, 1
    %p59 = por %p57, %p58
    %p61 = scmp.ne.s32.totalorder %s44, %s60
    %p62 = scmp.eq.s32.totalorder %s15, 0
    %p63 = por %p61, %p62
    %s64 = ssub.s32 %s18, %s27
    %s65 = ssub.s32 %s17, %s31
    %s66 = sor.u32 %s64, %s65
    %p67 = scmp.eq.s32.totalorder %s66, 0
    %s69 = sadd.s32 %s68, 1
    %s70 = scalar_select %p67, %s68, %s69
    %p73 = pneg %p67
    %p74 = scmp.eq.s32.totalorder %s9, 1
    %p75 = por %p73, %p74
    %p76 = scmp.ne.s32.totalorder %s68, %s71
    %p77 = scmp.eq.s32.totalorder %s9, 0
    %p78 = por %p76, %p77
    %p79 = scmp.ne.s32.totalorder %s68, %s71
    %p80 = scmp.eq.s32.totalorder %s14, 1
    %p81 = por %p79, %p80
    %p82 = scmp.ne.s32.totalorder %s71, %s72
    %p83 = scmp.eq.s32.totalorder %s14, 0
    %p84 = por %p82, %p83
    %p85 = scmp.ne.s32.totalorder %s71, %s72
    %p86 = scmp.eq.s32.totalorder %s15, 1
    %p87 = por %p85, %p86
    %p89 = scmp.ne.s32.totalorder %s72, %s88
    %p90 = scmp.eq.s32.totalorder %s15, 0
    %p91 = por %p89, %p90
    %s92 = ssub.s32 %s17, %s31
    %p93 = scmp.eq.s32.totalorder %s92, 0
    %s95 = sadd.s32 %s94, 1
    %s96 = scalar_select %p93, %s94, %s95
    %p99 = pneg %p93
    %p100 = scmp.eq.s32.totalorder %s9, 1
    %p101 = por %p99, %p100
    %p102 = scmp.ne.s32.totalorder %s94, %s97
    %p103 = scmp.eq.s32.totalorder %s9, 0
    %p104 = por %p102, %p103
    %p105 = scmp.ne.s32.totalorder %s94, %s97
    %p106 = scmp.eq.s32.totalorder %s14, 1
    %p107 = por %p105, %p106
    %p108 = scmp.ne.s32.totalorder %s97, %s98
    %p109 = scmp.eq.s32.totalorder %s14, 0
    %p110 = por %p108, %p109
    %p111 = scmp.ne.s32.totalorder %s97, %s98
    %p112 = scmp.eq.s32.totalorder %s15, 1
    %p113 = por %p111, %p112
    %p115 = scmp.ne.s32.totalorder %s98, %s114
    %p116 = scmp.eq.s32.totalorder %s15, 0
    %p117 = por %p115, %p116
    %s118 = ssub.s32 %s16, %s35
    %s119 = ssub.s32 %s17, %s31
    %s120 = sor.u32 %s118, %s119
    %p121 = scmp.eq.s32.totalorder %s120, 0
    %s123 = sadd.s32 %s122, 1
    %s124 = scalar_select %p121, %s122, %s123
    %p127 = pneg %p121
    %p128 = scmp.eq.s32.totalorder %s9, 1
    %p129 = por %p127, %p128
    %p130 = scmp.ne.s32.totalorder %s122, %s125
    %p131 = scmp.eq.s32.totalorder %s9, 0
    %p132 = por %p130, %p131
    %p133 = scmp.ne.s32.totalorder %s122, %s125
    %p134 = scmp.eq.s32.totalorder %s14, 1
    %p135 = por %p133, %p134
    %p136 = scmp.ne.s32.totalorder %s125, %s126
    %p137 = scmp.eq.s32.totalorder %s14, 0
    %p138 = por %p136, %p137
    %p139 = scmp.ne.s32.totalorder %s125, %s126
    %p140 = scmp.eq.s32.totalorder %s15, 1
    %p141 = por %p139, %p140
    %p143 = scmp.ne.s32.totalorder %s126, %s142
    %p144 = scmp.eq.s32.totalorder %s15, 0
    %p145 = por %p143, %p144
    %p146 = scmp.le.s32.totalorder 1, %s9
    %p147 = scmp.lt.s32.totalorder %s9, 3
    %p148 = pnand %p146, %p147
    %p149 = pneg %p148
    // Predicated region
    $region9: #{vae_forward.12} parent=5 // pred_check
      _
    $region10: #{vae_forward.12} parent=5 // pred_check_branch
      %151 = sbr.rel (%p148) target = $region12
    $region11: #{vae_forward.12} parent=5 // pred_region
      %s152 = ssub.s32 %s9, 1
      // Predicated region
      $region13: #{vae_forward.12} parent=11 // pred_check
        %p153 = pneg %p84
      $region14: #{vae_forward.12} parent=11 // pred_check_branch
        %155 = sbr.rel (%p153) target = $region16
      $region15: #{vae_forward.12} parent=11 // pred_region
        %s156 = smul.u32 8, %s21
        %p157 = scmp.lt.s32.totalorder %s156, 7
        %s158 = scalar_select %p157, %s156, 7
        %p159 = scmp.lt.s32.totalorder %s20, 0
        %s160 = scalar_select %p159, %s20, 0
        %s161 = sadd.s32 %s160, %s158
        %s162 = smul.addr %s161, 4
        %s163 = scalar_lea.vmem %s1, %s162
        %s164 = smul.u32 8, %s21
      $region16: #{vae_forward.12} parent=11 // pred_fallthru
        _
      // Predicated region
      $region17: #{vae_forward.12} parent=11 // pred_check
        %p165 = pneg %p110
      $region18: #{vae_forward.12} parent=11 // pred_check_branch
        %167 = sbr.rel (%p165) target = $region20
      $region19: #{vae_forward.12} parent=11 // pred_region
        %p168 = scmp.lt.s32.totalorder %s20, 0
        %s169 = scalar_select %p168, %s20, 0
        %s170 = smul.addr %s169, 2
        %s171 = scalar_lea.vmem %s2, %s170
      $region20: #{vae_forward.12} parent=11 // pred_fallthru
        _
    $region12: #{vae_forward.12} parent=5 // pred_fallthru
      _
    %p172 = scmp.lt.s32.totalorder %s9, 2
    // Predicated region
    $region21: #{vae_forward.12} parent=5 // pred_check
      %p173 = pneg %p172
    $region22: #{vae_forward.12} parent=5 // pred_check_branch
      %175 = sbr.rel (%p173) target = $region24
    $region23: #{vae_forward.12} parent=5 // pred_region
      // Predicated region
      $region25: #{vae_forward.12} parent=23 // pred_check
        %p176 = pneg %p50
      $region26: #{vae_forward.12} parent=23 // pred_check_branch
        %178 = sbr.rel (%p176) target = $region28
      $region27: #{vae_forward.12} parent=23 // pred_region
        %s179 = smul.u32 2, %s16
        %p180 = scmp.lt.s32.totalorder %s179, 3
        %s181 = scalar_select %p180, %s179, 3
        %p182 = scmp.lt.s32.totalorder %s18, 0
        %s183 = scalar_select %p182, %s18, 0
        %s184 = sadd.s32 %s183, %s181
        %s185 = smul.addr %s184, 4
        %s186 = scalar_lea.vmem %s0, %s185
        %s187 = smul.u32 2, %s16
      $region28: #{vae_forward.12} parent=23 // pred_fallthru
        _
    $region24: #{vae_forward.12} parent=5 // pred_fallthru
      _
    %p188 = scmp.le.s32.totalorder 1, %s9
    %p189 = scmp.lt.s32.totalorder %s9, 3
    %p190 = pnand %p188, %p189
    %p191 = pneg %p190
    // Predicated region
    $region29: #{vae_forward.12} parent=5 // pred_check
      _
    $region30: #{vae_forward.12} parent=5 // pred_check_branch
      %193 = sbr.rel (%p190) target = $region32
    $region31: #{vae_forward.12} parent=5 // pred_region
      %s194 = ssub.s32 %s9, 1
      %s195 = smul.u32 2, %s19
      %p196 = scmp.lt.s32.totalorder %s195, 3
      %s197 = scalar_select %p196, %s195, 3
      %p198 = scmp.lt.s32.totalorder %s21, 0
      %s199 = scalar_select %p198, %s21, 0
      %s200 = sadd.s32 %s199, %s197
      %s201 = smul.addr %s200, 4
      %s202 = scalar_lea.vmem %s0, %s201
      %p203 = pneg %p56
      %p204 = pneg %p53
      %s205 = smul.u32 8, %s21
      %p206 = scmp.lt.s32.totalorder %s205, 7
      %s207 = scalar_select %p206, %s205, 7
      %p208 = scmp.lt.s32.totalorder %s20, 0
      %s209 = scalar_select %p208, %s20, 0
      %s210 = sadd.s32 %s209, %s207
      %s211 = smul.addr %s210, 4
      %s212 = scalar_lea.vmem %s1, %s211
      %p213 = pneg %p84
      %p214 = pneg %p81
      %p215 = scmp.lt.s32.totalorder %s20, 0
      %s216 = scalar_select %p215, %s20, 0
      %s217 = smul.addr %s216, 2
      %s218 = scalar_lea.vmem %s2, %s217
      %p219 = pneg %p110
      %p220 = pneg %p107
      %p221 = pneg %p138
      %p222 = pneg %p135
      %s223 = smul.u32 2, %s19
      %p224 = scmp.lt.s32.totalorder %s223, 3
      %s225 = scalar_select %p224, %s223, 3
      %p226 = scmp.lt.s32.totalorder %s20, 0
      %s227 = scalar_select %p226, %s20, 0
      %s228 = sadd.s32 %s227, %s225
      %s229 = smul.addr %s228, 4
      %s230 = scalar_lea.vmem %s3, %s229
      %s231 = smul.u32 2, %s19
      %p232 = scmp.lt.s32.totalorder %s231, 3
      %s233 = scalar_select %p232, %s231, 3
      %p234 = scmp.lt.s32.totalorder %s21, 0
      %s235 = scalar_select %p234, %s21, 0
      %s236 = sadd.s32 %s235, %s233
      %s237 = smul.addr %s236, 4
      %s238 = scalar_lea.vmem %s0, %s237
      %s239 = smul.u32 2, %s19
      %s240 = smul.u32 8, %s21
      %p241 = scmp.lt.s32.totalorder %s240, 7
      %s242 = scalar_select %p241, %s240, 7
      %p243 = scmp.lt.s32.totalorder %s20, 0
      %s244 = scalar_select %p243, %s20, 0
      %s245 = sadd.s32 %s244, %s242
      %s246 = smul.addr %s245, 4
      %s247 = scalar_lea.vmem %s1, %s246
      %s248 = smul.u32 8, %s21
      %p249 = scmp.lt.s32.totalorder %s20, 0
      %s250 = scalar_select %p249, %s20, 0
      %s251 = smul.addr %s250, 2
      %s252 = scalar_lea.vmem %s2, %s251
      %s253 = smul.u32 2, %s19
      %p254 = scmp.lt.s32.totalorder %s253, 3
      %s255 = scalar_select %p254, %s253, 3
      %p256 = scmp.lt.s32.totalorder %s20, 0
      %s257 = scalar_select %p256, %s20, 0
      %s258 = sadd.s32 %s257, %s255
      %s259 = smul.addr %s258, 4
      %s260 = scalar_lea.vmem %s3, %s259
      %s261 = smul.u32 2, %s19
      %p263 = scmp.eq.s32.totalorder %s21, 0
      // Predicated region
      $region33: #{vae_forward.12} parent=31 // pred_check
        %p264 = pneg %p263
      $region34: #{vae_forward.12} parent=31 // pred_check_branch
        %266 = sbr.rel (%p264) target = $region36
      $region35: #{vae_forward.12} parent=31 // pred_region
        %267 = vst [vmem:[#allocation2] sm:$0xff] 0.0
        %268 = vst [vmem:[#allocation2 + $0x8] sm:$0xff] 0.0
      $region36: #{vae_forward.12} parent=31 // pred_fallthru
        _
      %v269 = vld [vmem:[#allocation2] sm:$0xff]
      %v270 = vld [vmem:[#allocation2 + $0x8] sm:$0xff]
      %v271 = vld [vmem:[%s238] sm:$0xf]
      %v272 = vld [vmem:[%s238 + $0x4] sm:$0xf]
      %v273 = vld [vmem:[%s247] sm:$0xf]
      %v274 = vld [vmem:[%s247 + $0x4] sm:$0xf]
      %v275 = vld [vmem:[%s247 + $0x8] sm:$0xf]
      %v276 = vld [vmem:[%s247 + $0xc] sm:$0xf]
      %v277 = vld [vmem:[%s247 + $0x10] sm:$0xf]
      %v278 = vld [vmem:[%s247 + $0x14] sm:$0xf]
      %v279 = vld [vmem:[%s247 + $0x18] sm:$0xf]
      %v280 = vld [vmem:[%s247 + $0x1c] sm:$0xf]
      %v283 = vunpack.c.l.b16 %v271
      %v284 = vunpack.c.l.b16 %v272
      %v285 = vpack.c.b16 %v284, %v283
      %v294 = vunpack.c.l.b16 %v273
      %v295 = vunpack.c.l.b16 %v274
      %v296 = vunpack.c.l.b16 %v275
      %v297 = vunpack.c.l.b16 %v276
      %v298 = vunpack.c.l.b16 %v277
      %v299 = vunpack.c.l.b16 %v278
      %v300 = vunpack.c.l.b16 %v279
      %v301 = vunpack.c.l.b16 %v280
      %v302 = vpack.c.b16 %v295, %v294
      %v303 = vpack.c.b16 %v297, %v296
      %v304 = vpack.c.b16 %v299, %v298
      %v305 = vpack.c.b16 %v301, %v300
      %vm310 = vcmask 523264
      %v312 = vsel %vm310, %v285, 0
      %314 = vmatpush.bf16.msra.mxu0 0
      %315 = vmatpush.bf16.msra.mxu0 0
      %316 = vmatpush.bf16.msra.mxu0 0
      %317 = vmatpush.bf16.msra.mxu0 0
      %318 = vmatpush.bf16.msra.mxu0 %v305
      %319 = vmatpush.bf16.msra.mxu0 %v304
      %320 = vmatpush.bf16.msra.mxu0 %v303
      %321 = vmatpush.bf16.msra.mxu0 %v302
      %322 = vmatmul.bf16.gmra.mxu0 %v312
      %v323 = vpop.f32.mrf.mxu0
      %v324 = vadd.f32 0.0, %v323
      %v325 = vpop.f32.mrf.mxu0
      %v326 = vadd.f32 0.0, %v325
      %327 = vdwg.mxu0
      %v328 = vadd.f32 %v269, %v324
      %v329 = vadd.f32 %v270, %v326
      %330 = vst [vmem:[#allocation2] sm:$0xff] %v328
      %331 = vst [vmem:[#allocation2 + $0x8] sm:$0xff] %v329
      // Predicated region
      $region37: #{vae_forward.12} parent=31 // pred_check
        %p332 = pneg %p263
      $region38: #{vae_forward.12} parent=31 // pred_check_branch
        %334 = sbr.rel (%p332) target = $region40
      $region39: #{vae_forward.12} parent=31 // pred_region
        %v335 = vld [vmem:[#allocation2] sm:$0xff]
        %v336 = vld [vmem:[#allocation2 + $0x8] sm:$0xff]
        %v337 = vld [vmem:[%s252] sm:$0x1]
        %v338 = vperm.slane %v337, 0
        %v339 = vmul.f32 %v335, %v338
        %v340 = vmul.f32 %v336, %v338
        %v341 = vld [vmem:[%s252 + $0x1] sm:$0x1]
        %v342 = vperm.slane %v341, 0
        %v343 = vadd.f32 %v339, %v342
        %v344 = vadd.f32 %v340, %v342
        %vm345 = vcmp.gt.f32.partialorder %v343, 0.0
        %vm346 = vcmp.gt.f32.partialorder %v344, 0.0
        %v347 = vmul.f32 %v343, 0.01
        %v348 = vmul.f32 %v344, 0.01
        %v349 = vsel %vm345, %v343, %v347
        %v350 = vsel %vm346, %v344, %v348
        %v351 = vpack.c.bf16 %v349, %v349
        %v352 = vpack.c.bf16 %v350, %v350
        %353 = vst [vmem:[%s260] sm:$0xf] %v351
        %354 = vst [vmem:[%s260 + $0x4] sm:$0xf] %v352
      $region40: #{vae_forward.12} parent=31 // pred_fallthru
        _
      %s355 = smul.u32 2, %s19
      %p356 = scmp.lt.s32.totalorder %s355, 3
      %s357 = scalar_select %p356, %s355, 3
      %p358 = scmp.lt.s32.totalorder %s20, 0
      %s359 = scalar_select %p358, %s20, 0
      %s360 = sadd.s32 %s359, %s357
      %s361 = smul.addr %s360, 4
      %s362 = scalar_lea.vmem %s3, %s361
      // Predicated region
      $region41: #{vae_forward.12} parent=31 // pred_check
        %p363 = pneg %p135
      $region42: #{vae_forward.12} parent=31 // pred_check_branch
        %365 = sbr.rel (%p363) target = $region44
      $region43: #{vae_forward.12} parent=31 // pred_region
        %s366 = smul.u32 2, %s19
      $region44: #{vae_forward.12} parent=31 // pred_fallthru
        _
    $region32: #{vae_forward.12} parent=5 // pred_fallthru
      _
    %p367 = scmp.le.s32.totalorder 2, %s9
    // Predicated region
    $region45: #{vae_forward.12} parent=5 // pred_check
      %p368 = pneg %p367
    $region46: #{vae_forward.12} parent=5 // pred_check_branch
      %370 = sbr.rel (%p368) target = $region48
    $region47: #{vae_forward.12} parent=5 // pred_region
      %s371 = ssub.s32 %s9, 2
      // Predicated region
      $region49: #{vae_forward.12} parent=47 // pred_check
        %p372 = pneg %p141
      $region50: #{vae_forward.12} parent=47 // pred_check_branch
        %374 = sbr.rel (%p372) target = $region52
      $region51: #{vae_forward.12} parent=47 // pred_region
        %s375 = smul.u32 2, %s22
        %p376 = scmp.lt.s32.totalorder %s375, 3
        %s377 = scalar_select %p376, %s375, 3
        %p378 = scmp.lt.s32.totalorder %s23, 0
        %s379 = scalar_select %p378, %s23, 0
        %s380 = sadd.s32 %s379, %s377
        %s381 = smul.addr %s380, 4
        %s382 = scalar_lea.vmem %s3, %s381
      $region52: #{vae_forward.12} parent=47 // pred_fallthru
        _
    $region48: #{vae_forward.12} parent=5 // pred_fallthru
      _
  $region6: #{vae_forward.12} parent=0 // loop_footer
    %s13 = sadd.s32 1, %s9
  $region7: #{vae_forward.12} parent=0 // loop_footer_branch
    %8 = sbr.rel target = $region3
  $region8: #{vae_forward.12} parent=0 // loop_exit
    _

// kernel: vae_forward.13
$region0: #{vae_forward.13}
  #allocation0 [shape = 'u32[]', space=smem, size = 0x4, offset = 0x4, fixed_abs, tag = 'smem constant byte address 0x4 - core index']
  #allocation1 [shape = 'u32[72,128]{1,0:T(1,128)}', space=vmem, size = 0x9000, scoped, tag = 'internal scratch']
  #allocation2 [shape = 'f32[64,128]{1,0:T(8,128)}', space=vmem, size = 0x8000, scoped, tag = 'scratch operand']
  %s0 = inlined_call_operand.vmem [shape: bf16[128,32], index: 0, kind: input, shape index: {}]
  %s1 = inlined_call_operand.vmem [shape: bf16[32,128], index: 1, kind: input, shape index: {}]
  %s2 = inlined_call_operand.vmem [shape: f32[2,128], index: 2, kind: input, shape index: {}]
  %s3 = inlined_call_operand.vmem [shape: bf16[128,128], index: 3, kind: output, shape index: {}]
  %s4 = sld [smem:[#allocation0]]
  $region53: #{vae_forward.13} parent=0
    _
  %s6 = ssub.s32 1, %s4
  %s7 = scalar_select 0, %s6, %s4
  loop: start=0, step=1, limit=4
  $region2: #{vae_forward.13} parent=0 // loop_pre_header
    _
  $region3: #{vae_forward.13} parent=0 // loop_header
    %s9 = sphi 0, %s13
    %p10 = scmp.ge.s32.totalorder %s9, 4
    %s16 = sphi 0, %s35
    %s17 = sphi 0, %s31
    %s18 = sphi 0, %s27
    %s19 = sphi 0, %s16
    %s20 = sphi 0, %s17
    %s21 = sphi 0, %s18
    %s22 = sphi 0, %s19
    %s23 = sphi 0, %s20
    %s24 = sphi 0, %s21
    %s40 = sphi 0, %s42
    %s43 = sphi 0, %s40
    %s44 = sphi 0, %s43
    %s60 = sphi 0, %s44
    %s68 = sphi 0, %s70
    %s71 = sphi 0, %s68
    %s72 = sphi 0, %s71
    %s88 = sphi 0, %s72
    %s94 = sphi 0, %s96
    %s97 = sphi 0, %s94
    %s98 = sphi 0, %s97
    %s114 = sphi 0, %s98
    %s122 = sphi 0, %s124
    %s125 = sphi 0, %s122
    %s126 = sphi 0, %s125
    %s142 = sphi 0, %s126
  $region4: #{vae_forward.13} parent=0 // loop_header_branch
    %12 = sbr.rel (%p10) target = $region8
  $region5: #{vae_forward.13} parent=0 // loop_body
    %s14 = ssub.s32 %s9, 1
    %s15 = ssub.s32 %s9, 2
    %s25 = sadd.s32 1, %s18
    %p26 = scmp.ge.s32.totalorder %s25, 1
    %s27 = scalar_select %p26, 0, %s25
    %s28 = sadd.s32 1, %s17
    %s29 = scalar_select %p26, %s28, %s17
    %p30 = scmp.ge.s32.totalorder %s29, 1
    %s31 = scalar_select %p30, 0, %s29
    %s32 = sadd.s32 1, %s16
    %s33 = scalar_select %p30, %s32, %s16
    %p34 = scmp.ge.s32.totalorder %s33, 2
    %s35 = scalar_select %p34, 0, %s33
    %s36 = ssub.s32 %s16, %s35
    %s37 = ssub.s32 %s18, %s27
    %s38 = sor.u32 %s36, %s37
    %p39 = scmp.eq.s32.totalorder %s38, 0
    %s41 = sadd.s32 %s40, 1
    %s42 = scalar_select %p39, %s40, %s41
    %p45 = pneg %p39
    %p46 = scmp.eq.s32.totalorder %s9, 1
    %p47 = por %p45, %p46
    %p48 = scmp.ne.s32.totalorder %s40, %s43
    %p49 = scmp.eq.s32.totalorder %s9, 0
    %p50 = por %p48, %p49
    %p51 = scmp.ne.s32.totalorder %s40, %s43
    %p52 = scmp.eq.s32.totalorder %s14, 1
    %p53 = por %p51, %p52
    %p54 = scmp.ne.s32.totalorder %s43, %s44
    %p55 = scmp.eq.s32.totalorder %s14, 0
    %p56 = por %p54, %p55
    %p57 = scmp.ne.s32.totalorder %s43, %s44
    %p58 = scmp.eq.s32.totalorder %s15, 1
    %p59 = por %p57, %p58
    %p61 = scmp.ne.s32.totalorder %s44, %s60
    %p62 = scmp.eq.s32.totalorder %s15, 0
    %p63 = por %p61, %p62
    %s64 = ssub.s32 %s18, %s27
    %s65 = ssub.s32 %s17, %s31
    %s66 = sor.u32 %s64, %s65
    %p67 = scmp.eq.s32.totalorder %s66, 0
    %s69 = sadd.s32 %s68, 1
    %s70 = scalar_select %p67, %s68, %s69
    %p73 = pneg %p67
    %p74 = scmp.eq.s32.totalorder %s9, 1
    %p75 = por %p73, %p74
    %p76 = scmp.ne.s32.totalorder %s68, %s71
    %p77 = scmp.eq.s32.totalorder %s9, 0
    %p78 = por %p76, %p77
    %p79 = scmp.ne.s32.totalorder %s68, %s71
    %p80 = scmp.eq.s32.totalorder %s14, 1
    %p81 = por %p79, %p80
    %p82 = scmp.ne.s32.totalorder %s71, %s72
    %p83 = scmp.eq.s32.totalorder %s14, 0
    %p84 = por %p82, %p83
    %p85 = scmp.ne.s32.totalorder %s71, %s72
    %p86 = scmp.eq.s32.totalorder %s15, 1
    %p87 = por %p85, %p86
    %p89 = scmp.ne.s32.totalorder %s72, %s88
    %p90 = scmp.eq.s32.totalorder %s15, 0
    %p91 = por %p89, %p90
    %s92 = ssub.s32 %s17, %s31
    %p93 = scmp.eq.s32.totalorder %s92, 0
    %s95 = sadd.s32 %s94, 1
    %s96 = scalar_select %p93, %s94, %s95
    %p99 = pneg %p93
    %p100 = scmp.eq.s32.totalorder %s9, 1
    %p101 = por %p99, %p100
    %p102 = scmp.ne.s32.totalorder %s94, %s97
    %p103 = scmp.eq.s32.totalorder %s9, 0
    %p104 = por %p102, %p103
    %p105 = scmp.ne.s32.totalorder %s94, %s97
    %p106 = scmp.eq.s32.totalorder %s14, 1
    %p107 = por %p105, %p106
    %p108 = scmp.ne.s32.totalorder %s97, %s98
    %p109 = scmp.eq.s32.totalorder %s14, 0
    %p110 = por %p108, %p109
    %p111 = scmp.ne.s32.totalorder %s97, %s98
    %p112 = scmp.eq.s32.totalorder %s15, 1
    %p113 = por %p111, %p112
    %p115 = scmp.ne.s32.totalorder %s98, %s114
    %p116 = scmp.eq.s32.totalorder %s15, 0
    %p117 = por %p115, %p116
    %s118 = ssub.s32 %s16, %s35
    %s119 = ssub.s32 %s17, %s31
    %s120 = sor.u32 %s118, %s119
    %p121 = scmp.eq.s32.totalorder %s120, 0
    %s123 = sadd.s32 %s122, 1
    %s124 = scalar_select %p121, %s122, %s123
    %p127 = pneg %p121
    %p128 = scmp.eq.s32.totalorder %s9, 1
    %p129 = por %p127, %p128
    %p130 = scmp.ne.s32.totalorder %s122, %s125
    %p131 = scmp.eq.s32.totalorder %s9, 0
    %p132 = por %p130, %p131
    %p133 = scmp.ne.s32.totalorder %s122, %s125
    %p134 = scmp.eq.s32.totalorder %s14, 1
    %p135 = por %p133, %p134
    %p136 = scmp.ne.s32.totalorder %s125, %s126
    %p137 = scmp.eq.s32.totalorder %s14, 0
    %p138 = por %p136, %p137
    %p139 = scmp.ne.s32.totalorder %s125, %s126
    %p140 = scmp.eq.s32.totalorder %s15, 1
    %p141 = por %p139, %p140
    %p143 = scmp.ne.s32.totalorder %s126, %s142
    %p144 = scmp.eq.s32.totalorder %s15, 0
    %p145 = por %p143, %p144
    %p146 = scmp.le.s32.totalorder 1, %s9
    %p147 = scmp.lt.s32.totalorder %s9, 3
    %p148 = pnand %p146, %p147
    %p149 = pneg %p148
    // Predicated region
    $region9: #{vae_forward.13} parent=5 // pred_check
      _
    $region10: #{vae_forward.13} parent=5 // pred_check_branch
      %151 = sbr.rel (%p148) target = $region12
    $region11: #{vae_forward.13} parent=5 // pred_region
      %s152 = ssub.s32 %s9, 1
      // Predicated region
      $region13: #{vae_forward.13} parent=11 // pred_check
        %p153 = pneg %p84
      $region14: #{vae_forward.13} parent=11 // pred_check_branch
        %155 = sbr.rel (%p153) target = $region16
      $region15: #{vae_forward.13} parent=11 // pred_region
        %s156 = smul.u32 4, %s21
        %p157 = scmp.lt.s32.totalorder %s156, 3
        %s158 = scalar_select %p157, %s156, 3
        %p159 = scmp.lt.s32.totalorder %s20, 0
        %s160 = scalar_select %p159, %s20, 0
        %s161 = sadd.s32 %s160, %s158
        %s162 = smul.addr %s161, 4
        %s163 = scalar_lea.vmem %s1, %s162
        %s164 = smul.u32 4, %s21
      $region16: #{vae_forward.13} parent=11 // pred_fallthru
        _
      // Predicated region
      $region17: #{vae_forward.13} parent=11 // pred_check
        %p165 = pneg %p110
      $region18: #{vae_forward.13} parent=11 // pred_check_branch
        %167 = sbr.rel (%p165) target = $region20
      $region19: #{vae_forward.13} parent=11 // pred_region
        %p168 = scmp.lt.s32.totalorder %s20, 0
        %s169 = scalar_select %p168, %s20, 0
        %s170 = smul.addr %s169, 2
        %s171 = scalar_lea.vmem %s2, %s170
      $region20: #{vae_forward.13} parent=11 // pred_fallthru
        _
    $region12: #{vae_forward.13} parent=5 // pred_fallthru
      _
    %p172 = scmp.lt.s32.totalorder %s9, 2
    // Predicated region
    $region21: #{vae_forward.13} parent=5 // pred_check
      %p173 = pneg %p172
    $region22: #{vae_forward.13} parent=5 // pred_check_branch
      %175 = sbr.rel (%p173) target = $region24
    $region23: #{vae_forward.13} parent=5 // pred_region
      // Predicated region
      $region25: #{vae_forward.13} parent=23 // pred_check
        %p176 = pneg %p50
      $region26: #{vae_forward.13} parent=23 // pred_check_branch
        %178 = sbr.rel (%p176) target = $region28
      $region27: #{vae_forward.13} parent=23 // pred_region
        %s179 = smul.u32 8, %s16
        %p180 = scmp.lt.s32.totalorder %s179, 15
        %s181 = scalar_select %p180, %s179, 15
        %p182 = scmp.lt.s32.totalorder %s18, 0
        %s183 = scalar_select %p182, %s18, 0
        %s184 = sadd.s32 %s183, %s181
        %s185 = smul.addr %s184, 4
        %s186 = scalar_lea.vmem %s0, %s185
        %s187 = smul.u32 8, %s16
      $region28: #{vae_forward.13} parent=23 // pred_fallthru
        _
    $region24: #{vae_forward.13} parent=5 // pred_fallthru
      _
    %p188 = scmp.le.s32.totalorder 1, %s9
    %p189 = scmp.lt.s32.totalorder %s9, 3
    %p190 = pnand %p188, %p189
    %p191 = pneg %p190
    // Predicated region
    $region29: #{vae_forward.13} parent=5 // pred_check
      _
    $region30: #{vae_forward.13} parent=5 // pred_check_branch
      %193 = sbr.rel (%p190) target = $region32
    $region31: #{vae_forward.13} parent=5 // pred_region
      %s194 = ssub.s32 %s9, 1
      %s195 = smul.u32 8, %s19
      %p196 = scmp.lt.s32.totalorder %s195, 15
      %s197 = scalar_select %p196, %s195, 15
      %p198 = scmp.lt.s32.totalorder %s21, 0
      %s199 = scalar_select %p198, %s21, 0
      %s200 = sadd.s32 %s199, %s197
      %s201 = smul.addr %s200, 4
      %s202 = scalar_lea.vmem %s0, %s201
      %p203 = pneg %p56
      %p204 = pneg %p53
      %s205 = smul.u32 4, %s21
      %p206 = scmp.lt.s32.totalorder %s205, 3
      %s207 = scalar_select %p206, %s205, 3
      %p208 = scmp.lt.s32.totalorder %s20, 0
      %s209 = scalar_select %p208, %s20, 0
      %s210 = sadd.s32 %s209, %s207
      %s211 = smul.addr %s210, 4
      %s212 = scalar_lea.vmem %s1, %s211
      %p213 = pneg %p84
      %p214 = pneg %p81
      %p215 = scmp.lt.s32.totalorder %s20, 0
      %s216 = scalar_select %p215, %s20, 0
      %s217 = smul.addr %s216, 2
      %s218 = scalar_lea.vmem %s2, %s217
      %p219 = pneg %p110
      %p220 = pneg %p107
      %p221 = pneg %p138
      %p222 = pneg %p135
      %s223 = smul.u32 8, %s19
      %p224 = scmp.lt.s32.totalorder %s223, 15
      %s225 = scalar_select %p224, %s223, 15
      %p226 = scmp.lt.s32.totalorder %s20, 0
      %s227 = scalar_select %p226, %s20, 0
      %s228 = sadd.s32 %s227, %s225
      %s229 = smul.addr %s228, 4
      %s230 = scalar_lea.vmem %s3, %s229
      %s231 = smul.u32 8, %s19
      %p232 = scmp.lt.s32.totalorder %s231, 15
      %s233 = scalar_select %p232, %s231, 15
      %p234 = scmp.lt.s32.totalorder %s21, 0
      %s235 = scalar_select %p234, %s21, 0
      %s236 = sadd.s32 %s235, %s233
      %s237 = smul.addr %s236, 4
      %s238 = scalar_lea.vmem %s0, %s237
      %s239 = smul.u32 8, %s19
      %s240 = smul.u32 4, %s21
      %p241 = scmp.lt.s32.totalorder %s240, 3
      %s242 = scalar_select %p241, %s240, 3
      %p243 = scmp.lt.s32.totalorder %s20, 0
      %s244 = scalar_select %p243, %s20, 0
      %s245 = sadd.s32 %s244, %s242
      %s246 = smul.addr %s245, 4
      %s247 = scalar_lea.vmem %s1, %s246
      %s248 = smul.u32 4, %s21
      %p249 = scmp.lt.s32.totalorder %s20, 0
      %s250 = scalar_select %p249, %s20, 0
      %s251 = smul.addr %s250, 2
      %s252 = scalar_lea.vmem %s2, %s251
      %s253 = smul.u32 8, %s19
      %p254 = scmp.lt.s32.totalorder %s253, 15
      %s255 = scalar_select %p254, %s253, 15
      %p256 = scmp.lt.s32.totalorder %s20, 0
      %s257 = scalar_select %p256, %s20, 0
      %s258 = sadd.s32 %s257, %s255
      %s259 = smul.addr %s258, 4
      %s260 = scalar_lea.vmem %s3, %s259
      %s261 = smul.u32 8, %s19
      %p263 = scmp.eq.s32.totalorder %s21, 0
      // Predicated region
      $region33: #{vae_forward.13} parent=31 // pred_check
        %p264 = pneg %p263
      $region34: #{vae_forward.13} parent=31 // pred_check_branch
        %266 = sbr.rel (%p264) target = $region36
      $region35: #{vae_forward.13} parent=31 // pred_region
        %267 = vst [vmem:[#allocation2] sm:$0xff] 0.0
        %268 = vst [vmem:[#allocation2 + $0x8] sm:$0xff] 0.0
        %269 = vst [vmem:[#allocation2 + $0x10] sm:$0xff] 0.0
        %270 = vst [vmem:[#allocation2 + $0x18] sm:$0xff] 0.0
        %271 = vst [vmem:[#allocation2 + $0x20] sm:$0xff] 0.0
        %272 = vst [vmem:[#allocation2 + $0x28] sm:$0xff] 0.0
        %273 = vst [vmem:[#allocation2 + $0x30] sm:$0xff] 0.0
        %274 = vst [vmem:[#allocation2 + $0x38] sm:$0xff] 0.0
      $region36: #{vae_forward.13} parent=31 // pred_fallthru
        _
      %v275 = vld [vmem:[#allocation2] sm:$0xff]
      %v276 = vld [vmem:[#allocation2 + $0x8] sm:$0xff]
      %v277 = vld [vmem:[#allocation2 + $0x10] sm:$0xff]
      %v278 = vld [vmem:[#allocation2 + $0x18] sm:$0xff]
      %v279 = vld [vmem:[#allocation2 + $0x20] sm:$0xff]
      %v280 = vld [vmem:[#allocation2 + $0x28] sm:$0xff]
      %v281 = vld [vmem:[#allocation2 + $0x30] sm:$0xff]
      %v282 = vld [vmem:[#allocation2 + $0x38] sm:$0xff]
      %v283 = vld [vmem:[%s238] sm:$0xf]
      %v284 = vld [vmem:[%s238 + $0x4] sm:$0xf]
      %v285 = vld [vmem:[%s238 + $0x8] sm:$0xf]
      %v286 = vld [vmem:[%s238 + $0xc] sm:$0xf]
      %v287 = vld [vmem:[%s238 + $0x10] sm:$0xf]
      %v288 = vld [vmem:[%s238 + $0x14] sm:$0xf]
      %v289 = vld [vmem:[%s238 + $0x18] sm:$0xf]
      %v290 = vld [vmem:[%s238 + $0x1c] sm:$0xf]
      %v291 = vld [vmem:[%s247] sm:$0xf]
      %v292 = vld [vmem:[%s247 + $0x4] sm:$0xf]
      %v293 = vld [vmem:[%s247 + $0x8] sm:$0xf]
      %v294 = vld [vmem:[%s247 + $0xc] sm:$0xf]
      %v303 = vunpack.c.l.b16 %v283
      %v304 = vunpack.c.l.b16 %v284
      %v305 = vunpack.c.l.b16 %v285
      %v306 = vunpack.c.l.b16 %v286
      %v307 = vunpack.c.l.b16 %v287
      %v308 = vunpack.c.l.b16 %v288
      %v309 = vunpack.c.l.b16 %v289
      %v310 = vunpack.c.l.b16 %v290
      %v311 = vpack.c.b16 %v304, %v303
      %v312 = vpack.c.b16 %v306, %v305
      %v313 = vpack.c.b16 %v308, %v307
      %v314 = vpack.c.b16 %v310, %v309
      %v319 = vunpack.c.l.b16 %v291
      %v320 = vunpack.c.l.b16 %v292
      %v321 = vunpack.c.l.b16 %v293
      %v322 = vunpack.c.l.b16 %v294
      %v323 = vpack.c.b16 %v320, %v319
      %v324 = vpack.c.b16 %v322, %v321
      %vm327 = vcmask 261120
      %v329 = vsel %vm327, %v311, 0
      %v332 = vsel %vm327, %v312, 0
      %v335 = vsel %vm327, %v313, 0
      %v338 = vsel %vm327, %v314, 0
      %340 = vmatpush.bf16.msra.mxu0 0
      %341 = vmatpush.bf16.msra.mxu0 0
      %342 = vmatpush.bf16.msra.mxu0 0
      %343 = vmatpush.bf16.msra.mxu0 0
      %344 = vmatpush.bf16.msra.mxu0 0
      %345 = vmatpush.bf16.msra.mxu0 0
      %346 = vmatpush.bf16.msra.mxu0 %v324
      %347 = vmatpush.bf16.msra.mxu0 %v323
      %348 = vmatmul.bf16.gmra.mxu0 %v329
      %v349 = vpop.f32.mrf.mxu0
      %v350 = vadd.f32 0.0, %v349
      %v351 = vpop.f32.mrf.mxu0
      %v352 = vadd.f32 0.0, %v351
      %353 = vmatmul.bf16.gmra.mxu0 %v332
      %v354 = vpop.f32.mrf.mxu0
      %v355 = vadd.f32 0.0, %v354
      %v356 = vpop.f32.mrf.mxu0
      %v357 = vadd.f32 0.0, %v356
      %358 = vmatmul.bf16.gmra.mxu0 %v335
      %v359 = vpop.f32.mrf.mxu0
      %v360 = vadd.f32 0.0, %v359
      %v361 = vpop.f32.mrf.mxu0
      %v362 = vadd.f32 0.0, %v361
      %363 = vmatmul.bf16.gmra.mxu0 %v338
      %v364 = vpop.f32.mrf.mxu0
      %v365 = vadd.f32 0.0, %v364
      %v366 = vpop.f32.mrf.mxu0
      %v367 = vadd.f32 0.0, %v366
      %368 = vdwg.mxu0
      %v369 = vadd.f32 %v275, %v350
      %v370 = vadd.f32 %v276, %v352
      %v371 = vadd.f32 %v277, %v355
      %v372 = vadd.f32 %v278, %v357
      %v373 = vadd.f32 %v279, %v360
      %v374 = vadd.f32 %v280, %v362
      %v375 = vadd.f32 %v281, %v365
      %v376 = vadd.f32 %v282, %v367
      %377 = vst [vmem:[#allocation2] sm:$0xff] %v369
      %378 = vst [vmem:[#allocation2 + $0x8] sm:$0xff] %v370
      %379 = vst [vmem:[#allocation2 + $0x10] sm:$0xff] %v371
      %380 = vst [vmem:[#allocation2 + $0x18] sm:$0xff] %v372
      %381 = vst [vmem:[#allocation2 + $0x20] sm:$0xff] %v373
      %382 = vst [vmem:[#allocation2 + $0x28] sm:$0xff] %v374
      %383 = vst [vmem:[#allocation2 + $0x30] sm:$0xff] %v375
      %384 = vst [vmem:[#allocation2 + $0x38] sm:$0xff] %v376
      // Predicated region
      $region37: #{vae_forward.13} parent=31 // pred_check
        %p385 = pneg %p263
      $region38: #{vae_forward.13} parent=31 // pred_check_branch
        %387 = sbr.rel (%p385) target = $region40
      $region39: #{vae_forward.13} parent=31 // pred_region
        %v388 = vld [vmem:[#allocation2] sm:$0xff]
        %v389 = vld [vmem:[#allocation2 + $0x8] sm:$0xff]
        %v390 = vld [vmem:[#allocation2 + $0x10] sm:$0xff]
        %v391 = vld [vmem:[#allocation2 + $0x18] sm:$0xff]
        %v392 = vld [vmem:[#allocation2 + $0x20] sm:$0xff]
        %v393 = vld [vmem:[#allocation2 + $0x28] sm:$0xff]
        %v394 = vld [vmem:[#allocation2 + $0x30] sm:$0xff]
        %v395 = vld [vmem:[#allocation2 + $0x38] sm:$0xff]
        %v396 = vld [vmem:[%s252] sm:$0x1]
        %v397 = vperm.slane %v396, 0
        %v398 = vmul.f32 %v388, %v397
        %v399 = vmul.f32 %v389, %v397
        %v400 = vmul.f32 %v390, %v397
        %v401 = vmul.f32 %v391, %v397
        %v402 = vmul.f32 %v392, %v397
        %v403 = vmul.f32 %v393, %v397
        %v404 = vmul.f32 %v394, %v397
        %v405 = vmul.f32 %v395, %v397
        %v406 = vld [vmem:[%s252 + $0x1] sm:$0x1]
        %v407 = vperm.slane %v406, 0
        %v408 = vadd.f32 %v398, %v407
        %v409 = vadd.f32 %v399, %v407
        %v410 = vadd.f32 %v400, %v407
        %v411 = vadd.f32 %v401, %v407
        %v412 = vadd.f32 %v402, %v407
        %v413 = vadd.f32 %v403, %v407
        %v414 = vadd.f32 %v404, %v407
        %v415 = vadd.f32 %v405, %v407
        %vm416 = vcmp.gt.f32.partialorder %v408, 0.0
        %vm417 = vcmp.gt.f32.partialorder %v409, 0.0
        %vm418 = vcmp.gt.f32.partialorder %v410, 0.0
        %vm419 = vcmp.gt.f32.partialorder %v411, 0.0
        %vm420 = vcmp.gt.f32.partialorder %v412, 0.0
        %vm421 = vcmp.gt.f32.partialorder %v413, 0.0
        %vm422 = vcmp.gt.f32.partialorder %v414, 0.0
        %vm423 = vcmp.gt.f32.partialorder %v415, 0.0
        %v424 = vmul.f32 %v408, 0.01
        %v425 = vmul.f32 %v409, 0.01
        %v426 = vmul.f32 %v410, 0.01
        %v427 = vmul.f32 %v411, 0.01
        %v428 = vmul.f32 %v412, 0.01
        %v429 = vmul.f32 %v413, 0.01
        %v430 = vmul.f32 %v414, 0.01
        %v431 = vmul.f32 %v415, 0.01
        %v432 = vsel %vm416, %v408, %v424
        %v433 = vsel %vm417, %v409, %v425
        %v434 = vsel %vm418, %v410, %v426
        %v435 = vsel %vm419, %v411, %v427
        %v436 = vsel %vm420, %v412, %v428
        %v437 = vsel %vm421, %v413, %v429
        %v438 = vsel %vm422, %v414, %v430
        %v439 = vsel %vm423, %v415, %v431
        %v440 = vpack.c.bf16 %v432, %v432
        %v441 = vpack.c.bf16 %v433, %v433
        %v442 = vpack.c.bf16 %v434, %v434
        %v443 = vpack.c.bf16 %v435, %v435
        %v444 = vpack.c.bf16 %v436, %v436
        %v445 = vpack.c.bf16 %v437, %v437
        %v446 = vpack.c.bf16 %v438, %v438
        %v447 = vpack.c.bf16 %v439, %v439
        %448 = vst [vmem:[%s260] sm:$0xf] %v440
        %449 = vst [vmem:[%s260 + $0x4] sm:$0xf] %v441
        %450 = vst [vmem:[%s260 + $0x8] sm:$0xf] %v442
        %451 = vst [vmem:[%s260 + $0xc] sm:$0xf] %v443
        %452 = vst [vmem:[%s260 + $0x10] sm:$0xf] %v444
        %453 = vst [vmem:[%s260 + $0x14] sm:$0xf] %v445
        %454 = vst [vmem:[%s260 + $0x18] sm:$0xf] %v446
        %455 = vst [vmem:[%s260 + $0x1c] sm:$0xf] %v447
      $region40: #{vae_forward.13} parent=31 // pred_fallthru
        _
      %s456 = smul.u32 8, %s19
      %p457 = scmp.lt.s32.totalorder %s456, 15
      %s458 = scalar_select %p457, %s456, 15
      %p459 = scmp.lt.s32.totalorder %s20, 0
      %s460 = scalar_select %p459, %s20, 0
      %s461 = sadd.s32 %s460, %s458
      %s462 = smul.addr %s461, 4
      %s463 = scalar_lea.vmem %s3, %s462
      // Predicated region
      $region41: #{vae_forward.13} parent=31 // pred_check
        %p464 = pneg %p135
      $region42: #{vae_forward.13} parent=31 // pred_check_branch
        %466 = sbr.rel (%p464) target = $region44
      $region43: #{vae_forward.13} parent=31 // pred_region
        %s467 = smul.u32 8, %s19
      $region44: #{vae_forward.13} parent=31 // pred_fallthru
        _
    $region32: #{vae_forward.13} parent=5 // pred_fallthru
      _
    %p468 = scmp.le.s32.totalorder 2, %s9
    // Predicated region
    $region45: #{vae_forward.13} parent=5 // pred_check
      %p469 = pneg %p468
    $region46: #{vae_forward.13} parent=5 // pred_check_branch
      %471 = sbr.rel (%p469) target = $region48
    $region47: #{vae_forward.13} parent=5 // pred_region
      %s472 = ssub.s32 %s9, 2
      // Predicated region
      $region49: #{vae_forward.13} parent=47 // pred_check
        %p473 = pneg %p141
      $region50: #{vae_forward.13} parent=47 // pred_check_branch
        %475 = sbr.rel (%p473) target = $region52
      $region51: #{vae_forward.13} parent=47 // pred_region
        %s476 = smul.u32 8, %s22
        %p477 = scmp.lt.s32.totalorder %s476, 15
        %s478 = scalar_select %p477, %s476, 15
        %p479 = scmp.lt.s32.totalorder %s23, 0
        %s480 = scalar_select %p479, %s23, 0
        %s481 = sadd.s32 %s480, %s478
        %s482 = smul.addr %s481, 4
        %s483 = scalar_lea.vmem %s3, %s482
      $region52: #{vae_forward.13} parent=47 // pred_fallthru
        _
    $region48: #{vae_forward.13} parent=5 // pred_fallthru
      _
  $region6: #{vae_forward.13} parent=0 // loop_footer
    %s13 = sadd.s32 1, %s9
  $region7: #{vae_forward.13} parent=0 // loop_footer_branch
    %8 = sbr.rel target = $region3
  $region8: #{vae_forward.13} parent=0 // loop_exit
    _

// kernel: vae_forward.15
$region0: #{vae_forward.15}
  #allocation0 [shape = 'u32[]', space=smem, size = 0x4, offset = 0x4, fixed_abs, tag = 'smem constant byte address 0x4 - core index']
  #allocation1 [shape = 'u32[72,128]{1,0:T(1,128)}', space=vmem, size = 0x9000, scoped, tag = 'internal scratch']
  #allocation2 [shape = 'f32[256,128]{1,0:T(8,128)}', space=vmem, size = 0x20000, scoped, tag = 'scratch operand']
  %s0 = inlined_call_operand.vmem [shape: bf16[512,48], index: 0, kind: input, shape index: {}]
  %s1 = inlined_call_operand.vmem [shape: bf16[48,128], index: 1, kind: input, shape index: {}]
  %s2 = inlined_call_operand.vmem [shape: f32[2,128], index: 2, kind: input, shape index: {}]
  %s3 = inlined_call_operand.vmem [shape: f32[512,128], index: 3, kind: output, shape index: {}]
  %s4 = sld [smem:[#allocation0]]
  $region53: #{vae_forward.15} parent=0
    _
  %s6 = ssub.s32 1, %s4
  %s7 = scalar_select 0, %s6, %s4
  loop: start=0, step=1, limit=4
  $region2: #{vae_forward.15} parent=0 // loop_pre_header
    _
  $region3: #{vae_forward.15} parent=0 // loop_header
    %s9 = sphi 0, %s13
    %p10 = scmp.ge.s32.totalorder %s9, 4
    %s16 = sphi 0, %s35
    %s17 = sphi 0, %s31
    %s18 = sphi 0, %s27
    %s19 = sphi 0, %s16
    %s20 = sphi 0, %s17
    %s21 = sphi 0, %s18
    %s22 = sphi 0, %s19
    %s23 = sphi 0, %s20
    %s24 = sphi 0, %s21
    %s40 = sphi 0, %s42
    %s43 = sphi 0, %s40
    %s44 = sphi 0, %s43
    %s60 = sphi 0, %s44
    %s68 = sphi 0, %s70
    %s71 = sphi 0, %s68
    %s72 = sphi 0, %s71
    %s88 = sphi 0, %s72
    %s94 = sphi 0, %s96
    %s97 = sphi 0, %s94
    %s98 = sphi 0, %s97
    %s114 = sphi 0, %s98
    %s122 = sphi 0, %s124
    %s125 = sphi 0, %s122
    %s126 = sphi 0, %s125
    %s142 = sphi 0, %s126
  $region4: #{vae_forward.15} parent=0 // loop_header_branch
    %12 = sbr.rel (%p10) target = $region8
  $region5: #{vae_forward.15} parent=0 // loop_body
    %s14 = ssub.s32 %s9, 1
    %s15 = ssub.s32 %s9, 2
    %s25 = sadd.s32 1, %s18
    %p26 = scmp.ge.s32.totalorder %s25, 1
    %s27 = scalar_select %p26, 0, %s25
    %s28 = sadd.s32 1, %s17
    %s29 = scalar_select %p26, %s28, %s17
    %p30 = scmp.ge.s32.totalorder %s29, 1
    %s31 = scalar_select %p30, 0, %s29
    %s32 = sadd.s32 1, %s16
    %s33 = scalar_select %p30, %s32, %s16
    %p34 = scmp.ge.s32.totalorder %s33, 2
    %s35 = scalar_select %p34, 0, %s33
    %s36 = ssub.s32 %s16, %s35
    %s37 = ssub.s32 %s18, %s27
    %s38 = sor.u32 %s36, %s37
    %p39 = scmp.eq.s32.totalorder %s38, 0
    %s41 = sadd.s32 %s40, 1
    %s42 = scalar_select %p39, %s40, %s41
    %p45 = pneg %p39
    %p46 = scmp.eq.s32.totalorder %s9, 1
    %p47 = por %p45, %p46
    %p48 = scmp.ne.s32.totalorder %s40, %s43
    %p49 = scmp.eq.s32.totalorder %s9, 0
    %p50 = por %p48, %p49
    %p51 = scmp.ne.s32.totalorder %s40, %s43
    %p52 = scmp.eq.s32.totalorder %s14, 1
    %p53 = por %p51, %p52
    %p54 = scmp.ne.s32.totalorder %s43, %s44
    %p55 = scmp.eq.s32.totalorder %s14, 0
    %p56 = por %p54, %p55
    %p57 = scmp.ne.s32.totalorder %s43, %s44
    %p58 = scmp.eq.s32.totalorder %s15, 1
    %p59 = por %p57, %p58
    %p61 = scmp.ne.s32.totalorder %s44, %s60
    %p62 = scmp.eq.s32.totalorder %s15, 0
    %p63 = por %p61, %p62
    %s64 = ssub.s32 %s18, %s27
    %s65 = ssub.s32 %s17, %s31
    %s66 = sor.u32 %s64, %s65
    %p67 = scmp.eq.s32.totalorder %s66, 0
    %s69 = sadd.s32 %s68, 1
    %s70 = scalar_select %p67, %s68, %s69
    %p73 = pneg %p67
    %p74 = scmp.eq.s32.totalorder %s9, 1
    %p75 = por %p73, %p74
    %p76 = scmp.ne.s32.totalorder %s68, %s71
    %p77 = scmp.eq.s32.totalorder %s9, 0
    %p78 = por %p76, %p77
    %p79 = scmp.ne.s32.totalorder %s68, %s71
    %p80 = scmp.eq.s32.totalorder %s14, 1
    %p81 = por %p79, %p80
    %p82 = scmp.ne.s32.totalorder %s71, %s72
    %p83 = scmp.eq.s32.totalorder %s14, 0
    %p84 = por %p82, %p83
    %p85 = scmp.ne.s32.totalorder %s71, %s72
    %p86 = scmp.eq.s32.totalorder %s15, 1
    %p87 = por %p85, %p86
    %p89 = scmp.ne.s32.totalorder %s72, %s88
    %p90 = scmp.eq.s32.totalorder %s15, 0
    %p91 = por %p89, %p90
    %s92 = ssub.s32 %s17, %s31
    %p93 = scmp.eq.s32.totalorder %s92, 0
    %s95 = sadd.s32 %s94, 1
    %s96 = scalar_select %p93, %s94, %s95
    %p99 = pneg %p93
    %p100 = scmp.eq.s32.totalorder %s9, 1
    %p101 = por %p99, %p100
    %p102 = scmp.ne.s32.totalorder %s94, %s97
    %p103 = scmp.eq.s32.totalorder %s9, 0
    %p104 = por %p102, %p103
    %p105 = scmp.ne.s32.totalorder %s94, %s97
    %p106 = scmp.eq.s32.totalorder %s14, 1
    %p107 = por %p105, %p106
    %p108 = scmp.ne.s32.totalorder %s97, %s98
    %p109 = scmp.eq.s32.totalorder %s14, 0
    %p110 = por %p108, %p109
    %p111 = scmp.ne.s32.totalorder %s97, %s98
    %p112 = scmp.eq.s32.totalorder %s15, 1
    %p113 = por %p111, %p112
    %p115 = scmp.ne.s32.totalorder %s98, %s114
    %p116 = scmp.eq.s32.totalorder %s15, 0
    %p117 = por %p115, %p116
    %s118 = ssub.s32 %s16, %s35
    %s119 = ssub.s32 %s17, %s31
    %s120 = sor.u32 %s118, %s119
    %p121 = scmp.eq.s32.totalorder %s120, 0
    %s123 = sadd.s32 %s122, 1
    %s124 = scalar_select %p121, %s122, %s123
    %p127 = pneg %p121
    %p128 = scmp.eq.s32.totalorder %s9, 1
    %p129 = por %p127, %p128
    %p130 = scmp.ne.s32.totalorder %s122, %s125
    %p131 = scmp.eq.s32.totalorder %s9, 0
    %p132 = por %p130, %p131
    %p133 = scmp.ne.s32.totalorder %s122, %s125
    %p134 = scmp.eq.s32.totalorder %s14, 1
    %p135 = por %p133, %p134
    %p136 = scmp.ne.s32.totalorder %s125, %s126
    %p137 = scmp.eq.s32.totalorder %s14, 0
    %p138 = por %p136, %p137
    %p139 = scmp.ne.s32.totalorder %s125, %s126
    %p140 = scmp.eq.s32.totalorder %s15, 1
    %p141 = por %p139, %p140
    %p143 = scmp.ne.s32.totalorder %s126, %s142
    %p144 = scmp.eq.s32.totalorder %s15, 0
    %p145 = por %p143, %p144
    %p146 = scmp.le.s32.totalorder 1, %s9
    %p147 = scmp.lt.s32.totalorder %s9, 3
    %p148 = pnand %p146, %p147
    %p149 = pneg %p148
    // Predicated region
    $region9: #{vae_forward.15} parent=5 // pred_check
      _
    $region10: #{vae_forward.15} parent=5 // pred_check_branch
      %151 = sbr.rel (%p148) target = $region12
    $region11: #{vae_forward.15} parent=5 // pred_region
      %s152 = ssub.s32 %s9, 1
      // Predicated region
      $region13: #{vae_forward.15} parent=11 // pred_check
        %p153 = pneg %p84
      $region14: #{vae_forward.15} parent=11 // pred_check_branch
        %155 = sbr.rel (%p153) target = $region16
      $region15: #{vae_forward.15} parent=11 // pred_region
        %s156 = smul.u32 6, %s21
        %p157 = scmp.lt.s32.totalorder %s156, 5
        %s158 = scalar_select %p157, %s156, 5
        %p159 = scmp.lt.s32.totalorder %s20, 0
        %s160 = scalar_select %p159, %s20, 0
        %s161 = sadd.s32 %s160, %s158
        %s162 = smul.addr %s161, 4
        %s163 = scalar_lea.vmem %s1, %s162
        %s164 = smul.u32 6, %s21
      $region16: #{vae_forward.15} parent=11 // pred_fallthru
        _
      // Predicated region
      $region17: #{vae_forward.15} parent=11 // pred_check
        %p165 = pneg %p110
      $region18: #{vae_forward.15} parent=11 // pred_check_branch
        %167 = sbr.rel (%p165) target = $region20
      $region19: #{vae_forward.15} parent=11 // pred_region
        %p168 = scmp.lt.s32.totalorder %s20, 0
        %s169 = scalar_select %p168, %s20, 0
        %s170 = smul.addr %s169, 2
        %s171 = scalar_lea.vmem %s2, %s170
      $region20: #{vae_forward.15} parent=11 // pred_fallthru
        _
    $region12: #{vae_forward.15} parent=5 // pred_fallthru
      _
    %p172 = scmp.lt.s32.totalorder %s9, 2
    // Predicated region
    $region21: #{vae_forward.15} parent=5 // pred_check
      %p173 = pneg %p172
    $region22: #{vae_forward.15} parent=5 // pred_check_branch
      %175 = sbr.rel (%p173) target = $region24
    $region23: #{vae_forward.15} parent=5 // pred_region
      // Predicated region
      $region25: #{vae_forward.15} parent=23 // pred_check
        %p176 = pneg %p50
      $region26: #{vae_forward.15} parent=23 // pred_check_branch
        %178 = sbr.rel (%p176) target = $region28
      $region27: #{vae_forward.15} parent=23 // pred_region
        %s179 = smul.u32 32, %s16
        %p180 = scmp.lt.s32.totalorder %s179, 63
        %s181 = scalar_select %p180, %s179, 63
        %p182 = scmp.lt.s32.totalorder %s18, 0
        %s183 = scalar_select %p182, %s18, 0
        %s184 = sadd.s32 %s183, %s181
        %s185 = smul.addr %s184, 4
        %s186 = scalar_lea.vmem %s0, %s185
        %s187 = smul.u32 32, %s16
      $region28: #{vae_forward.15} parent=23 // pred_fallthru
        _
    $region24: #{vae_forward.15} parent=5 // pred_fallthru
      _
    %p188 = scmp.le.s32.totalorder 1, %s9
    %p189 = scmp.lt.s32.totalorder %s9, 3
    %p190 = pnand %p188, %p189
    %p191 = pneg %p190
    // Predicated region
    $region29: #{vae_forward.15} parent=5 // pred_check
      _
    $region30: #{vae_forward.15} parent=5 // pred_check_branch
      %193 = sbr.rel (%p190) target = $region32
    $region31: #{vae_forward.15} parent=5 // pred_region
      %s194 = ssub.s32 %s9, 1
      %s195 = smul.u32 32, %s19
      %p196 = scmp.lt.s32.totalorder %s195, 63
      %s197 = scalar_select %p196, %s195, 63
      %p198 = scmp.lt.s32.totalorder %s21, 0
      %s199 = scalar_select %p198, %s21, 0
      %s200 = sadd.s32 %s199, %s197
      %s201 = smul.addr %s200, 4
      %s202 = scalar_lea.vmem %s0, %s201
      %p203 = pneg %p56
      %p204 = pneg %p53
      %s205 = smul.u32 6, %s21
      %p206 = scmp.lt.s32.totalorder %s205, 5
      %s207 = scalar_select %p206, %s205, 5
      %p208 = scmp.lt.s32.totalorder %s20, 0
      %s209 = scalar_select %p208, %s20, 0
      %s210 = sadd.s32 %s209, %s207
      %s211 = smul.addr %s210, 4
      %s212 = scalar_lea.vmem %s1, %s211
      %p213 = pneg %p84
      %p214 = pneg %p81
      %p215 = scmp.lt.s32.totalorder %s20, 0
      %s216 = scalar_select %p215, %s20, 0
      %s217 = smul.addr %s216, 2
      %s218 = scalar_lea.vmem %s2, %s217
      %p219 = pneg %p110
      %p220 = pneg %p107
      %p221 = pneg %p138
      %p222 = pneg %p135
      %s223 = smul.u32 32, %s19
      %p224 = scmp.lt.s32.totalorder %s223, 63
      %s225 = scalar_select %p224, %s223, 63
      %p226 = scmp.lt.s32.totalorder %s20, 0
      %s227 = scalar_select %p226, %s20, 0
      %s228 = sadd.s32 %s227, %s225
      %s229 = smul.addr %s228, 8
      %s230 = scalar_lea.vmem %s3, %s229
      %s231 = smul.u32 32, %s19
      %p232 = scmp.lt.s32.totalorder %s231, 63
      %s233 = scalar_select %p232, %s231, 63
      %p234 = scmp.lt.s32.totalorder %s21, 0
      %s235 = scalar_select %p234, %s21, 0
      %s236 = sadd.s32 %s235, %s233
      %s237 = smul.addr %s236, 4
      %s238 = scalar_lea.vmem %s0, %s237
      %s239 = smul.u32 32, %s19
      %s240 = smul.u32 6, %s21
      %p241 = scmp.lt.s32.totalorder %s240, 5
      %s242 = scalar_select %p241, %s240, 5
      %p243 = scmp.lt.s32.totalorder %s20, 0
      %s244 = scalar_select %p243, %s20, 0
      %s245 = sadd.s32 %s244, %s242
      %s246 = smul.addr %s245, 4
      %s247 = scalar_lea.vmem %s1, %s246
      %s248 = smul.u32 6, %s21
      %p249 = scmp.lt.s32.totalorder %s20, 0
      %s250 = scalar_select %p249, %s20, 0
      %s251 = smul.addr %s250, 2
      %s252 = scalar_lea.vmem %s2, %s251
      %s253 = smul.u32 32, %s19
      %p254 = scmp.lt.s32.totalorder %s253, 63
      %s255 = scalar_select %p254, %s253, 63
      %p256 = scmp.lt.s32.totalorder %s20, 0
      %s257 = scalar_select %p256, %s20, 0
      %s258 = sadd.s32 %s257, %s255
      %s259 = smul.addr %s258, 8
      %s260 = scalar_lea.vmem %s3, %s259
      %s261 = smul.u32 32, %s19
      %p263 = scmp.eq.s32.totalorder %s21, 0
      // Predicated region
      $region33: #{vae_forward.15} parent=31 // pred_check
        %p264 = pneg %p263
      $region34: #{vae_forward.15} parent=31 // pred_check_branch
        %266 = sbr.rel (%p264) target = $region36
      $region35: #{vae_forward.15} parent=31 // pred_region
        %267 = vst [vmem:[#allocation2] sm:$0xff] 0.0
        %268 = vst [vmem:[#allocation2 + $0x8] sm:$0xff] 0.0
        %269 = vst [vmem:[#allocation2 + $0x10] sm:$0xff] 0.0
        %270 = vst [vmem:[#allocation2 + $0x18] sm:$0xff] 0.0
        %271 = vst [vmem:[#allocation2 + $0x20] sm:$0xff] 0.0
        %272 = vst [vmem:[#allocation2 + $0x28] sm:$0xff] 0.0
        %273 = vst [vmem:[#allocation2 + $0x30] sm:$0xff] 0.0
        %274 = vst [vmem:[#allocation2 + $0x38] sm:$0xff] 0.0
        %275 = vst [vmem:[#allocation2 + $0x40] sm:$0xff] 0.0
        %276 = vst [vmem:[#allocation2 + $0x48] sm:$0xff] 0.0
        %277 = vst [vmem:[#allocation2 + $0x50] sm:$0xff] 0.0
        %278 = vst [vmem:[#allocation2 + $0x58] sm:$0xff] 0.0
        %279 = vst [vmem:[#allocation2 + $0x60] sm:$0xff] 0.0
        %280 = vst [vmem:[#allocation2 + $0x68] sm:$0xff] 0.0
        %281 = vst [vmem:[#allocation2 + $0x70] sm:$0xff] 0.0
        %282 = vst [vmem:[#allocation2 + $0x78] sm:$0xff] 0.0
        %283 = vst [vmem:[#allocation2 + $0x80] sm:$0xff] 0.0
        %284 = vst [vmem:[#allocation2 + $0x88] sm:$0xff] 0.0
        %285 = vst [vmem:[#allocation2 + $0x90] sm:$0xff] 0.0
        %286 = vst [vmem:[#allocation2 + $0x98] sm:$0xff] 0.0
        %287 = vst [vmem:[#allocation2 + $0xa0] sm:$0xff] 0.0
        %288 = vst [vmem:[#allocation2 + $0xa8] sm:$0xff] 0.0
        %289 = vst [vmem:[#allocation2 + $0xb0] sm:$0xff] 0.0
        %290 = vst [vmem:[#allocation2 + $0xb8] sm:$0xff] 0.0
        %291 = vst [vmem:[#allocation2 + $0xc0] sm:$0xff] 0.0
        %292 = vst [vmem:[#allocation2 + $0xc8] sm:$0xff] 0.0
        %293 = vst [vmem:[#allocation2 + $0xd0] sm:$0xff] 0.0
        %294 = vst [vmem:[#allocation2 + $0xd8] sm:$0xff] 0.0
        %295 = vst [vmem:[#allocation2 + $0xe0] sm:$0xff] 0.0
        %296 = vst [vmem:[#allocation2 + $0xe8] sm:$0xff] 0.0
        %297 = vst [vmem:[#allocation2 + $0xf0] sm:$0xff] 0.0
        %298 = vst [vmem:[#allocation2 + $0xf8] sm:$0xff] 0.0
      $region36: #{vae_forward.15} parent=31 // pred_fallthru
        _
      %v299 = vld [vmem:[#allocation2] sm:$0xff]
      %v300 = vld [vmem:[#allocation2 + $0x8] sm:$0xff]
      %v301 = vld [vmem:[#allocation2 + $0x10] sm:$0xff]
      %v302 = vld [vmem:[#allocation2 + $0x18] sm:$0xff]
      %v303 = vld [vmem:[#allocation2 + $0x20] sm:$0xff]
      %v304 = vld [vmem:[#allocation2 + $0x28] sm:$0xff]
      %v305 = vld [vmem:[#allocation2 + $0x30] sm:$0xff]
      %v306 = vld [vmem:[#allocation2 + $0x38] sm:$0xff]
      %v307 = vld [vmem:[#allocation2 + $0x40] sm:$0xff]
      %v308 = vld [vmem:[#allocation2 + $0x48] sm:$0xff]
      %v309 = vld [vmem:[#allocation2 + $0x50] sm:$0xff]
      %v310 = vld [vmem:[#allocation2 + $0x58] sm:$0xff]
      %v311 = vld [vmem:[#allocation2 + $0x60] sm:$0xff]
      %v312 = vld [vmem:[#allocation2 + $0x68] sm:$0xff]
      %v313 = vld [vmem:[#allocation2 + $0x70] sm:$0xff]
      %v314 = vld [vmem:[#allocation2 + $0x78] sm:$0xff]
      %v315 = vld [vmem:[#allocation2 + $0x80] sm:$0xff]
      %v316 = vld [vmem:[#allocation2 + $0x88] sm:$0xff]
      %v317 = vld [vmem:[#allocation2 + $0x90] sm:$0xff]
      %v318 = vld [vmem:[#allocation2 + $0x98] sm:$0xff]
      %v319 = vld [vmem:[#allocation2 + $0xa0] sm:$0xff]
      %v320 = vld [vmem:[#allocation2 + $0xa8] sm:$0xff]
      %v321 = vld [vmem:[#allocation2 + $0xb0] sm:$0xff]
      %v322 = vld [vmem:[#allocation2 + $0xb8] sm:$0xff]
      %v323 = vld [vmem:[#allocation2 + $0xc0] sm:$0xff]
      %v324 = vld [vmem:[#allocation2 + $0xc8] sm:$0xff]
      %v325 = vld [vmem:[#allocation2 + $0xd0] sm:$0xff]
      %v326 = vld [vmem:[#allocation2 + $0xd8] sm:$0xff]
      %v327 = vld [vmem:[#allocation2 + $0xe0] sm:$0xff]
      %v328 = vld [vmem:[#allocation2 + $0xe8] sm:$0xff]
      %v329 = vld [vmem:[#allocation2 + $0xf0] sm:$0xff]
      %v330 = vld [vmem:[#allocation2 + $0xf8] sm:$0xff]
      %v331 = vld [vmem:[%s238] sm:$0xf]
      %v332 = vld [vmem:[%s238 + $0x4] sm:$0xf]
      %v333 = vld [vmem:[%s238 + $0x8] sm:$0xf]
      %v334 = vld [vmem:[%s238 + $0xc] sm:$0xf]
      %v335 = vld [vmem:[%s238 + $0x10] sm:$0xf]
      %v336 = vld [vmem:[%s238 + $0x14] sm:$0xf]
      %v337 = vld [vmem:[%s238 + $0x18] sm:$0xf]
      %v338 = vld [vmem:[%s238 + $0x1c] sm:$0xf]
      %v339 = vld [vmem:[%s238 + $0x20] sm:$0xf]
      %v340 = vld [vmem:[%s238 + $0x24] sm:$0xf]
      %v341 = vld [vmem:[%s238 + $0x28] sm:$0xf]
      %v342 = vld [vmem:[%s238 + $0x2c] sm:$0xf]
      %v343 = vld [vmem:[%s238 + $0x30] sm:$0xf]
      %v344 = vld [vmem:[%s238 + $0x34] sm:$0xf]
      %v345 = vld [vmem:[%s238 + $0x38] sm:$0xf]
      %v346 = vld [vmem:[%s238 + $0x3c] sm:$0xf]
      %v347 = vld [vmem:[%s238 + $0x40] sm:$0xf]
      %v348 = vld [vmem:[%s238 + $0x44] sm:$0xf]
      %v349 = vld [vmem:[%s238 + $0x48] sm:$0xf]
      %v350 = vld [vmem:[%s238 + $0x4c] sm:$0xf]
      %v351 = vld [vmem:[%s238 + $0x50] sm:$0xf]
      %v352 = vld [vmem:[%s238 + $0x54] sm:$0xf]
      %v353 = vld [vmem:[%s238 + $0x58] sm:$0xf]
      %v354 = vld [vmem:[%s238 + $0x5c] sm:$0xf]
      %v355 = vld [vmem:[%s238 + $0x60] sm:$0xf]
      %v356 = vld [vmem:[%s238 + $0x64] sm:$0xf]
      %v357 = vld [vmem:[%s238 + $0x68] sm:$0xf]
      %v358 = vld [vmem:[%s238 + $0x6c] sm:$0xf]
      %v359 = vld [vmem:[%s238 + $0x70] sm:$0xf]
      %v360 = vld [vmem:[%s238 + $0x74] sm:$0xf]
      %v361 = vld [vmem:[%s238 + $0x78] sm:$0xf]
      %v362 = vld [vmem:[%s238 + $0x7c] sm:$0xf]
      %v363 = vld [vmem:[%s247] sm:$0xf]
      %v364 = vld [vmem:[%s247 + $0x4] sm:$0xf]
      %v365 = vld [vmem:[%s247 + $0x8] sm:$0xf]
      %v366 = vld [vmem:[%s247 + $0xc] sm:$0xf]
      %v367 = vld [vmem:[%s247 + $0x10] sm:$0xf]
      %v368 = vld [vmem:[%s247 + $0x14] sm:$0xf]
      %v401 = vunpack.c.l.b16 %v331
      %v402 = vunpack.c.l.b16 %v332
      %v403 = vunpack.c.l.b16 %v333
      %v404 = vunpack.c.l.b16 %v334
      %v405 = vunpack.c.l.b16 %v335
      %v406 = vunpack.c.l.b16 %v336
      %v407 = vunpack.c.l.b16 %v337
      %v408 = vunpack.c.l.b16 %v338
      %v409 = vunpack.c.l.b16 %v339
      %v410 = vunpack.c.l.b16 %v340
      %v411 = vunpack.c.l.b16 %v341
      %v412 = vunpack.c.l.b16 %v342
      %v413 = vunpack.c.l.b16 %v343
      %v414 = vunpack.c.l.b16 %v344
      %v415 = vunpack.c.l.b16 %v345
      %v416 = vunpack.c.l.b16 %v346
      %v417 = vunpack.c.l.b16 %v347
      %v418 = vunpack.c.l.b16 %v348
      %v419 = vunpack.c.l.b16 %v349
      %v420 = vunpack.c.l.b16 %v350
      %v421 = vunpack.c.l.b16 %v351
      %v422 = vunpack.c.l.b16 %v352
      %v423 = vunpack.c.l.b16 %v353
      %v424 = vunpack.c.l.b16 %v354
      %v425 = vunpack.c.l.b16 %v355
      %v426 = vunpack.c.l.b16 %v356
      %v427 = vunpack.c.l.b16 %v357
      %v428 = vunpack.c.l.b16 %v358
      %v429 = vunpack.c.l.b16 %v359
      %v430 = vunpack.c.l.b16 %v360
      %v431 = vunpack.c.l.b16 %v361
      %v432 = vunpack.c.l.b16 %v362
      %v433 = vpack.c.b16 %v402, %v401
      %v434 = vpack.c.b16 %v404, %v403
      %v435 = vpack.c.b16 %v406, %v405
      %v436 = vpack.c.b16 %v408, %v407
      %v437 = vpack.c.b16 %v410, %v409
      %v438 = vpack.c.b16 %v412, %v411
      %v439 = vpack.c.b16 %v414, %v413
      %v440 = vpack.c.b16 %v416, %v415
      %v441 = vpack.c.b16 %v418, %v417
      %v442 = vpack.c.b16 %v420, %v419
      %v443 = vpack.c.b16 %v422, %v421
      %v444 = vpack.c.b16 %v424, %v423
      %v445 = vpack.c.b16 %v426, %v425
      %v446 = vpack.c.b16 %v428, %v427
      %v447 = vpack.c.b16 %v430, %v429
      %v448 = vpack.c.b16 %v432, %v431
      %v455 = vunpack.c.l.b16 %v363
      %v456 = vunpack.c.l.b16 %v364
      %v457 = vunpack.c.l.b16 %v365
      %v458 = vunpack.c.l.b16 %v366
      %v459 = vunpack.c.l.b16 %v367
      %v460 = vunpack.c.l.b16 %v368
      %v461 = vpack.c.b16 %v456, %v455
      %v462 = vpack.c.b16 %v458, %v457
      %v463 = vpack.c.b16 %v460, %v459
      %vm467 = vcmask 392192
      %v469 = vsel %vm467, %v433, 0
      %v472 = vsel %vm467, %v434, 0
      %v475 = vsel %vm467, %v435, 0
      %v478 = vsel %vm467, %v436, 0
      %v481 = vsel %vm467, %v437, 0
      %v484 = vsel %vm467, %v438, 0
      %v487 = vsel %vm467, %v439, 0
      %v490 = vsel %vm467, %v440, 0
      %v493 = vsel %vm467, %v441, 0
      %v496 = vsel %vm467, %v442, 0
      %v499 = vsel %vm467, %v443, 0
      %v502 = vsel %vm467, %v444, 0
      %v505 = vsel %vm467, %v445, 0
      %v508 = vsel %vm467, %v446, 0
      %v511 = vsel %vm467, %v447, 0
      %v514 = vsel %vm467, %v448, 0
      %516 = vmatpush.bf16.msra.mxu0 0
      %517 = vmatpush.bf16.msra.mxu0 0
      %518 = vmatpush.bf16.msra.mxu0 0
      %519 = vmatpush.bf16.msra.mxu0 0
      %520 = vmatpush.bf16.msra.mxu0 0
      %521 = vmatpush.bf16.msra.mxu0 %v463
      %522 = vmatpush.bf16.msra.mxu0 %v462
      %523 = vmatpush.bf16.msra.mxu0 %v461
      %524 = vmatmul.bf16.gmra.mxu0 %v469
      %v525 = vpop.f32.mrf.mxu0
      %v526 = vadd.f32 0.0, %v525
      %v527 = vpop.f32.mrf.mxu0
      %v528 = vadd.f32 0.0, %v527
      %529 = vmatmul.bf16.gmra.mxu0 %v472
      %v530 = vpop.f32.mrf.mxu0
      %v531 = vadd.f32 0.0, %v530
      %v532 = vpop.f32.mrf.mxu0
      %v533 = vadd.f32 0.0, %v532
      %534 = vmatmul.bf16.gmra.mxu0 %v475
      %v535 = vpop.f32.mrf.mxu0
      %v536 = vadd.f32 0.0, %v535
      %v537 = vpop.f32.mrf.mxu0
      %v538 = vadd.f32 0.0, %v537
      %539 = vmatmul.bf16.gmra.mxu0 %v478
      %v540 = vpop.f32.mrf.mxu0
      %v541 = vadd.f32 0.0, %v540
      %v542 = vpop.f32.mrf.mxu0
      %v543 = vadd.f32 0.0, %v542
      %544 = vmatmul.bf16.gmra.mxu0 %v481
      %v545 = vpop.f32.mrf.mxu0
      %v546 = vadd.f32 0.0, %v545
      %v547 = vpop.f32.mrf.mxu0
      %v548 = vadd.f32 0.0, %v547
      %549 = vmatmul.bf16.gmra.mxu0 %v484
      %v550 = vpop.f32.mrf.mxu0
      %v551 = vadd.f32 0.0, %v550
      %v552 = vpop.f32.mrf.mxu0
      %v553 = vadd.f32 0.0, %v552
      %554 = vmatmul.bf16.gmra.mxu0 %v487
      %v555 = vpop.f32.mrf.mxu0
      %v556 = vadd.f32 0.0, %v555
      %v557 = vpop.f32.mrf.mxu0
      %v558 = vadd.f32 0.0, %v557
      %559 = vmatmul.bf16.gmra.mxu0 %v490
      %v560 = vpop.f32.mrf.mxu0
      %v561 = vadd.f32 0.0, %v560
      %v562 = vpop.f32.mrf.mxu0
      %v563 = vadd.f32 0.0, %v562
      %564 = vmatmul.bf16.gmra.mxu0 %v493
      %v565 = vpop.f32.mrf.mxu0
      %v566 = vadd.f32 0.0, %v565
      %v567 = vpop.f32.mrf.mxu0
      %v568 = vadd.f32 0.0, %v567
      %569 = vmatmul.bf16.gmra.mxu0 %v496
      %v570 = vpop.f32.mrf.mxu0
      %v571 = vadd.f32 0.0, %v570
      %v572 = vpop.f32.mrf.mxu0
      %v573 = vadd.f32 0.0, %v572
      %574 = vmatmul.bf16.gmra.mxu0 %v499
      %v575 = vpop.f32.mrf.mxu0
      %v576 = vadd.f32 0.0, %v575
      %v577 = vpop.f32.mrf.mxu0
      %v578 = vadd.f32 0.0, %v577
      %579 = vmatmul.bf16.gmra.mxu0 %v502
      %v580 = vpop.f32.mrf.mxu0
      %v581 = vadd.f32 0.0, %v580
      %v582 = vpop.f32.mrf.mxu0
      %v583 = vadd.f32 0.0, %v582
      %584 = vmatmul.bf16.gmra.mxu0 %v505
      %v585 = vpop.f32.mrf.mxu0
      %v586 = vadd.f32 0.0, %v585
      %v587 = vpop.f32.mrf.mxu0
      %v588 = vadd.f32 0.0, %v587
      %589 = vmatmul.bf16.gmra.mxu0 %v508
      %v590 = vpop.f32.mrf.mxu0
      %v591 = vadd.f32 0.0, %v590
      %v592 = vpop.f32.mrf.mxu0
      %v593 = vadd.f32 0.0, %v592
      %594 = vmatmul.bf16.gmra.mxu0 %v511
      %v595 = vpop.f32.mrf.mxu0
      %v596 = vadd.f32 0.0, %v595
      %v597 = vpop.f32.mrf.mxu0
      %v598 = vadd.f32 0.0, %v597
      %599 = vmatmul.bf16.gmra.mxu0 %v514
      %v600 = vpop.f32.mrf.mxu0
      %v601 = vadd.f32 0.0, %v600
      %v602 = vpop.f32.mrf.mxu0
      %v603 = vadd.f32 0.0, %v602
      %604 = vdwg.mxu0
      %v605 = vadd.f32 %v299, %v526
      %v606 = vadd.f32 %v300, %v528
      %v607 = vadd.f32 %v301, %v531
      %v608 = vadd.f32 %v302, %v533
      %v609 = vadd.f32 %v303, %v536
      %v610 = vadd.f32 %v304, %v538
      %v611 = vadd.f32 %v305, %v541
      %v612 = vadd.f32 %v306, %v543
      %v613 = vadd.f32 %v307, %v546
      %v614 = vadd.f32 %v308, %v548
      %v615 = vadd.f32 %v309, %v551
      %v616 = vadd.f32 %v310, %v553
      %v617 = vadd.f32 %v311, %v556
      %v618 = vadd.f32 %v312, %v558
      %v619 = vadd.f32 %v313, %v561
      %v620 = vadd.f32 %v314, %v563
      %v621 = vadd.f32 %v315, %v566
      %v622 = vadd.f32 %v316, %v568
      %v623 = vadd.f32 %v317, %v571
      %v624 = vadd.f32 %v318, %v573
      %v625 = vadd.f32 %v319, %v576
      %v626 = vadd.f32 %v320, %v578
      %v627 = vadd.f32 %v321, %v581
      %v628 = vadd.f32 %v322, %v583
      %v629 = vadd.f32 %v323, %v586
      %v630 = vadd.f32 %v324, %v588
      %v631 = vadd.f32 %v325, %v591
      %v632 = vadd.f32 %v326, %v593
      %v633 = vadd.f32 %v327, %v596
      %v634 = vadd.f32 %v328, %v598
      %v635 = vadd.f32 %v329, %v601
      %v636 = vadd.f32 %v330, %v603
      %637 = vst [vmem:[#allocation2] sm:$0xff] %v605
      %638 = vst [vmem:[#allocation2 + $0x8] sm:$0xff] %v606
      %639 = vst [vmem:[#allocation2 + $0x10] sm:$0xff] %v607
      %640 = vst [vmem:[#allocation2 + $0x18] sm:$0xff] %v608
      %641 = vst [vmem:[#allocation2 + $0x20] sm:$0xff] %v609
      %642 = vst [vmem:[#allocation2 + $0x28] sm:$0xff] %v610
      %643 = vst [vmem:[#allocation2 + $0x30] sm:$0xff] %v611
      %644 = vst [vmem:[#allocation2 + $0x38] sm:$0xff] %v612
      %645 = vst [vmem:[#allocation2 + $0x40] sm:$0xff] %v613
      %646 = vst [vmem:[#allocation2 + $0x48] sm:$0xff] %v614
      %647 = vst [vmem:[#allocation2 + $0x50] sm:$0xff] %v615
      %648 = vst [vmem:[#allocation2 + $0x58] sm:$0xff] %v616
      %649 = vst [vmem:[#allocation2 + $0x60] sm:$0xff] %v617
      %650 = vst [vmem:[#allocation2 + $0x68] sm:$0xff] %v618
      %651 = vst [vmem:[#allocation2 + $0x70] sm:$0xff] %v619
      %652 = vst [vmem:[#allocation2 + $0x78] sm:$0xff] %v620
      %653 = vst [vmem:[#allocation2 + $0x80] sm:$0xff] %v621
      %654 = vst [vmem:[#allocation2 + $0x88] sm:$0xff] %v622
      %655 = vst [vmem:[#allocation2 + $0x90] sm:$0xff] %v623
      %656 = vst [vmem:[#allocation2 + $0x98] sm:$0xff] %v624
      %657 = vst [vmem:[#allocation2 + $0xa0] sm:$0xff] %v625
      %658 = vst [vmem:[#allocation2 + $0xa8] sm:$0xff] %v626
      %659 = vst [vmem:[#allocation2 + $0xb0] sm:$0xff] %v627
      %660 = vst [vmem:[#allocation2 + $0xb8] sm:$0xff] %v628
      %661 = vst [vmem:[#allocation2 + $0xc0] sm:$0xff] %v629
      %662 = vst [vmem:[#allocation2 + $0xc8] sm:$0xff] %v630
      %663 = vst [vmem:[#allocation2 + $0xd0] sm:$0xff] %v631
      %664 = vst [vmem:[#allocation2 + $0xd8] sm:$0xff] %v632
      %665 = vst [vmem:[#allocation2 + $0xe0] sm:$0xff] %v633
      %666 = vst [vmem:[#allocation2 + $0xe8] sm:$0xff] %v634
      %667 = vst [vmem:[#allocation2 + $0xf0] sm:$0xff] %v635
      %668 = vst [vmem:[#allocation2 + $0xf8] sm:$0xff] %v636
      // Predicated region
      $region37: #{vae_forward.15} parent=31 // pred_check
        %p669 = pneg %p263
      $region38: #{vae_forward.15} parent=31 // pred_check_branch
        %671 = sbr.rel (%p669) target = $region40
      $region39: #{vae_forward.15} parent=31 // pred_region
        %v672 = vld [vmem:[#allocation2] sm:$0xff]
        %v673 = vld [vmem:[#allocation2 + $0x8] sm:$0xff]
        %v674 = vld [vmem:[#allocation2 + $0x10] sm:$0xff]
        %v675 = vld [vmem:[#allocation2 + $0x18] sm:$0xff]
        %v676 = vld [vmem:[#allocation2 + $0x20] sm:$0xff]
        %v677 = vld [vmem:[#allocation2 + $0x28] sm:$0xff]
        %v678 = vld [vmem:[#allocation2 + $0x30] sm:$0xff]
        %v679 = vld [vmem:[#allocation2 + $0x38] sm:$0xff]
        %v680 = vld [vmem:[#allocation2 + $0x40] sm:$0xff]
        %v681 = vld [vmem:[#allocation2 + $0x48] sm:$0xff]
        %v682 = vld [vmem:[#allocation2 + $0x50] sm:$0xff]
        %v683 = vld [vmem:[#allocation2 + $0x58] sm:$0xff]
        %v684 = vld [vmem:[#allocation2 + $0x60] sm:$0xff]
        %v685 = vld [vmem:[#allocation2 + $0x68] sm:$0xff]
        %v686 = vld [vmem:[#allocation2 + $0x70] sm:$0xff]
        %v687 = vld [vmem:[#allocation2 + $0x78] sm:$0xff]
        %v688 = vld [vmem:[#allocation2 + $0x80] sm:$0xff]
        %v689 = vld [vmem:[#allocation2 + $0x88] sm:$0xff]
        %v690 = vld [vmem:[#allocation2 + $0x90] sm:$0xff]
        %v691 = vld [vmem:[#allocation2 + $0x98] sm:$0xff]
        %v692 = vld [vmem:[#allocation2 + $0xa0] sm:$0xff]
        %v693 = vld [vmem:[#allocation2 + $0xa8] sm:$0xff]
        %v694 = vld [vmem:[#allocation2 + $0xb0] sm:$0xff]
        %v695 = vld [vmem:[#allocation2 + $0xb8] sm:$0xff]
        %v696 = vld [vmem:[#allocation2 + $0xc0] sm:$0xff]
        %v697 = vld [vmem:[#allocation2 + $0xc8] sm:$0xff]
        %v698 = vld [vmem:[#allocation2 + $0xd0] sm:$0xff]
        %v699 = vld [vmem:[#allocation2 + $0xd8] sm:$0xff]
        %v700 = vld [vmem:[#allocation2 + $0xe0] sm:$0xff]
        %v701 = vld [vmem:[#allocation2 + $0xe8] sm:$0xff]
        %v702 = vld [vmem:[#allocation2 + $0xf0] sm:$0xff]
        %v703 = vld [vmem:[#allocation2 + $0xf8] sm:$0xff]
        %v704 = vld [vmem:[%s252] sm:$0x1]
        %v705 = vperm.slane %v704, 0
        %v706 = vmul.f32 %v672, %v705
        %v707 = vmul.f32 %v673, %v705
        %v708 = vmul.f32 %v674, %v705
        %v709 = vmul.f32 %v675, %v705
        %v710 = vmul.f32 %v676, %v705
        %v711 = vmul.f32 %v677, %v705
        %v712 = vmul.f32 %v678, %v705
        %v713 = vmul.f32 %v679, %v705
        %v714 = vmul.f32 %v680, %v705
        %v715 = vmul.f32 %v681, %v705
        %v716 = vmul.f32 %v682, %v705
        %v717 = vmul.f32 %v683, %v705
        %v718 = vmul.f32 %v684, %v705
        %v719 = vmul.f32 %v685, %v705
        %v720 = vmul.f32 %v686, %v705
        %v721 = vmul.f32 %v687, %v705
        %v722 = vmul.f32 %v688, %v705
        %v723 = vmul.f32 %v689, %v705
        %v724 = vmul.f32 %v690, %v705
        %v725 = vmul.f32 %v691, %v705
        %v726 = vmul.f32 %v692, %v705
        %v727 = vmul.f32 %v693, %v705
        %v728 = vmul.f32 %v694, %v705
        %v729 = vmul.f32 %v695, %v705
        %v730 = vmul.f32 %v696, %v705
        %v731 = vmul.f32 %v697, %v705
        %v732 = vmul.f32 %v698, %v705
        %v733 = vmul.f32 %v699, %v705
        %v734 = vmul.f32 %v700, %v705
        %v735 = vmul.f32 %v701, %v705
        %v736 = vmul.f32 %v702, %v705
        %v737 = vmul.f32 %v703, %v705
        %v738 = vld [vmem:[%s252 + $0x1] sm:$0x1]
        %v739 = vperm.slane %v738, 0
        %v740 = vadd.f32 %v706, %v739
        %v741 = vadd.f32 %v707, %v739
        %v742 = vadd.f32 %v708, %v739
        %v743 = vadd.f32 %v709, %v739
        %v744 = vadd.f32 %v710, %v739
        %v745 = vadd.f32 %v711, %v739
        %v746 = vadd.f32 %v712, %v739
        %v747 = vadd.f32 %v713, %v739
        %v748 = vadd.f32 %v714, %v739
        %v749 = vadd.f32 %v715, %v739
        %v750 = vadd.f32 %v716, %v739
        %v751 = vadd.f32 %v717, %v739
        %v752 = vadd.f32 %v718, %v739
        %v753 = vadd.f32 %v719, %v739
        %v754 = vadd.f32 %v720, %v739
        %v755 = vadd.f32 %v721, %v739
        %v756 = vadd.f32 %v722, %v739
        %v757 = vadd.f32 %v723, %v739
        %v758 = vadd.f32 %v724, %v739
        %v759 = vadd.f32 %v725, %v739
        %v760 = vadd.f32 %v726, %v739
        %v761 = vadd.f32 %v727, %v739
        %v762 = vadd.f32 %v728, %v739
        %v763 = vadd.f32 %v729, %v739
        %v764 = vadd.f32 %v730, %v739
        %v765 = vadd.f32 %v731, %v739
        %v766 = vadd.f32 %v732, %v739
        %v767 = vadd.f32 %v733, %v739
        %v768 = vadd.f32 %v734, %v739
        %v769 = vadd.f32 %v735, %v739
        %v770 = vadd.f32 %v736, %v739
        %v771 = vadd.f32 %v737, %v739
        %v772 = vtanh.pop %v740
        %v773 = vtanh.pop %v741
        %v774 = vtanh.pop %v742
        %v775 = vtanh.pop %v743
        %v776 = vtanh.pop %v744
        %v777 = vtanh.pop %v745
        %v778 = vtanh.pop %v746
        %v779 = vtanh.pop %v747
        %v780 = vtanh.pop %v748
        %v781 = vtanh.pop %v749
        %v782 = vtanh.pop %v750
        %v783 = vtanh.pop %v751
        %v784 = vtanh.pop %v752
        %v785 = vtanh.pop %v753
        %v786 = vtanh.pop %v754
        %v787 = vtanh.pop %v755
        %v788 = vtanh.pop %v756
        %v789 = vtanh.pop %v757
        %v790 = vtanh.pop %v758
        %v791 = vtanh.pop %v759
        %v792 = vtanh.pop %v760
        %v793 = vtanh.pop %v761
        %v794 = vtanh.pop %v762
        %v795 = vtanh.pop %v763
        %v796 = vtanh.pop %v764
        %v797 = vtanh.pop %v765
        %v798 = vtanh.pop %v766
        %v799 = vtanh.pop %v767
        %v800 = vtanh.pop %v768
        %v801 = vtanh.pop %v769
        %v802 = vtanh.pop %v770
        %v803 = vtanh.pop %v771
        %804 = vst [vmem:[%s260] sm:$0xff] %v772
        %805 = vst [vmem:[%s260 + $0x8] sm:$0xff] %v773
        %806 = vst [vmem:[%s260 + $0x10] sm:$0xff] %v774
        %807 = vst [vmem:[%s260 + $0x18] sm:$0xff] %v775
        %808 = vst [vmem:[%s260 + $0x20] sm:$0xff] %v776
        %809 = vst [vmem:[%s260 + $0x28] sm:$0xff] %v777
        %810 = vst [vmem:[%s260 + $0x30] sm:$0xff] %v778
        %811 = vst [vmem:[%s260 + $0x38] sm:$0xff] %v779
        %812 = vst [vmem:[%s260 + $0x40] sm:$0xff] %v780
        %813 = vst [vmem:[%s260 + $0x48] sm:$0xff] %v781
        %814 = vst [vmem:[%s260 + $0x50] sm:$0xff] %v782
        %815 = vst [vmem:[%s260 + $0x58] sm:$0xff] %v783
        %816 = vst [vmem:[%s260 + $0x60] sm:$0xff] %v784
        %817 = vst [vmem:[%s260 + $0x68] sm:$0xff] %v785
        %818 = vst [vmem:[%s260 + $0x70] sm:$0xff] %v786
        %819 = vst [vmem:[%s260 + $0x78] sm:$0xff] %v787
        %820 = vst [vmem:[%s260 + $0x80] sm:$0xff] %v788
        %821 = vst [vmem:[%s260 + $0x88] sm:$0xff] %v789
        %822 = vst [vmem:[%s260 + $0x90] sm:$0xff] %v790
        %823 = vst [vmem:[%s260 + $0x98] sm:$0xff] %v791
        %824 = vst [vmem:[%s260 + $0xa0] sm:$0xff] %v792
        %825 = vst [vmem:[%s260 + $0xa8] sm:$0xff] %v793
        %826 = vst [vmem:[%s260 + $0xb0] sm:$0xff] %v794
        %827 = vst [vmem:[%s260 + $0xb8] sm:$0xff] %v795
        %828 = vst [vmem:[%s260 + $0xc0] sm:$0xff] %v796
        %829 = vst [vmem:[%s260 + $0xc8] sm:$0xff] %v797
        %830 = vst [vmem:[%s260 + $0xd0] sm:$0xff] %v798
        %831 = vst [vmem:[%s260 + $0xd8] sm:$0xff] %v799
        %832 = vst [vmem:[%s260 + $0xe0] sm:$0xff] %v800
        %833 = vst [vmem:[%s260 + $0xe8] sm:$0xff] %v801
        %834 = vst [vmem:[%s260 + $0xf0] sm:$0xff] %v802
        %835 = vst [vmem:[%s260 + $0xf8] sm:$0xff] %v803
      $region40: #{vae_forward.15} parent=31 // pred_fallthru
        _
      %s836 = smul.u32 32, %s19
      %p837 = scmp.lt.s32.totalorder %s836, 63
      %s838 = scalar_select %p837, %s836, 63
      %p839 = scmp.lt.s32.totalorder %s20, 0
      %s840 = scalar_select %p839, %s20, 0
      %s841 = sadd.s32 %s840, %s838
      %s842 = smul.addr %s841, 8
      %s843 = scalar_lea.vmem %s3, %s842
      // Predicated region
      $region41: #{vae_forward.15} parent=31 // pred_check
        %p844 = pneg %p135
      $region42: #{vae_forward.15} parent=31 // pred_check_branch
        %846 = sbr.rel (%p844) target = $region44
      $region43: #{vae_forward.15} parent=31 // pred_region
        %s847 = smul.u32 32, %s19
      $region44: #{vae_forward.15} parent=31 // pred_fallthru
        _
    $region32: #{vae_forward.15} parent=5 // pred_fallthru
      _
    %p848 = scmp.le.s32.totalorder 2, %s9
    // Predicated region
    $region45: #{vae_forward.15} parent=5 // pred_check
      %p849 = pneg %p848
    $region46: #{vae_forward.15} parent=5 // pred_check_branch
      %851 = sbr.rel (%p849) target = $region48
    $region47: #{vae_forward.15} parent=5 // pred_region
      %s852 = ssub.s32 %s9, 2
      // Predicated region
      $region49: #{vae_forward.15} parent=47 // pred_check
        %p853 = pneg %p141
      $region50: #{vae_forward.15} parent=47 // pred_check_branch
        %855 = sbr.rel (%p853) target = $region52
      $region51: #{vae_forward.15} parent=47 // pred_region
        %s856 = smul.u32 32, %s22
        %p857 = scmp.lt.s32.totalorder %s856, 63
        %s858 = scalar_select %p857, %s856, 63
        %p859 = scmp.lt.s32.totalorder %s23, 0
        %s860 = scalar_select %p859, %s23, 0
        %s861 = sadd.s32 %s860, %s858
        %s862 = smul.addr %s861, 8
        %s863 = scalar_lea.vmem %s3, %s862
      $region52: #{vae_forward.15} parent=47 // pred_fallthru
        _
    $region48: #{vae_forward.15} parent=5 // pred_fallthru
      _
  $region6: #{vae_forward.15} parent=0 // loop_footer
    %s13 = sadd.s32 1, %s9
  $region7: #{vae_forward.15} parent=0 // loop_footer_branch
    %8 = sbr.rel target = $region3
  $region8: #{vae_forward.15} parent=0 // loop_exit
    _

// kernel: vae_forward.14
$region0: #{vae_forward.14}
  #allocation0 [shape = 'u32[]', space=smem, size = 0x4, offset = 0x4, fixed_abs, tag = 'smem constant byte address 0x4 - core index']
  #allocation1 [shape = 'u32[72,128]{1,0:T(1,128)}', space=vmem, size = 0x9000, scoped, tag = 'internal scratch']
  #allocation2 [shape = 'f32[256,128]{1,0:T(8,128)}', space=vmem, size = 0x20000, scoped, tag = 'scratch operand']
  %s0 = inlined_call_operand.vmem [shape: bf16[512,48], index: 0, kind: input, shape index: {}]
  %s1 = inlined_call_operand.vmem [shape: bf16[48,128], index: 1, kind: input, shape index: {}]
  %s2 = inlined_call_operand.vmem [shape: f32[2,128], index: 2, kind: input, shape index: {}]
  %s3 = inlined_call_operand.vmem [shape: bf16[512,128], index: 3, kind: output, shape index: {}]
  %s4 = sld [smem:[#allocation0]]
  $region53: #{vae_forward.14} parent=0
    _
  %s6 = ssub.s32 1, %s4
  %s7 = scalar_select 0, %s6, %s4
  loop: start=0, step=1, limit=4
  $region2: #{vae_forward.14} parent=0 // loop_pre_header
    _
  $region3: #{vae_forward.14} parent=0 // loop_header
    %s9 = sphi 0, %s13
    %p10 = scmp.ge.s32.totalorder %s9, 4
    %s16 = sphi 0, %s35
    %s17 = sphi 0, %s31
    %s18 = sphi 0, %s27
    %s19 = sphi 0, %s16
    %s20 = sphi 0, %s17
    %s21 = sphi 0, %s18
    %s22 = sphi 0, %s19
    %s23 = sphi 0, %s20
    %s24 = sphi 0, %s21
    %s40 = sphi 0, %s42
    %s43 = sphi 0, %s40
    %s44 = sphi 0, %s43
    %s60 = sphi 0, %s44
    %s68 = sphi 0, %s70
    %s71 = sphi 0, %s68
    %s72 = sphi 0, %s71
    %s88 = sphi 0, %s72
    %s94 = sphi 0, %s96
    %s97 = sphi 0, %s94
    %s98 = sphi 0, %s97
    %s114 = sphi 0, %s98
    %s122 = sphi 0, %s124
    %s125 = sphi 0, %s122
    %s126 = sphi 0, %s125
    %s142 = sphi 0, %s126
  $region4: #{vae_forward.14} parent=0 // loop_header_branch
    %12 = sbr.rel (%p10) target = $region8
  $region5: #{vae_forward.14} parent=0 // loop_body
    %s14 = ssub.s32 %s9, 1
    %s15 = ssub.s32 %s9, 2
    %s25 = sadd.s32 1, %s18
    %p26 = scmp.ge.s32.totalorder %s25, 1
    %s27 = scalar_select %p26, 0, %s25
    %s28 = sadd.s32 1, %s17
    %s29 = scalar_select %p26, %s28, %s17
    %p30 = scmp.ge.s32.totalorder %s29, 1
    %s31 = scalar_select %p30, 0, %s29
    %s32 = sadd.s32 1, %s16
    %s33 = scalar_select %p30, %s32, %s16
    %p34 = scmp.ge.s32.totalorder %s33, 2
    %s35 = scalar_select %p34, 0, %s33
    %s36 = ssub.s32 %s16, %s35
    %s37 = ssub.s32 %s18, %s27
    %s38 = sor.u32 %s36, %s37
    %p39 = scmp.eq.s32.totalorder %s38, 0
    %s41 = sadd.s32 %s40, 1
    %s42 = scalar_select %p39, %s40, %s41
    %p45 = pneg %p39
    %p46 = scmp.eq.s32.totalorder %s9, 1
    %p47 = por %p45, %p46
    %p48 = scmp.ne.s32.totalorder %s40, %s43
    %p49 = scmp.eq.s32.totalorder %s9, 0
    %p50 = por %p48, %p49
    %p51 = scmp.ne.s32.totalorder %s40, %s43
    %p52 = scmp.eq.s32.totalorder %s14, 1
    %p53 = por %p51, %p52
    %p54 = scmp.ne.s32.totalorder %s43, %s44
    %p55 = scmp.eq.s32.totalorder %s14, 0
    %p56 = por %p54, %p55
    %p57 = scmp.ne.s32.totalorder %s43, %s44
    %p58 = scmp.eq.s32.totalorder %s15, 1
    %p59 = por %p57, %p58
    %p61 = scmp.ne.s32.totalorder %s44, %s60
    %p62 = scmp.eq.s32.totalorder %s15, 0
    %p63 = por %p61, %p62
    %s64 = ssub.s32 %s18, %s27
    %s65 = ssub.s32 %s17, %s31
    %s66 = sor.u32 %s64, %s65
    %p67 = scmp.eq.s32.totalorder %s66, 0
    %s69 = sadd.s32 %s68, 1
    %s70 = scalar_select %p67, %s68, %s69
    %p73 = pneg %p67
    %p74 = scmp.eq.s32.totalorder %s9, 1
    %p75 = por %p73, %p74
    %p76 = scmp.ne.s32.totalorder %s68, %s71
    %p77 = scmp.eq.s32.totalorder %s9, 0
    %p78 = por %p76, %p77
    %p79 = scmp.ne.s32.totalorder %s68, %s71
    %p80 = scmp.eq.s32.totalorder %s14, 1
    %p81 = por %p79, %p80
    %p82 = scmp.ne.s32.totalorder %s71, %s72
    %p83 = scmp.eq.s32.totalorder %s14, 0
    %p84 = por %p82, %p83
    %p85 = scmp.ne.s32.totalorder %s71, %s72
    %p86 = scmp.eq.s32.totalorder %s15, 1
    %p87 = por %p85, %p86
    %p89 = scmp.ne.s32.totalorder %s72, %s88
    %p90 = scmp.eq.s32.totalorder %s15, 0
    %p91 = por %p89, %p90
    %s92 = ssub.s32 %s17, %s31
    %p93 = scmp.eq.s32.totalorder %s92, 0
    %s95 = sadd.s32 %s94, 1
    %s96 = scalar_select %p93, %s94, %s95
    %p99 = pneg %p93
    %p100 = scmp.eq.s32.totalorder %s9, 1
    %p101 = por %p99, %p100
    %p102 = scmp.ne.s32.totalorder %s94, %s97
    %p103 = scmp.eq.s32.totalorder %s9, 0
    %p104 = por %p102, %p103
    %p105 = scmp.ne.s32.totalorder %s94, %s97
    %p106 = scmp.eq.s32.totalorder %s14, 1
    %p107 = por %p105, %p106
    %p108 = scmp.ne.s32.totalorder %s97, %s98
    %p109 = scmp.eq.s32.totalorder %s14, 0
    %p110 = por %p108, %p109
    %p111 = scmp.ne.s32.totalorder %s97, %s98
    %p112 = scmp.eq.s32.totalorder %s15, 1
    %p113 = por %p111, %p112
    %p115 = scmp.ne.s32.totalorder %s98, %s114
    %p116 = scmp.eq.s32.totalorder %s15, 0
    %p117 = por %p115, %p116
    %s118 = ssub.s32 %s16, %s35
    %s119 = ssub.s32 %s17, %s31
    %s120 = sor.u32 %s118, %s119
    %p121 = scmp.eq.s32.totalorder %s120, 0
    %s123 = sadd.s32 %s122, 1
    %s124 = scalar_select %p121, %s122, %s123
    %p127 = pneg %p121
    %p128 = scmp.eq.s32.totalorder %s9, 1
    %p129 = por %p127, %p128
    %p130 = scmp.ne.s32.totalorder %s122, %s125
    %p131 = scmp.eq.s32.totalorder %s9, 0
    %p132 = por %p130, %p131
    %p133 = scmp.ne.s32.totalorder %s122, %s125
    %p134 = scmp.eq.s32.totalorder %s14, 1
    %p135 = por %p133, %p134
    %p136 = scmp.ne.s32.totalorder %s125, %s126
    %p137 = scmp.eq.s32.totalorder %s14, 0
    %p138 = por %p136, %p137
    %p139 = scmp.ne.s32.totalorder %s125, %s126
    %p140 = scmp.eq.s32.totalorder %s15, 1
    %p141 = por %p139, %p140
    %p143 = scmp.ne.s32.totalorder %s126, %s142
    %p144 = scmp.eq.s32.totalorder %s15, 0
    %p145 = por %p143, %p144
    %p146 = scmp.le.s32.totalorder 1, %s9
    %p147 = scmp.lt.s32.totalorder %s9, 3
    %p148 = pnand %p146, %p147
    %p149 = pneg %p148
    // Predicated region
    $region9: #{vae_forward.14} parent=5 // pred_check
      _
    $region10: #{vae_forward.14} parent=5 // pred_check_branch
      %151 = sbr.rel (%p148) target = $region12
    $region11: #{vae_forward.14} parent=5 // pred_region
      %s152 = ssub.s32 %s9, 1
      // Predicated region
      $region13: #{vae_forward.14} parent=11 // pred_check
        %p153 = pneg %p84
      $region14: #{vae_forward.14} parent=11 // pred_check_branch
        %155 = sbr.rel (%p153) target = $region16
      $region15: #{vae_forward.14} parent=11 // pred_region
        %s156 = smul.u32 6, %s21
        %p157 = scmp.lt.s32.totalorder %s156, 5
        %s158 = scalar_select %p157, %s156, 5
        %p159 = scmp.lt.s32.totalorder %s20, 0
        %s160 = scalar_select %p159, %s20, 0
        %s161 = sadd.s32 %s160, %s158
        %s162 = smul.addr %s161, 4
        %s163 = scalar_lea.vmem %s1, %s162
        %s164 = smul.u32 6, %s21
      $region16: #{vae_forward.14} parent=11 // pred_fallthru
        _
      // Predicated region
      $region17: #{vae_forward.14} parent=11 // pred_check
        %p165 = pneg %p110
      $region18: #{vae_forward.14} parent=11 // pred_check_branch
        %167 = sbr.rel (%p165) target = $region20
      $region19: #{vae_forward.14} parent=11 // pred_region
        %p168 = scmp.lt.s32.totalorder %s20, 0
        %s169 = scalar_select %p168, %s20, 0
        %s170 = smul.addr %s169, 2
        %s171 = scalar_lea.vmem %s2, %s170
      $region20: #{vae_forward.14} parent=11 // pred_fallthru
        _
    $region12: #{vae_forward.14} parent=5 // pred_fallthru
      _
    %p172 = scmp.lt.s32.totalorder %s9, 2
    // Predicated region
    $region21: #{vae_forward.14} parent=5 // pred_check
      %p173 = pneg %p172
    $region22: #{vae_forward.14} parent=5 // pred_check_branch
      %175 = sbr.rel (%p173) target = $region24
    $region23: #{vae_forward.14} parent=5 // pred_region
      // Predicated region
      $region25: #{vae_forward.14} parent=23 // pred_check
        %p176 = pneg %p50
      $region26: #{vae_forward.14} parent=23 // pred_check_branch
        %178 = sbr.rel (%p176) target = $region28
      $region27: #{vae_forward.14} parent=23 // pred_region
        %s179 = smul.u32 32, %s16
        %p180 = scmp.lt.s32.totalorder %s179, 63
        %s181 = scalar_select %p180, %s179, 63
        %p182 = scmp.lt.s32.totalorder %s18, 0
        %s183 = scalar_select %p182, %s18, 0
        %s184 = sadd.s32 %s183, %s181
        %s185 = smul.addr %s184, 4
        %s186 = scalar_lea.vmem %s0, %s185
        %s187 = smul.u32 32, %s16
      $region28: #{vae_forward.14} parent=23 // pred_fallthru
        _
    $region24: #{vae_forward.14} parent=5 // pred_fallthru
      _
    %p188 = scmp.le.s32.totalorder 1, %s9
    %p189 = scmp.lt.s32.totalorder %s9, 3
    %p190 = pnand %p188, %p189
    %p191 = pneg %p190
    // Predicated region
    $region29: #{vae_forward.14} parent=5 // pred_check
      _
    $region30: #{vae_forward.14} parent=5 // pred_check_branch
      %193 = sbr.rel (%p190) target = $region32
    $region31: #{vae_forward.14} parent=5 // pred_region
      %s194 = ssub.s32 %s9, 1
      %s195 = smul.u32 32, %s19
      %p196 = scmp.lt.s32.totalorder %s195, 63
      %s197 = scalar_select %p196, %s195, 63
      %p198 = scmp.lt.s32.totalorder %s21, 0
      %s199 = scalar_select %p198, %s21, 0
      %s200 = sadd.s32 %s199, %s197
      %s201 = smul.addr %s200, 4
      %s202 = scalar_lea.vmem %s0, %s201
      %p203 = pneg %p56
      %p204 = pneg %p53
      %s205 = smul.u32 6, %s21
      %p206 = scmp.lt.s32.totalorder %s205, 5
      %s207 = scalar_select %p206, %s205, 5
      %p208 = scmp.lt.s32.totalorder %s20, 0
      %s209 = scalar_select %p208, %s20, 0
      %s210 = sadd.s32 %s209, %s207
      %s211 = smul.addr %s210, 4
      %s212 = scalar_lea.vmem %s1, %s211
      %p213 = pneg %p84
      %p214 = pneg %p81
      %p215 = scmp.lt.s32.totalorder %s20, 0
      %s216 = scalar_select %p215, %s20, 0
      %s217 = smul.addr %s216, 2
      %s218 = scalar_lea.vmem %s2, %s217
      %p219 = pneg %p110
      %p220 = pneg %p107
      %p221 = pneg %p138
      %p222 = pneg %p135
      %s223 = smul.u32 32, %s19
      %p224 = scmp.lt.s32.totalorder %s223, 63
      %s225 = scalar_select %p224, %s223, 63
      %p226 = scmp.lt.s32.totalorder %s20, 0
      %s227 = scalar_select %p226, %s20, 0
      %s228 = sadd.s32 %s227, %s225
      %s229 = smul.addr %s228, 4
      %s230 = scalar_lea.vmem %s3, %s229
      %s231 = smul.u32 32, %s19
      %p232 = scmp.lt.s32.totalorder %s231, 63
      %s233 = scalar_select %p232, %s231, 63
      %p234 = scmp.lt.s32.totalorder %s21, 0
      %s235 = scalar_select %p234, %s21, 0
      %s236 = sadd.s32 %s235, %s233
      %s237 = smul.addr %s236, 4
      %s238 = scalar_lea.vmem %s0, %s237
      %s239 = smul.u32 32, %s19
      %s240 = smul.u32 6, %s21
      %p241 = scmp.lt.s32.totalorder %s240, 5
      %s242 = scalar_select %p241, %s240, 5
      %p243 = scmp.lt.s32.totalorder %s20, 0
      %s244 = scalar_select %p243, %s20, 0
      %s245 = sadd.s32 %s244, %s242
      %s246 = smul.addr %s245, 4
      %s247 = scalar_lea.vmem %s1, %s246
      %s248 = smul.u32 6, %s21
      %p249 = scmp.lt.s32.totalorder %s20, 0
      %s250 = scalar_select %p249, %s20, 0
      %s251 = smul.addr %s250, 2
      %s252 = scalar_lea.vmem %s2, %s251
      %s253 = smul.u32 32, %s19
      %p254 = scmp.lt.s32.totalorder %s253, 63
      %s255 = scalar_select %p254, %s253, 63
      %p256 = scmp.lt.s32.totalorder %s20, 0
      %s257 = scalar_select %p256, %s20, 0
      %s258 = sadd.s32 %s257, %s255
      %s259 = smul.addr %s258, 4
      %s260 = scalar_lea.vmem %s3, %s259
      %s261 = smul.u32 32, %s19
      %p263 = scmp.eq.s32.totalorder %s21, 0
      // Predicated region
      $region33: #{vae_forward.14} parent=31 // pred_check
        %p264 = pneg %p263
      $region34: #{vae_forward.14} parent=31 // pred_check_branch
        %266 = sbr.rel (%p264) target = $region36
      $region35: #{vae_forward.14} parent=31 // pred_region
        %267 = vst [vmem:[#allocation2] sm:$0xff] 0.0
        %268 = vst [vmem:[#allocation2 + $0x8] sm:$0xff] 0.0
        %269 = vst [vmem:[#allocation2 + $0x10] sm:$0xff] 0.0
        %270 = vst [vmem:[#allocation2 + $0x18] sm:$0xff] 0.0
        %271 = vst [vmem:[#allocation2 + $0x20] sm:$0xff] 0.0
        %272 = vst [vmem:[#allocation2 + $0x28] sm:$0xff] 0.0
        %273 = vst [vmem:[#allocation2 + $0x30] sm:$0xff] 0.0
        %274 = vst [vmem:[#allocation2 + $0x38] sm:$0xff] 0.0
        %275 = vst [vmem:[#allocation2 + $0x40] sm:$0xff] 0.0
        %276 = vst [vmem:[#allocation2 + $0x48] sm:$0xff] 0.0
        %277 = vst [vmem:[#allocation2 + $0x50] sm:$0xff] 0.0
        %278 = vst [vmem:[#allocation2 + $0x58] sm:$0xff] 0.0
        %279 = vst [vmem:[#allocation2 + $0x60] sm:$0xff] 0.0
        %280 = vst [vmem:[#allocation2 + $0x68] sm:$0xff] 0.0
        %281 = vst [vmem:[#allocation2 + $0x70] sm:$0xff] 0.0
        %282 = vst [vmem:[#allocation2 + $0x78] sm:$0xff] 0.0
        %283 = vst [vmem:[#allocation2 + $0x80] sm:$0xff] 0.0
        %284 = vst [vmem:[#allocation2 + $0x88] sm:$0xff] 0.0
        %285 = vst [vmem:[#allocation2 + $0x90] sm:$0xff] 0.0
        %286 = vst [vmem:[#allocation2 + $0x98] sm:$0xff] 0.0
        %287 = vst [vmem:[#allocation2 + $0xa0] sm:$0xff] 0.0
        %288 = vst [vmem:[#allocation2 + $0xa8] sm:$0xff] 0.0
        %289 = vst [vmem:[#allocation2 + $0xb0] sm:$0xff] 0.0
        %290 = vst [vmem:[#allocation2 + $0xb8] sm:$0xff] 0.0
        %291 = vst [vmem:[#allocation2 + $0xc0] sm:$0xff] 0.0
        %292 = vst [vmem:[#allocation2 + $0xc8] sm:$0xff] 0.0
        %293 = vst [vmem:[#allocation2 + $0xd0] sm:$0xff] 0.0
        %294 = vst [vmem:[#allocation2 + $0xd8] sm:$0xff] 0.0
        %295 = vst [vmem:[#allocation2 + $0xe0] sm:$0xff] 0.0
        %296 = vst [vmem:[#allocation2 + $0xe8] sm:$0xff] 0.0
        %297 = vst [vmem:[#allocation2 + $0xf0] sm:$0xff] 0.0
        %298 = vst [vmem:[#allocation2 + $0xf8] sm:$0xff] 0.0
      $region36: #{vae_forward.14} parent=31 // pred_fallthru
        _
      %v299 = vld [vmem:[#allocation2] sm:$0xff]
      %v300 = vld [vmem:[#allocation2 + $0x8] sm:$0xff]
      %v301 = vld [vmem:[#allocation2 + $0x10] sm:$0xff]
      %v302 = vld [vmem:[#allocation2 + $0x18] sm:$0xff]
      %v303 = vld [vmem:[#allocation2 + $0x20] sm:$0xff]
      %v304 = vld [vmem:[#allocation2 + $0x28] sm:$0xff]
      %v305 = vld [vmem:[#allocation2 + $0x30] sm:$0xff]
      %v306 = vld [vmem:[#allocation2 + $0x38] sm:$0xff]
      %v307 = vld [vmem:[#allocation2 + $0x40] sm:$0xff]
      %v308 = vld [vmem:[#allocation2 + $0x48] sm:$0xff]
      %v309 = vld [vmem:[#allocation2 + $0x50] sm:$0xff]
      %v310 = vld [vmem:[#allocation2 + $0x58] sm:$0xff]
      %v311 = vld [vmem:[#allocation2 + $0x60] sm:$0xff]
      %v312 = vld [vmem:[#allocation2 + $0x68] sm:$0xff]
      %v313 = vld [vmem:[#allocation2 + $0x70] sm:$0xff]
      %v314 = vld [vmem:[#allocation2 + $0x78] sm:$0xff]
      %v315 = vld [vmem:[#allocation2 + $0x80] sm:$0xff]
      %v316 = vld [vmem:[#allocation2 + $0x88] sm:$0xff]
      %v317 = vld [vmem:[#allocation2 + $0x90] sm:$0xff]
      %v318 = vld [vmem:[#allocation2 + $0x98] sm:$0xff]
      %v319 = vld [vmem:[#allocation2 + $0xa0] sm:$0xff]
      %v320 = vld [vmem:[#allocation2 + $0xa8] sm:$0xff]
      %v321 = vld [vmem:[#allocation2 + $0xb0] sm:$0xff]
      %v322 = vld [vmem:[#allocation2 + $0xb8] sm:$0xff]
      %v323 = vld [vmem:[#allocation2 + $0xc0] sm:$0xff]
      %v324 = vld [vmem:[#allocation2 + $0xc8] sm:$0xff]
      %v325 = vld [vmem:[#allocation2 + $0xd0] sm:$0xff]
      %v326 = vld [vmem:[#allocation2 + $0xd8] sm:$0xff]
      %v327 = vld [vmem:[#allocation2 + $0xe0] sm:$0xff]
      %v328 = vld [vmem:[#allocation2 + $0xe8] sm:$0xff]
      %v329 = vld [vmem:[#allocation2 + $0xf0] sm:$0xff]
      %v330 = vld [vmem:[#allocation2 + $0xf8] sm:$0xff]
      %v331 = vld [vmem:[%s238] sm:$0xf]
      %v332 = vld [vmem:[%s238 + $0x4] sm:$0xf]
      %v333 = vld [vmem:[%s238 + $0x8] sm:$0xf]
      %v334 = vld [vmem:[%s238 + $0xc] sm:$0xf]
      %v335 = vld [vmem:[%s238 + $0x10] sm:$0xf]
      %v336 = vld [vmem:[%s238 + $0x14] sm:$0xf]
      %v337 = vld [vmem:[%s238 + $0x18] sm:$0xf]
      %v338 = vld [vmem:[%s238 + $0x1c] sm:$0xf]
      %v339 = vld [vmem:[%s238 + $0x20] sm:$0xf]
      %v340 = vld [vmem:[%s238 + $0x24] sm:$0xf]
      %v341 = vld [vmem:[%s238 + $0x28] sm:$0xf]
      %v342 = vld [vmem:[%s238 + $0x2c] sm:$0xf]
      %v343 = vld [vmem:[%s238 + $0x30] sm:$0xf]
      %v344 = vld [vmem:[%s238 + $0x34] sm:$0xf]
      %v345 = vld [vmem:[%s238 + $0x38] sm:$0xf]
      %v346 = vld [vmem:[%s238 + $0x3c] sm:$0xf]
      %v347 = vld [vmem:[%s238 + $0x40] sm:$0xf]
      %v348 = vld [vmem:[%s238 + $0x44] sm:$0xf]
      %v349 = vld [vmem:[%s238 + $0x48] sm:$0xf]
      %v350 = vld [vmem:[%s238 + $0x4c] sm:$0xf]
      %v351 = vld [vmem:[%s238 + $0x50] sm:$0xf]
      %v352 = vld [vmem:[%s238 + $0x54] sm:$0xf]
      %v353 = vld [vmem:[%s238 + $0x58] sm:$0xf]
      %v354 = vld [vmem:[%s238 + $0x5c] sm:$0xf]
      %v355 = vld [vmem:[%s238 + $0x60] sm:$0xf]
      %v356 = vld [vmem:[%s238 + $0x64] sm:$0xf]
      %v357 = vld [vmem:[%s238 + $0x68] sm:$0xf]
      %v358 = vld [vmem:[%s238 + $0x6c] sm:$0xf]
      %v359 = vld [vmem:[%s238 + $0x70] sm:$0xf]
      %v360 = vld [vmem:[%s238 + $0x74] sm:$0xf]
      %v361 = vld [vmem:[%s238 + $0x78] sm:$0xf]
      %v362 = vld [vmem:[%s238 + $0x7c] sm:$0xf]
      %v363 = vld [vmem:[%s247] sm:$0xf]
      %v364 = vld [vmem:[%s247 + $0x4] sm:$0xf]
      %v365 = vld [vmem:[%s247 + $0x8] sm:$0xf]
      %v366 = vld [vmem:[%s247 + $0xc] sm:$0xf]
      %v367 = vld [vmem:[%s247 + $0x10] sm:$0xf]
      %v368 = vld [vmem:[%s247 + $0x14] sm:$0xf]
      %v401 = vunpack.c.l.b16 %v331
      %v402 = vunpack.c.l.b16 %v332
      %v403 = vunpack.c.l.b16 %v333
      %v404 = vunpack.c.l.b16 %v334
      %v405 = vunpack.c.l.b16 %v335
      %v406 = vunpack.c.l.b16 %v336
      %v407 = vunpack.c.l.b16 %v337
      %v408 = vunpack.c.l.b16 %v338
      %v409 = vunpack.c.l.b16 %v339
      %v410 = vunpack.c.l.b16 %v340
      %v411 = vunpack.c.l.b16 %v341
      %v412 = vunpack.c.l.b16 %v342
      %v413 = vunpack.c.l.b16 %v343
      %v414 = vunpack.c.l.b16 %v344
      %v415 = vunpack.c.l.b16 %v345
      %v416 = vunpack.c.l.b16 %v346
      %v417 = vunpack.c.l.b16 %v347
      %v418 = vunpack.c.l.b16 %v348
      %v419 = vunpack.c.l.b16 %v349
      %v420 = vunpack.c.l.b16 %v350
      %v421 = vunpack.c.l.b16 %v351
      %v422 = vunpack.c.l.b16 %v352
      %v423 = vunpack.c.l.b16 %v353
      %v424 = vunpack.c.l.b16 %v354
      %v425 = vunpack.c.l.b16 %v355
      %v426 = vunpack.c.l.b16 %v356
      %v427 = vunpack.c.l.b16 %v357
      %v428 = vunpack.c.l.b16 %v358
      %v429 = vunpack.c.l.b16 %v359
      %v430 = vunpack.c.l.b16 %v360
      %v431 = vunpack.c.l.b16 %v361
      %v432 = vunpack.c.l.b16 %v362
      %v433 = vpack.c.b16 %v402, %v401
      %v434 = vpack.c.b16 %v404, %v403
      %v435 = vpack.c.b16 %v406, %v405
      %v436 = vpack.c.b16 %v408, %v407
      %v437 = vpack.c.b16 %v410, %v409
      %v438 = vpack.c.b16 %v412, %v411
      %v439 = vpack.c.b16 %v414, %v413
      %v440 = vpack.c.b16 %v416, %v415
      %v441 = vpack.c.b16 %v418, %v417
      %v442 = vpack.c.b16 %v420, %v419
      %v443 = vpack.c.b16 %v422, %v421
      %v444 = vpack.c.b16 %v424, %v423
      %v445 = vpack.c.b16 %v426, %v425
      %v446 = vpack.c.b16 %v428, %v427
      %v447 = vpack.c.b16 %v430, %v429
      %v448 = vpack.c.b16 %v432, %v431
      %v455 = vunpack.c.l.b16 %v363
      %v456 = vunpack.c.l.b16 %v364
      %v457 = vunpack.c.l.b16 %v365
      %v458 = vunpack.c.l.b16 %v366
      %v459 = vunpack.c.l.b16 %v367
      %v460 = vunpack.c.l.b16 %v368
      %v461 = vpack.c.b16 %v456, %v455
      %v462 = vpack.c.b16 %v458, %v457
      %v463 = vpack.c.b16 %v460, %v459
      %vm467 = vcmask 392192
      %v469 = vsel %vm467, %v433, 0
      %v472 = vsel %vm467, %v434, 0
      %v475 = vsel %vm467, %v435, 0
      %v478 = vsel %vm467, %v436, 0
      %v481 = vsel %vm467, %v437, 0
      %v484 = vsel %vm467, %v438, 0
      %v487 = vsel %vm467, %v439, 0
      %v490 = vsel %vm467, %v440, 0
      %v493 = vsel %vm467, %v441, 0
      %v496 = vsel %vm467, %v442, 0
      %v499 = vsel %vm467, %v443, 0
      %v502 = vsel %vm467, %v444, 0
      %v505 = vsel %vm467, %v445, 0
      %v508 = vsel %vm467, %v446, 0
      %v511 = vsel %vm467, %v447, 0
      %v514 = vsel %vm467, %v448, 0
      %516 = vmatpush.bf16.msra.mxu0 0
      %517 = vmatpush.bf16.msra.mxu0 0
      %518 = vmatpush.bf16.msra.mxu0 0
      %519 = vmatpush.bf16.msra.mxu0 0
      %520 = vmatpush.bf16.msra.mxu0 0
      %521 = vmatpush.bf16.msra.mxu0 %v463
      %522 = vmatpush.bf16.msra.mxu0 %v462
      %523 = vmatpush.bf16.msra.mxu0 %v461
      %524 = vmatmul.bf16.gmra.mxu0 %v469
      %v525 = vpop.f32.mrf.mxu0
      %v526 = vadd.f32 0.0, %v525
      %v527 = vpop.f32.mrf.mxu0
      %v528 = vadd.f32 0.0, %v527
      %529 = vmatmul.bf16.gmra.mxu0 %v472
      %v530 = vpop.f32.mrf.mxu0
      %v531 = vadd.f32 0.0, %v530
      %v532 = vpop.f32.mrf.mxu0
      %v533 = vadd.f32 0.0, %v532
      %534 = vmatmul.bf16.gmra.mxu0 %v475
      %v535 = vpop.f32.mrf.mxu0
      %v536 = vadd.f32 0.0, %v535
      %v537 = vpop.f32.mrf.mxu0
      %v538 = vadd.f32 0.0, %v537
      %539 = vmatmul.bf16.gmra.mxu0 %v478
      %v540 = vpop.f32.mrf.mxu0
      %v541 = vadd.f32 0.0, %v540
      %v542 = vpop.f32.mrf.mxu0
      %v543 = vadd.f32 0.0, %v542
      %544 = vmatmul.bf16.gmra.mxu0 %v481
      %v545 = vpop.f32.mrf.mxu0
      %v546 = vadd.f32 0.0, %v545
      %v547 = vpop.f32.mrf.mxu0
      %v548 = vadd.f32 0.0, %v547
      %549 = vmatmul.bf16.gmra.mxu0 %v484
      %v550 = vpop.f32.mrf.mxu0
      %v551 = vadd.f32 0.0, %v550
      %v552 = vpop.f32.mrf.mxu0
      %v553 = vadd.f32 0.0, %v552
      %554 = vmatmul.bf16.gmra.mxu0 %v487
      %v555 = vpop.f32.mrf.mxu0
      %v556 = vadd.f32 0.0, %v555
      %v557 = vpop.f32.mrf.mxu0
      %v558 = vadd.f32 0.0, %v557
      %559 = vmatmul.bf16.gmra.mxu0 %v490
      %v560 = vpop.f32.mrf.mxu0
      %v561 = vadd.f32 0.0, %v560
      %v562 = vpop.f32.mrf.mxu0
      %v563 = vadd.f32 0.0, %v562
      %564 = vmatmul.bf16.gmra.mxu0 %v493
      %v565 = vpop.f32.mrf.mxu0
      %v566 = vadd.f32 0.0, %v565
      %v567 = vpop.f32.mrf.mxu0
      %v568 = vadd.f32 0.0, %v567
      %569 = vmatmul.bf16.gmra.mxu0 %v496
      %v570 = vpop.f32.mrf.mxu0
      %v571 = vadd.f32 0.0, %v570
      %v572 = vpop.f32.mrf.mxu0
      %v573 = vadd.f32 0.0, %v572
      %574 = vmatmul.bf16.gmra.mxu0 %v499
      %v575 = vpop.f32.mrf.mxu0
      %v576 = vadd.f32 0.0, %v575
      %v577 = vpop.f32.mrf.mxu0
      %v578 = vadd.f32 0.0, %v577
      %579 = vmatmul.bf16.gmra.mxu0 %v502
      %v580 = vpop.f32.mrf.mxu0
      %v581 = vadd.f32 0.0, %v580
      %v582 = vpop.f32.mrf.mxu0
      %v583 = vadd.f32 0.0, %v582
      %584 = vmatmul.bf16.gmra.mxu0 %v505
      %v585 = vpop.f32.mrf.mxu0
      %v586 = vadd.f32 0.0, %v585
      %v587 = vpop.f32.mrf.mxu0
      %v588 = vadd.f32 0.0, %v587
      %589 = vmatmul.bf16.gmra.mxu0 %v508
      %v590 = vpop.f32.mrf.mxu0
      %v591 = vadd.f32 0.0, %v590
      %v592 = vpop.f32.mrf.mxu0
      %v593 = vadd.f32 0.0, %v592
      %594 = vmatmul.bf16.gmra.mxu0 %v511
      %v595 = vpop.f32.mrf.mxu0
      %v596 = vadd.f32 0.0, %v595
      %v597 = vpop.f32.mrf.mxu0
      %v598 = vadd.f32 0.0, %v597
      %599 = vmatmul.bf16.gmra.mxu0 %v514
      %v600 = vpop.f32.mrf.mxu0
      %v601 = vadd.f32 0.0, %v600
      %v602 = vpop.f32.mrf.mxu0
      %v603 = vadd.f32 0.0, %v602
      %604 = vdwg.mxu0
      %v605 = vadd.f32 %v299, %v526
      %v606 = vadd.f32 %v300, %v528
      %v607 = vadd.f32 %v301, %v531
      %v608 = vadd.f32 %v302, %v533
      %v609 = vadd.f32 %v303, %v536
      %v610 = vadd.f32 %v304, %v538
      %v611 = vadd.f32 %v305, %v541
      %v612 = vadd.f32 %v306, %v543
      %v613 = vadd.f32 %v307, %v546
      %v614 = vadd.f32 %v308, %v548
      %v615 = vadd.f32 %v309, %v551
      %v616 = vadd.f32 %v310, %v553
      %v617 = vadd.f32 %v311, %v556
      %v618 = vadd.f32 %v312, %v558
      %v619 = vadd.f32 %v313, %v561
      %v620 = vadd.f32 %v314, %v563
      %v621 = vadd.f32 %v315, %v566
      %v622 = vadd.f32 %v316, %v568
      %v623 = vadd.f32 %v317, %v571
      %v624 = vadd.f32 %v318, %v573
      %v625 = vadd.f32 %v319, %v576
      %v626 = vadd.f32 %v320, %v578
      %v627 = vadd.f32 %v321, %v581
      %v628 = vadd.f32 %v322, %v583
      %v629 = vadd.f32 %v323, %v586
      %v630 = vadd.f32 %v324, %v588
      %v631 = vadd.f32 %v325, %v591
      %v632 = vadd.f32 %v326, %v593
      %v633 = vadd.f32 %v327, %v596
      %v634 = vadd.f32 %v328, %v598
      %v635 = vadd.f32 %v329, %v601
      %v636 = vadd.f32 %v330, %v603
      %637 = vst [vmem:[#allocation2] sm:$0xff] %v605
      %638 = vst [vmem:[#allocation2 + $0x8] sm:$0xff] %v606
      %639 = vst [vmem:[#allocation2 + $0x10] sm:$0xff] %v607
      %640 = vst [vmem:[#allocation2 + $0x18] sm:$0xff] %v608
      %641 = vst [vmem:[#allocation2 + $0x20] sm:$0xff] %v609
      %642 = vst [vmem:[#allocation2 + $0x28] sm:$0xff] %v610
      %643 = vst [vmem:[#allocation2 + $0x30] sm:$0xff] %v611
      %644 = vst [vmem:[#allocation2 + $0x38] sm:$0xff] %v612
      %645 = vst [vmem:[#allocation2 + $0x40] sm:$0xff] %v613
      %646 = vst [vmem:[#allocation2 + $0x48] sm:$0xff] %v614
      %647 = vst [vmem:[#allocation2 + $0x50] sm:$0xff] %v615
      %648 = vst [vmem:[#allocation2 + $0x58] sm:$0xff] %v616
      %649 = vst [vmem:[#allocation2 + $0x60] sm:$0xff] %v617
      %650 = vst [vmem:[#allocation2 + $0x68] sm:$0xff] %v618
      %651 = vst [vmem:[#allocation2 + $0x70] sm:$0xff] %v619
      %652 = vst [vmem:[#allocation2 + $0x78] sm:$0xff] %v620
      %653 = vst [vmem:[#allocation2 + $0x80] sm:$0xff] %v621
      %654 = vst [vmem:[#allocation2 + $0x88] sm:$0xff] %v622
      %655 = vst [vmem:[#allocation2 + $0x90] sm:$0xff] %v623
      %656 = vst [vmem:[#allocation2 + $0x98] sm:$0xff] %v624
      %657 = vst [vmem:[#allocation2 + $0xa0] sm:$0xff] %v625
      %658 = vst [vmem:[#allocation2 + $0xa8] sm:$0xff] %v626
      %659 = vst [vmem:[#allocation2 + $0xb0] sm:$0xff] %v627
      %660 = vst [vmem:[#allocation2 + $0xb8] sm:$0xff] %v628
      %661 = vst [vmem:[#allocation2 + $0xc0] sm:$0xff] %v629
      %662 = vst [vmem:[#allocation2 + $0xc8] sm:$0xff] %v630
      %663 = vst [vmem:[#allocation2 + $0xd0] sm:$0xff] %v631
      %664 = vst [vmem:[#allocation2 + $0xd8] sm:$0xff] %v632
      %665 = vst [vmem:[#allocation2 + $0xe0] sm:$0xff] %v633
      %666 = vst [vmem:[#allocation2 + $0xe8] sm:$0xff] %v634
      %667 = vst [vmem:[#allocation2 + $0xf0] sm:$0xff] %v635
      %668 = vst [vmem:[#allocation2 + $0xf8] sm:$0xff] %v636
      // Predicated region
      $region37: #{vae_forward.14} parent=31 // pred_check
        %p669 = pneg %p263
      $region38: #{vae_forward.14} parent=31 // pred_check_branch
        %671 = sbr.rel (%p669) target = $region40
      $region39: #{vae_forward.14} parent=31 // pred_region
        %v672 = vld [vmem:[#allocation2] sm:$0xff]
        %v673 = vld [vmem:[#allocation2 + $0x8] sm:$0xff]
        %v674 = vld [vmem:[#allocation2 + $0x10] sm:$0xff]
        %v675 = vld [vmem:[#allocation2 + $0x18] sm:$0xff]
        %v676 = vld [vmem:[#allocation2 + $0x20] sm:$0xff]
        %v677 = vld [vmem:[#allocation2 + $0x28] sm:$0xff]
        %v678 = vld [vmem:[#allocation2 + $0x30] sm:$0xff]
        %v679 = vld [vmem:[#allocation2 + $0x38] sm:$0xff]
        %v680 = vld [vmem:[#allocation2 + $0x40] sm:$0xff]
        %v681 = vld [vmem:[#allocation2 + $0x48] sm:$0xff]
        %v682 = vld [vmem:[#allocation2 + $0x50] sm:$0xff]
        %v683 = vld [vmem:[#allocation2 + $0x58] sm:$0xff]
        %v684 = vld [vmem:[#allocation2 + $0x60] sm:$0xff]
        %v685 = vld [vmem:[#allocation2 + $0x68] sm:$0xff]
        %v686 = vld [vmem:[#allocation2 + $0x70] sm:$0xff]
        %v687 = vld [vmem:[#allocation2 + $0x78] sm:$0xff]
        %v688 = vld [vmem:[#allocation2 + $0x80] sm:$0xff]
        %v689 = vld [vmem:[#allocation2 + $0x88] sm:$0xff]
        %v690 = vld [vmem:[#allocation2 + $0x90] sm:$0xff]
        %v691 = vld [vmem:[#allocation2 + $0x98] sm:$0xff]
        %v692 = vld [vmem:[#allocation2 + $0xa0] sm:$0xff]
        %v693 = vld [vmem:[#allocation2 + $0xa8] sm:$0xff]
        %v694 = vld [vmem:[#allocation2 + $0xb0] sm:$0xff]
        %v695 = vld [vmem:[#allocation2 + $0xb8] sm:$0xff]
        %v696 = vld [vmem:[#allocation2 + $0xc0] sm:$0xff]
        %v697 = vld [vmem:[#allocation2 + $0xc8] sm:$0xff]
        %v698 = vld [vmem:[#allocation2 + $0xd0] sm:$0xff]
        %v699 = vld [vmem:[#allocation2 + $0xd8] sm:$0xff]
        %v700 = vld [vmem:[#allocation2 + $0xe0] sm:$0xff]
        %v701 = vld [vmem:[#allocation2 + $0xe8] sm:$0xff]
        %v702 = vld [vmem:[#allocation2 + $0xf0] sm:$0xff]
        %v703 = vld [vmem:[#allocation2 + $0xf8] sm:$0xff]
        %v704 = vld [vmem:[%s252] sm:$0x1]
        %v705 = vperm.slane %v704, 0
        %v706 = vmul.f32 %v672, %v705
        %v707 = vmul.f32 %v673, %v705
        %v708 = vmul.f32 %v674, %v705
        %v709 = vmul.f32 %v675, %v705
        %v710 = vmul.f32 %v676, %v705
        %v711 = vmul.f32 %v677, %v705
        %v712 = vmul.f32 %v678, %v705
        %v713 = vmul.f32 %v679, %v705
        %v714 = vmul.f32 %v680, %v705
        %v715 = vmul.f32 %v681, %v705
        %v716 = vmul.f32 %v682, %v705
        %v717 = vmul.f32 %v683, %v705
        %v718 = vmul.f32 %v684, %v705
        %v719 = vmul.f32 %v685, %v705
        %v720 = vmul.f32 %v686, %v705
        %v721 = vmul.f32 %v687, %v705
        %v722 = vmul.f32 %v688, %v705
        %v723 = vmul.f32 %v689, %v705
        %v724 = vmul.f32 %v690, %v705
        %v725 = vmul.f32 %v691, %v705
        %v726 = vmul.f32 %v692, %v705
        %v727 = vmul.f32 %v693, %v705
        %v728 = vmul.f32 %v694, %v705
        %v729 = vmul.f32 %v695, %v705
        %v730 = vmul.f32 %v696, %v705
        %v731 = vmul.f32 %v697, %v705
        %v732 = vmul.f32 %v698, %v705
        %v733 = vmul.f32 %v699, %v705
        %v734 = vmul.f32 %v700, %v705
        %v735 = vmul.f32 %v701, %v705
        %v736 = vmul.f32 %v702, %v705
        %v737 = vmul.f32 %v703, %v705
        %v738 = vld [vmem:[%s252 + $0x1] sm:$0x1]
        %v739 = vperm.slane %v738, 0
        %v740 = vadd.f32 %v706, %v739
        %v741 = vadd.f32 %v707, %v739
        %v742 = vadd.f32 %v708, %v739
        %v743 = vadd.f32 %v709, %v739
        %v744 = vadd.f32 %v710, %v739
        %v745 = vadd.f32 %v711, %v739
        %v746 = vadd.f32 %v712, %v739
        %v747 = vadd.f32 %v713, %v739
        %v748 = vadd.f32 %v714, %v739
        %v749 = vadd.f32 %v715, %v739
        %v750 = vadd.f32 %v716, %v739
        %v751 = vadd.f32 %v717, %v739
        %v752 = vadd.f32 %v718, %v739
        %v753 = vadd.f32 %v719, %v739
        %v754 = vadd.f32 %v720, %v739
        %v755 = vadd.f32 %v721, %v739
        %v756 = vadd.f32 %v722, %v739
        %v757 = vadd.f32 %v723, %v739
        %v758 = vadd.f32 %v724, %v739
        %v759 = vadd.f32 %v725, %v739
        %v760 = vadd.f32 %v726, %v739
        %v761 = vadd.f32 %v727, %v739
        %v762 = vadd.f32 %v728, %v739
        %v763 = vadd.f32 %v729, %v739
        %v764 = vadd.f32 %v730, %v739
        %v765 = vadd.f32 %v731, %v739
        %v766 = vadd.f32 %v732, %v739
        %v767 = vadd.f32 %v733, %v739
        %v768 = vadd.f32 %v734, %v739
        %v769 = vadd.f32 %v735, %v739
        %v770 = vadd.f32 %v736, %v739
        %v771 = vadd.f32 %v737, %v739
        %vm772 = vcmp.gt.f32.partialorder %v740, 0.0
        %vm773 = vcmp.gt.f32.partialorder %v741, 0.0
        %vm774 = vcmp.gt.f32.partialorder %v742, 0.0
        %vm775 = vcmp.gt.f32.partialorder %v743, 0.0
        %vm776 = vcmp.gt.f32.partialorder %v744, 0.0
        %vm777 = vcmp.gt.f32.partialorder %v745, 0.0
        %vm778 = vcmp.gt.f32.partialorder %v746, 0.0
        %vm779 = vcmp.gt.f32.partialorder %v747, 0.0
        %vm780 = vcmp.gt.f32.partialorder %v748, 0.0
        %vm781 = vcmp.gt.f32.partialorder %v749, 0.0
        %vm782 = vcmp.gt.f32.partialorder %v750, 0.0
        %vm783 = vcmp.gt.f32.partialorder %v751, 0.0
        %vm784 = vcmp.gt.f32.partialorder %v752, 0.0
        %vm785 = vcmp.gt.f32.partialorder %v753, 0.0
        %vm786 = vcmp.gt.f32.partialorder %v754, 0.0
        %vm787 = vcmp.gt.f32.partialorder %v755, 0.0
        %vm788 = vcmp.gt.f32.partialorder %v756, 0.0
        %vm789 = vcmp.gt.f32.partialorder %v757, 0.0
        %vm790 = vcmp.gt.f32.partialorder %v758, 0.0
        %vm791 = vcmp.gt.f32.partialorder %v759, 0.0
        %vm792 = vcmp.gt.f32.partialorder %v760, 0.0
        %vm793 = vcmp.gt.f32.partialorder %v761, 0.0
        %vm794 = vcmp.gt.f32.partialorder %v762, 0.0
        %vm795 = vcmp.gt.f32.partialorder %v763, 0.0
        %vm796 = vcmp.gt.f32.partialorder %v764, 0.0
        %vm797 = vcmp.gt.f32.partialorder %v765, 0.0
        %vm798 = vcmp.gt.f32.partialorder %v766, 0.0
        %vm799 = vcmp.gt.f32.partialorder %v767, 0.0
        %vm800 = vcmp.gt.f32.partialorder %v768, 0.0
        %vm801 = vcmp.gt.f32.partialorder %v769, 0.0
        %vm802 = vcmp.gt.f32.partialorder %v770, 0.0
        %vm803 = vcmp.gt.f32.partialorder %v771, 0.0
        %v804 = vmul.f32 %v740, 0.01
        %v805 = vmul.f32 %v741, 0.01
        %v806 = vmul.f32 %v742, 0.01
        %v807 = vmul.f32 %v743, 0.01
        %v808 = vmul.f32 %v744, 0.01
        %v809 = vmul.f32 %v745, 0.01
        %v810 = vmul.f32 %v746, 0.01
        %v811 = vmul.f32 %v747, 0.01
        %v812 = vmul.f32 %v748, 0.01
        %v813 = vmul.f32 %v749, 0.01
        %v814 = vmul.f32 %v750, 0.01
        %v815 = vmul.f32 %v751, 0.01
        %v816 = vmul.f32 %v752, 0.01
        %v817 = vmul.f32 %v753, 0.01
        %v818 = vmul.f32 %v754, 0.01
        %v819 = vmul.f32 %v755, 0.01
        %v820 = vmul.f32 %v756, 0.01
        %v821 = vmul.f32 %v757, 0.01
        %v822 = vmul.f32 %v758, 0.01
        %v823 = vmul.f32 %v759, 0.01
        %v824 = vmul.f32 %v760, 0.01
        %v825 = vmul.f32 %v761, 0.01
        %v826 = vmul.f32 %v762, 0.01
        %v827 = vmul.f32 %v763, 0.01
        %v828 = vmul.f32 %v764, 0.01
        %v829 = vmul.f32 %v765, 0.01
        %v830 = vmul.f32 %v766, 0.01
        %v831 = vmul.f32 %v767, 0.01
        %v832 = vmul.f32 %v768, 0.01
        %v833 = vmul.f32 %v769, 0.01
        %v834 = vmul.f32 %v770, 0.01
        %v835 = vmul.f32 %v771, 0.01
        %v836 = vsel %vm772, %v740, %v804
        %v837 = vsel %vm773, %v741, %v805
        %v838 = vsel %vm774, %v742, %v806
        %v839 = vsel %vm775, %v743, %v807
        %v840 = vsel %vm776, %v744, %v808
        %v841 = vsel %vm777, %v745, %v809
        %v842 = vsel %vm778, %v746, %v810
        %v843 = vsel %vm779, %v747, %v811
        %v844 = vsel %vm780, %v748, %v812
        %v845 = vsel %vm781, %v749, %v813
        %v846 = vsel %vm782, %v750, %v814
        %v847 = vsel %vm783, %v751, %v815
        %v848 = vsel %vm784, %v752, %v816
        %v849 = vsel %vm785, %v753, %v817
        %v850 = vsel %vm786, %v754, %v818
        %v851 = vsel %vm787, %v755, %v819
        %v852 = vsel %vm788, %v756, %v820
        %v853 = vsel %vm789, %v757, %v821
        %v854 = vsel %vm790, %v758, %v822
        %v855 = vsel %vm791, %v759, %v823
        %v856 = vsel %vm792, %v760, %v824
        %v857 = vsel %vm793, %v761, %v825
        %v858 = vsel %vm794, %v762, %v826
        %v859 = vsel %vm795, %v763, %v827
        %v860 = vsel %vm796, %v764, %v828
        %v861 = vsel %vm797, %v765, %v829
        %v862 = vsel %vm798, %v766, %v830
        %v863 = vsel %vm799, %v767, %v831
        %v864 = vsel %vm800, %v768, %v832
        %v865 = vsel %vm801, %v769, %v833
        %v866 = vsel %vm802, %v770, %v834
        %v867 = vsel %vm803, %v771, %v835
        %v868 = vpack.c.bf16 %v836, %v836
        %v869 = vpack.c.bf16 %v837, %v837
        %v870 = vpack.c.bf16 %v838, %v838
        %v871 = vpack.c.bf16 %v839, %v839
        %v872 = vpack.c.bf16 %v840, %v840
        %v873 = vpack.c.bf16 %v841, %v841
        %v874 = vpack.c.bf16 %v842, %v842
        %v875 = vpack.c.bf16 %v843, %v843
        %v876 = vpack.c.bf16 %v844, %v844
        %v877 = vpack.c.bf16 %v845, %v845
        %v878 = vpack.c.bf16 %v846, %v846
        %v879 = vpack.c.bf16 %v847, %v847
        %v880 = vpack.c.bf16 %v848, %v848
        %v881 = vpack.c.bf16 %v849, %v849
        %v882 = vpack.c.bf16 %v850, %v850
        %v883 = vpack.c.bf16 %v851, %v851
        %v884 = vpack.c.bf16 %v852, %v852
        %v885 = vpack.c.bf16 %v853, %v853
        %v886 = vpack.c.bf16 %v854, %v854
        %v887 = vpack.c.bf16 %v855, %v855
        %v888 = vpack.c.bf16 %v856, %v856
        %v889 = vpack.c.bf16 %v857, %v857
        %v890 = vpack.c.bf16 %v858, %v858
        %v891 = vpack.c.bf16 %v859, %v859
        %v892 = vpack.c.bf16 %v860, %v860
        %v893 = vpack.c.bf16 %v861, %v861
        %v894 = vpack.c.bf16 %v862, %v862
        %v895 = vpack.c.bf16 %v863, %v863
        %v896 = vpack.c.bf16 %v864, %v864
        %v897 = vpack.c.bf16 %v865, %v865
        %v898 = vpack.c.bf16 %v866, %v866
        %v899 = vpack.c.bf16 %v867, %v867
        %900 = vst [vmem:[%s260] sm:$0xf] %v868
        %901 = vst [vmem:[%s260 + $0x4] sm:$0xf] %v869
        %902 = vst [vmem:[%s260 + $0x8] sm:$0xf] %v870
        %903 = vst [vmem:[%s260 + $0xc] sm:$0xf] %v871
        %904 = vst [vmem:[%s260 + $0x10] sm:$0xf] %v872
        %905 = vst [vmem:[%s260 + $0x14] sm:$0xf] %v873
        %906 = vst [vmem:[%s260 + $0x18] sm:$0xf] %v874
        %907 = vst [vmem:[%s260 + $0x1c] sm:$0xf] %v875
        %908 = vst [vmem:[%s260 + $0x20] sm:$0xf] %v876
        %909 = vst [vmem:[%s260 + $0x24] sm:$0xf] %v877
        %910 = vst [vmem:[%s260 + $0x28] sm:$0xf] %v878
        %911 = vst [vmem:[%s260 + $0x2c] sm:$0xf] %v879
        %912 = vst [vmem:[%s260 + $0x30] sm:$0xf] %v880
        %913 = vst [vmem:[%s260 + $0x34] sm:$0xf] %v881
        %914 = vst [vmem:[%s260 + $0x38] sm:$0xf] %v882
        %915 = vst [vmem:[%s260 + $0x3c] sm:$0xf] %v883
        %916 = vst [vmem:[%s260 + $0x40] sm:$0xf] %v884
        %917 = vst [vmem:[%s260 + $0x44] sm:$0xf] %v885
        %918 = vst [vmem:[%s260 + $0x48] sm:$0xf] %v886
        %919 = vst [vmem:[%s260 + $0x4c] sm:$0xf] %v887
        %920 = vst [vmem:[%s260 + $0x50] sm:$0xf] %v888
        %921 = vst [vmem:[%s260 + $0x54] sm:$0xf] %v889
        %922 = vst [vmem:[%s260 + $0x58] sm:$0xf] %v890
        %923 = vst [vmem:[%s260 + $0x5c] sm:$0xf] %v891
        %924 = vst [vmem:[%s260 + $0x60] sm:$0xf] %v892
        %925 = vst [vmem:[%s260 + $0x64] sm:$0xf] %v893
        %926 = vst [vmem:[%s260 + $0x68] sm:$0xf] %v894
        %927 = vst [vmem:[%s260 + $0x6c] sm:$0xf] %v895
        %928 = vst [vmem:[%s260 + $0x70] sm:$0xf] %v896
        %929 = vst [vmem:[%s260 + $0x74] sm:$0xf] %v897
        %930 = vst [vmem:[%s260 + $0x78] sm:$0xf] %v898
        %931 = vst [vmem:[%s260 + $0x7c] sm:$0xf] %v899
      $region40: #{vae_forward.14} parent=31 // pred_fallthru
        _
      %s932 = smul.u32 32, %s19
      %p933 = scmp.lt.s32.totalorder %s932, 63
      %s934 = scalar_select %p933, %s932, 63
      %p935 = scmp.lt.s32.totalorder %s20, 0
      %s936 = scalar_select %p935, %s20, 0
      %s937 = sadd.s32 %s936, %s934
      %s938 = smul.addr %s937, 4
      %s939 = scalar_lea.vmem %s3, %s938
      // Predicated region
      $region41: #{vae_forward.14} parent=31 // pred_check
        %p940 = pneg %p135
      $region42: #{vae_forward.14} parent=31 // pred_check_branch
        %942 = sbr.rel (%p940) target = $region44
      $region43: #{vae_forward.14} parent=31 // pred_region
        %s943 = smul.u32 32, %s19
      $region44: #{vae_forward.14} parent=31 // pred_fallthru
        _
    $region32: #{vae_forward.14} parent=5 // pred_fallthru
      _
    %p944 = scmp.le.s32.totalorder 2, %s9
    // Predicated region
    $region45: #{vae_forward.14} parent=5 // pred_check
      %p945 = pneg %p944
    $region46: #{vae_forward.14} parent=5 // pred_check_branch
      %947 = sbr.rel (%p945) target = $region48
    $region47: #{vae_forward.14} parent=5 // pred_region
      %s948 = ssub.s32 %s9, 2
      // Predicated region
      $region49: #{vae_forward.14} parent=47 // pred_check
        %p949 = pneg %p141
      $region50: #{vae_forward.14} parent=47 // pred_check_branch
        %951 = sbr.rel (%p949) target = $region52
      $region51: #{vae_forward.14} parent=47 // pred_region
        %s952 = smul.u32 32, %s22
        %p953 = scmp.lt.s32.totalorder %s952, 63
        %s954 = scalar_select %p953, %s952, 63
        %p955 = scmp.lt.s32.totalorder %s23, 0
        %s956 = scalar_select %p955, %s23, 0
        %s957 = sadd.s32 %s956, %s954
        %s958 = smul.addr %s957, 4
        %s959 = scalar_lea.vmem %s3, %s958
      $region52: #{vae_forward.14} parent=47 // pred_fallthru
        _
    $region48: #{vae_forward.14} parent=5 // pred_fallthru
      _
  $region6: #{vae_forward.14} parent=0 // loop_footer
    %s13 = sadd.s32 1, %s9
  $region7: #{vae_forward.14} parent=0 // loop_footer_branch
    %8 = sbr.rel target = $region3
  $region8: #{vae_forward.14} parent=0 // loop_exit
    _

</llo_original>
